<compile_context>
chip_gen: v7x
topology: tpu7x:2x2x1
jax: 0.10.0
libtpu: 0.0.40
codegen_flags: <defaults>
</compile_context>

<pallas_src>
import functools

import jax
import jax.numpy as jnp
from jax.experimental import pallas as pl
from jax.experimental.pallas import tpu as pltpu


_PAR = pltpu.CompilerParams(dimension_semantics=("parallel",))


# ---------------------------------------------------------------------------
# In-kernel helpers: 3x3 halo taps on a row-major flattened (H, W, C) plane
# ---------------------------------------------------------------------------
def _edge_masks(num_pix, width):
    col = jax.lax.broadcasted_iota(jnp.int32, (num_pix, 1), 0) % width
    return col != 0, col != (width - 1)          # not_first_col, not_last_col


def _tap(x, dy, dx, width, not_first, not_last):
    """y[(h, w)] = x[(h+dy, w+dx)], zero outside the image.  x is (H*W, C)."""
    if dy == -1:
        x = jnp.concatenate(
            [jnp.zeros((width,) + x.shape[1:], x.dtype), x[:-width]], axis=0)
    elif dy == 1:
        x = jnp.concatenate(
            [x[width:], jnp.zeros((width,) + x.shape[1:], x.dtype)], axis=0)
    if dx == -1:
        x = jnp.concatenate(
            [jnp.zeros((1,) + x.shape[1:], x.dtype), x[:-1]], axis=0)
        x = jnp.where(not_first, x, jnp.zeros_like(x))
    elif dx == 1:
        x = jnp.concatenate(
            [x[1:], jnp.zeros((1,) + x.shape[1:], x.dtype)], axis=0)
        x = jnp.where(not_last, x, jnp.zeros_like(x))
    return x


def _stride2_taps(p_ee, p_eo, p_oe, p_oo):
    """(phase, dy, dx) for tap k = ky*3+kx of a pad-1 stride-2 3x3 conv:
    output (y, x) tap (ky, kx) reads input (2y+ky-1, 2x+kx-1)."""
    return [
        (p_oo, -1, -1), (p_oe, -1, 0), (p_oo, -1, 0),
        (p_eo, 0, -1), (p_ee, 0, 0), (p_eo, 0, 0),
        (p_oo, 0, -1), (p_oe, 0, 0), (p_oo, 0, 0),
    ]


# ---------------------------------------------------------------------------
# Kernel A: stem (3x3 s2 conv + ReLU) fused with inverted-residual block 1
# ---------------------------------------------------------------------------
def _stem_block1_kernel(width, xp_ref, wc_ref, wu_ref, wl_ref, wul_ref, b0_ref,
                        wexp_ref, bexp_ref, wdw_ref, bdw_ref,
                        wproj_ref, bproj_ref, o_ref):
    num_pix = xp_ref.shape[1]
    xp = xp_ref[0]                                        # (P, 4*Cin) f32
    not_first, not_last = _edge_masks(num_pix, width)

    # stem: stride-2 3x3 conv == 4 shifted MXU matmuls on the packed input
    f0 = jnp.dot(xp, wc_ref[...], preferred_element_type=jnp.float32)
    f0 = f0 + jnp.dot(_tap(xp, -1, 0, width, not_first, not_last),
                      wu_ref[...], preferred_element_type=jnp.float32)
    f0 = f0 + jnp.dot(_tap(xp, 0, -1, width, not_first, not_last),
                      wl_ref[...], preferred_element_type=jnp.float32)
    f0 = f0 + jnp.dot(_tap(xp, -1, -1, width, not_first, not_last),
                      wul_ref[...], preferred_element_type=jnp.float32)
    f0 = jnp.maximum(f0 + b0_ref[...], 0.0)               # (P, 16) f32

    # block 1 (stride 1): 1x1 expand -> dw3x3 -> 1x1 project + residual
    t = jnp.dot(f0.astype(jnp.bfloat16), wexp_ref[...],
                preferred_element_type=jnp.float32)
    t = jnp.maximum(t + bexp_ref[...], 0.0).astype(jnp.bfloat16)   # (P, 32)

    wdw = wdw_ref[...]                                     # (9, 32) f32
    acc = jnp.zeros((num_pix, wdw.shape[1]), jnp.float32)
    k = 0
    for dy in (-1, 0, 1):
        for dx in (-1, 0, 1):
            win = _tap(t, dy, dx, width, not_first, not_last)
            acc = acc + win.astype(jnp.float32) * wdw[k:k + 1, :]
            k += 1
    acc = jnp.maximum(acc + bdw_ref[...], 0.0)
    # TODO(synk): MobileNetV2 often uses ReLU6 here; plain ReLU kept to match
    # the 'relu' checkpoint name.

    out = jnp.dot(acc.astype(jnp.bfloat16), wproj_ref[...],
                  preferred_element_type=jnp.float32)
    o_ref[0] = (out + bproj_ref[...] + f0).astype(o_ref.dtype)


# ---------------------------------------------------------------------------
# Kernel B: inverted-residual block 2 (stride 2) + semi/desc heads + GAP(z)
# ---------------------------------------------------------------------------
def _block2_heads_kernel(width, fp_ref, wexp_ref, bexp_ref, wdw_ref, bdw_ref,
                         wproj_ref, bproj_ref, wsemi_ref, bsemi_ref,
                         wdesc_ref, bdesc_ref, semi_ref, desc_ref, z_ref):
    num_pix = fp_ref.shape[1]
    c_in = wexp_ref.shape[0]
    fp = fp_ref[0]                                         # (P2, 4*Cin) bf16
    not_first, not_last = _edge_masks(num_pix, width)

    wexp = wexp_ref[...]
    bexp = bexp_ref[...]

    def expand(phase):                                     # (P2, Cin) -> (P2, Cmid)
        e = jnp.dot(phase, wexp, preferred_element_type=jnp.float32)
        return jnp.maximum(e + bexp, 0.0).astype(jnp.bfloat16)

    t_ee = expand(fp[:, 0 * c_in:1 * c_in])
    t_eo = expand(fp[:, 1 * c_in:2 * c_in])
    t_oe = expand(fp[:, 2 * c_in:3 * c_in])
    t_oo = expand(fp[:, 3 * c_in:4 * c_in])

    wdw = wdw_ref[...]                                     # (9, 48) f32
    acc = jnp.zeros((num_pix, wdw.shape[1]), jnp.float32)
    for k, (phase, dy, dx) in enumerate(_stride2_taps(t_ee, t_eo, t_oe, t_oo)):
        win = _tap(phase, dy, dx, width, not_first, not_last)
        acc = acc + win.astype(jnp.float32) * wdw[k:k + 1, :]
    acc = jnp.maximum(acc + bdw_ref[...], 0.0)

    f2 = jnp.dot(acc.astype(jnp.bfloat16), wproj_ref[...],
                 preferred_element_type=jnp.float32) + bproj_ref[...]  # (P2, 32)

    # latent z: global average pool over the spatial plane, in f32
    z_ref[0] = jnp.mean(f2, axis=0, keepdims=True)

    f2b = f2.astype(jnp.bfloat16)
    semi_ref[0] = jnp.dot(f2b, wsemi_ref[...],
                          preferred_element_type=jnp.float32) + bsemi_ref[...]
    desc_ref[0] = jnp.dot(f2b, wdesc_ref[...],
                          preferred_element_type=jnp.float32) + bdesc_ref[...]
    # TODO(synk): SuperPoint-style desc heads may L2-normalize; the exact head
    # config of the checkpoint is unknown.


# ---------------------------------------------------------------------------
# Wrappers
# ---------------------------------------------------------------------------
def _space_to_depth(x):
    """(N, H, W, C) -> (N, (H/2)*(W/2), 4*C); channel blocks = [ee, eo, oe, oo]."""
    n, h, w, c = x.shape
    x = x.reshape(n, h // 2, 2, w // 2, 2, c)
    x = jnp.transpose(x, (0, 1, 3, 2, 4, 5))
    return x.reshape(n, (h // 2) * (w // 2), 4 * c)


def _pack_stem_weights(w):
    """Fold the stride-2 3x3 im2col into four (4*Cin, Cout) matrices applied to
    the space-to-depth input at shifts (0,0), (-1,0), (0,-1), (-1,-1)."""
    z = jnp.zeros(w.shape[2:], w.dtype)                    # (Cin, Cout)
    cat = lambda blocks: jnp.concatenate(blocks, axis=0)   # phase order ee,eo,oe,oo
    w_c = cat([w[1, 1], w[1, 2], w[2, 1], w[2, 2]])
    w_u = cat([z, z, w[0, 1], w[0, 2]])
    w_l = cat([z, w[1, 0], z, w[2, 0]])
    w_ul = cat([z, z, z, w[0, 0]])
    return w_c, w_u, w_l, w_ul


def _const_spec(shape):
    return pl.BlockSpec(shape, lambda n_, _s=shape: tuple(0 for _ in _s))


def stem_block1(x_nhwc, p):
    n, h, w, c_in = x_nhwc.shape
    assert h % 2 == 0 and w % 2 == 0  # TODO(synk): odd H/W needs ceil-division output
    ho, wo = h // 2, w // 2
    num_pix = ho * wo
    c0 = p['stem_w'].shape[-1]
    c1 = p['b1_exp_w'].shape[-1]

    xp = _space_to_depth(x_nhwc.astype(jnp.float32))        # (N, P, 4*Cin) f32
    w_c, w_u, w_l, w_ul = _pack_stem_weights(p['stem_w'].astype(jnp.float32))

    f1 = pl.pallas_call(
        functools.partial(_stem_block1_kernel, wo),
        out_shape=jax.ShapeDtypeStruct((n, num_pix, c0), jnp.bfloat16),
        grid=(n,),
        in_specs=[
            pl.BlockSpec((1, num_pix, 4 * c_in), lambda n_: (n_, 0, 0)),
            _const_spec((4 * c_in, c0)), _const_spec((4 * c_in, c0)),
            _const_spec((4 * c_in, c0)), _const_spec((4 * c_in, c0)),
            _const_spec((1, c0)),
            _const_spec((c0, c1)), _const_spec((1, c1)),
            _const_spec((9, c1)), _const_spec((1, c1)),
            _const_spec((c1, c0)), _const_spec((1, c0)),
        ],
        out_specs=pl.BlockSpec((1, num_pix, c0), lambda n_: (n_, 0, 0)),
        compiler_params=_PAR,
    )(xp, w_c, w_u, w_l, w_ul,
      p['stem_b'].reshape(1, c0).astype(jnp.float32),
      p['b1_exp_w'].astype(jnp.bfloat16),
      p['b1_exp_b'].reshape(1, c1).astype(jnp.float32),
      p['b1_dw_w'].reshape(9, c1).astype(jnp.float32),
      p['b1_dw_b'].reshape(1, c1).astype(jnp.float32),
      p['b1_proj_w'].astype(jnp.bfloat16),
      p['b1_proj_b'].reshape(1, c0).astype(jnp.float32))
    return f1, ho, wo


def block2_heads(f1_flat, ho, wo, p):
    n = f1_flat.shape[0]
    c0 = f1_flat.shape[-1]
    assert ho % 2 == 0 and wo % 2 == 0
    ho2, wo2 = ho // 2, wo // 2
    num_pix = ho2 * wo2
    c_mid = p['b2_exp_w'].shape[-1]
    c2 = p['b2_proj_w'].shape[-1]
    n_semi = p['semi_w'].shape[-1]
    n_desc = p['desc_w'].shape[-1]

    fp = _space_to_depth(f1_flat.reshape(n, ho, wo, c0))     # (N, P2, 4*c0) bf16

    semi, desc, z = pl.pallas_call(
        functools.partial(_block2_heads_kernel, wo2),
        out_shape=(jax.ShapeDtypeStruct((n, num_pix, n_semi), jnp.float32),
                   jax.ShapeDtypeStruct((n, num_pix, n_desc), jnp.float32),
                   jax.ShapeDtypeStruct((n, 1, c2), jnp.float32)),
        grid=(n,),
        in_specs=[
            pl.BlockSpec((1, num_pix, 4 * c0), lambda n_: (n_, 0, 0)),
            _const_spec((c0, c_mid)), _const_spec((1, c_mid)),
            _const_spec((9, c_mid)), _const_spec((1, c_mid)),
            _const_spec((c_mid, c2)), _const_spec((1, c2)),
            _const_spec((c2, n_semi)), _const_spec((1, n_semi)),
            _const_spec((c2, n_desc)), _const_spec((1, n_desc)),
        ],
        out_specs=(pl.BlockSpec((1, num_pix, n_semi), lambda n_: (n_, 0, 0)),
                   pl.BlockSpec((1, num_pix, n_desc), lambda n_: (n_, 0, 0)),
                   pl.BlockSpec((1, 1, c2), lambda n_: (n_, 0, 0))),
        compiler_params=_PAR,
    )(fp,
      p['b2_exp_w'].astype(jnp.bfloat16),
      p['b2_exp_b'].reshape(1, c_mid).astype(jnp.float32),
      p['b2_dw_w'].reshape(9, c_mid).astype(jnp.float32),
      p['b2_dw_b'].reshape(1, c_mid).astype(jnp.float32),
      p['b2_proj_w'].astype(jnp.bfloat16),
      p['b2_proj_b'].reshape(1, c2).astype(jnp.float32),
      p['semi_w'].astype(jnp.bfloat16),
      p['semi_b'].reshape(1, n_semi).astype(jnp.float32),
      p['desc_w'].astype(jnp.bfloat16),
      p['desc_b'].reshape(1, n_desc).astype(jnp.float32))
    return semi, desc, z, ho2, wo2


# ---------------------------------------------------------------------------
# Parameters & forward pass
# ---------------------------------------------------------------------------
def init_params(key):
    # Deterministic synthetic weights; BatchNorm assumed folded into conv w/b.
    ks = jax.random.split(key, 9)

    def w(k, shape):
        fan_in = 1
        for d in shape[:-1]:
            fan_in *= d
        return jax.random.normal(k, shape, jnp.float32) / jnp.sqrt(float(fan_in))

    z = lambda *s: jnp.zeros(s, jnp.float32)
    p = {}
    p['stem_w'], p['stem_b'] = w(ks[0], (3, 3, 3, 16)), z(16)
    p['b1_exp_w'], p['b1_exp_b'] = w(ks[1], (16, 32)), z(32)
    p['b1_dw_w'], p['b1_dw_b'] = w(ks[2], (3, 3, 32)), z(32)
    p['b1_proj_w'], p['b1_proj_b'] = w(ks[3], (32, 16)), z(16)
    p['b2_exp_w'], p['b2_exp_b'] = w(ks[4], (16, 48)), z(48)
    p['b2_dw_w'], p['b2_dw_b'] = w(ks[5], (3, 3, 48)), z(48)
    p['b2_proj_w'], p['b2_proj_b'] = w(ks[6], (48, 32)), z(32)
    p['semi_w'], p['semi_b'] = w(ks[7], (32, 65)), z(65)
    p['desc_w'], p['desc_b'] = w(ks[8], (32, 64)), z(64)
    return p


def forward(params, x_nchw):
    """DeepModel.forward: returns (semi, desc, z)."""
    x = jnp.transpose(x_nchw, (0, 2, 3, 1)).astype(jnp.float32)     # NCHW -> NHWC

    f1, ho, wo = stem_block1(x, params)                              # (N, P, 16)
    semi_f, desc_f, z, ho2, wo2 = block2_heads(f1, ho, wo, params)

    n = x.shape[0]
    n_semi = params['semi_w'].shape[-1]
    n_desc = params['desc_w'].shape[-1]
    # TODO(synk): fold this NHWC->NCHW transpose into the heads kernel (emit
    # channel-major blocks) to avoid re-reading the head maps for big images.
    semi = jnp.transpose(semi_f.reshape(n, ho2, wo2, n_semi), (0, 3, 1, 2))
    desc = jnp.transpose(desc_f.reshape(n, ho2, wo2, n_desc), (0, 3, 1, 2))
    z = z.reshape(n, params['b2_proj_w'].shape[-1])
    return semi, desc, z


if __name__ == "__main__":
    x = jax.random.normal(jax.random.PRNGKey(0), (2, 3, 16, 16), jnp.float32)
    params = init_params(jax.random.PRNGKey(42))

    semi, desc, z = jax.jit(forward)(params, x)
    jax.block_until_ready((semi, desc, z))

    assert semi.shape == (2, 65, 4, 4), semi.shape
    assert desc.shape == (2, 64, 4, 4), desc.shape
    assert z.shape == (2, 32), z.shape
    assert semi.dtype == desc.dtype == z.dtype == jnp.float32
    print("KERNEL_OK")
</pallas_src>

<mosaic_0001>
module attributes {stable_mosaic.version = 11 : i64} {
  func.func @_stem_block1_kernel(%arg0: i32, %arg1: memref<1x64x12xf32, #tpu.memory_space<vmem>>, %arg2: memref<12x16xf32, #tpu.memory_space<vmem>>, %arg3: memref<12x16xf32, #tpu.memory_space<vmem>>, %arg4: memref<12x16xf32, #tpu.memory_space<vmem>>, %arg5: memref<12x16xf32, #tpu.memory_space<vmem>>, %arg6: memref<1x16xf32, #tpu.memory_space<vmem>>, %arg7: memref<16x32xbf16, #tpu.memory_space<vmem>>, %arg8: memref<1x32xf32, #tpu.memory_space<vmem>>, %arg9: memref<9x32xf32, #tpu.memory_space<vmem>>, %arg10: memref<1x32xf32, #tpu.memory_space<vmem>>, %arg11: memref<32x16xbf16, #tpu.memory_space<vmem>>, %arg12: memref<1x16xf32, #tpu.memory_space<vmem>>, %arg13: memref<1x64x16xbf16, #tpu.memory_space<vmem>>) attributes {dimension_semantics = [#tpu.dimension_semantics<parallel>], iteration_bounds = array<i64: 2>, scalar_prefetch = 0 : i64, scratch_operands = 0 : i64, tpu.core_type = #tpu.core_type<tc>, window_params = [{transform_indices = @transform_0, window_bounds = array<i64: 1, 64, 12>}, {pipeline_mode = #tpu.pipeline_mode<synchronous>, transform_indices = @transform_1, window_bounds = array<i64: 12, 16>}, {pipeline_mode = #tpu.pipeline_mode<synchronous>, transform_indices = @transform_2, window_bounds = array<i64: 12, 16>}, {pipeline_mode = #tpu.pipeline_mode<synchronous>, transform_indices = @transform_3, window_bounds = array<i64: 12, 16>}, {pipeline_mode = #tpu.pipeline_mode<synchronous>, transform_indices = @transform_4, window_bounds = array<i64: 12, 16>}, {pipeline_mode = #tpu.pipeline_mode<synchronous>, transform_indices = @transform_5, window_bounds = array<i64: 1, 16>}, {pipeline_mode = #tpu.pipeline_mode<synchronous>, transform_indices = @transform_6, window_bounds = array<i64: 16, 32>}, {pipeline_mode = #tpu.pipeline_mode<synchronous>, transform_indices = @transform_7, window_bounds = array<i64: 1, 32>}, {pipeline_mode = #tpu.pipeline_mode<synchronous>, transform_indices = @transform_8, window_bounds = array<i64: 9, 32>}, {pipeline_mode = #tpu.pipeline_mode<synchronous>, transform_indices = @transform_9, window_bounds = array<i64: 1, 32>}, {pipeline_mode = #tpu.pipeline_mode<synchronous>, transform_indices = @transform_10, window_bounds = array<i64: 32, 16>}, {pipeline_mode = #tpu.pipeline_mode<synchronous>, transform_indices = @transform_11, window_bounds = array<i64: 1, 16>}, {transform_indices = @transform_12, window_bounds = array<i64: 1, 64, 16>}]} {
    %c0 = arith.constant 0 : index
    %c0_0 = arith.constant 0 : index
    %c0_1 = arith.constant 0 : index
    %0 = vector.load %arg1[%c0, %c0_0, %c0_1] : memref<1x64x12xf32, #tpu.memory_space<vmem>>, vector<1x64x12xf32>
    %1 = vector.shape_cast %0 : vector<1x64x12xf32> to vector<64x12xf32>
    %2 = tpu.iota {dimensions = array<i32: 0>} : vector<64x1xi32>
    %c8_i32 = arith.constant 8 : i32
    %c0_i32 = arith.constant 0 : i32
    %3 = arith.cmpi eq, %c8_i32, %c0_i32 : i32
    %c1_i32 = arith.constant 1 : i32
    %4 = arith.select %3, %c1_i32, %c8_i32 : i32
    %5 = vector.broadcast %4 : i32 to vector<64x1xi32>
    %6 = arith.remsi %2, %5 : vector<64x1xi32>
    %c0_i32_2 = arith.constant 0 : i32
    %7 = vector.broadcast %c0_i32_2 : i32 to vector<64x1xi32>
    %8 = arith.cmpi ne, %6, %7 : vector<64x1xi32>
    %c0_i32_3 = arith.constant 0 : i32
    %9 = vector.broadcast %c0_i32_3 : i32 to vector<64x1xi32>
    %10 = arith.cmpi slt, %6, %9 : vector<64x1xi32>
    %c0_i32_4 = arith.constant 0 : i32
    %11 = arith.cmpi slt, %4, %c0_i32_4 : i32
    %12 = vector.broadcast %11 : i1 to vector<64x1xi1>
    %13 = vector.broadcast %12 : vector<64x1xi1> to vector<64x1xi1>
    %14 = arith.xori %10, %13 : vector<64x1xi1>
    %15 = arith.andi %14, %8 : vector<64x1xi1>
    %16 = vector.broadcast %4 : i32 to vector<64x1xi32>
    %17 = arith.addi %6, %16 : vector<64x1xi32>
    %18 = arith.select %15, %17, %6 : vector<64x1xi1>, vector<64x1xi32>
    %c0_i32_5 = arith.constant 0 : i32
    %19 = vector.broadcast %c0_i32_5 : i32 to vector<64x1xi32>
    %20 = arith.cmpi ne, %18, %19 : vector<64x1xi32>
    %c7_i32 = arith.constant 7 : i32
    %21 = vector.broadcast %c7_i32 : i32 to vector<64x1xi32>
    %22 = arith.cmpi ne, %18, %21 : vector<64x1xi32>
    %c0_6 = arith.constant 0 : index
    %c0_7 = arith.constant 0 : index
    %23 = vector.load %arg2[%c0_6, %c0_7] : memref<12x16xf32, #tpu.memory_space<vmem>>, vector<12x16xf32>
    %cst = arith.constant dense<0.000000e+00> : vector<64x16xf32>
    %24 = tpu.matmul %1, %23, %cst {dimension_numbers = #tpu.dot_dimension_numbers<[1], [0], [0], [1], [0, 0, 1, 1], [], []>} : vector<64x12xf32>, vector<12x16xf32>, vector<64x16xf32> -> vector<64x16xf32>
    %cst_8 = arith.constant 0.000000e+00 : f32
    %25 = vector.broadcast %cst_8 : f32 to vector<8x12xf32>
    %26 = vector.extract_strided_slice %1 {offsets = [0, 0], sizes = [56, 12], strides = [1, 1]} : vector<64x12xf32> to vector<56x12xf32>
    %27 = tpu.concatenate %25, %26 in 0 : vector<8x12xf32>, vector<56x12xf32> -> vector<64x12xf32>
    %c0_9 = arith.constant 0 : index
    %c0_10 = arith.constant 0 : index
    %28 = vector.load %arg3[%c0_9, %c0_10] : memref<12x16xf32, #tpu.memory_space<vmem>>, vector<12x16xf32>
    %cst_11 = arith.constant dense<0.000000e+00> : vector<64x16xf32>
    %29 = tpu.matmul %27, %28, %cst_11 {dimension_numbers = #tpu.dot_dimension_numbers<[1], [0], [0], [1], [0, 0, 1, 1], [], []>} : vector<64x12xf32>, vector<12x16xf32>, vector<64x16xf32> -> vector<64x16xf32>
    %30 = arith.addf %24, %29 : vector<64x16xf32>
    %cst_12 = arith.constant 0.000000e+00 : f32
    %31 = vector.broadcast %cst_12 : f32 to vector<1x12xf32>
    %32 = vector.extract_strided_slice %1 {offsets = [0, 0], sizes = [63, 12], strides = [1, 1]} : vector<64x12xf32> to vector<63x12xf32>
    %33 = tpu.concatenate %31, %32 in 0 : vector<1x12xf32>, vector<63x12xf32> -> vector<64x12xf32>
    %cst_13 = arith.constant 0.000000e+00 : f32
    %34 = vector.broadcast %cst_13 : f32 to vector<64x12xf32>
    %35 = vector.shape_cast %20 : vector<64x1xi1> to vector<64x1xi1>
    %36 = vector.broadcast %35 : vector<64x1xi1> to vector<64x12xi1>
    %37 = arith.select %36, %33, %34 : vector<64x12xi1>, vector<64x12xf32>
    %c0_14 = arith.constant 0 : index
    %c0_15 = arith.constant 0 : index
    %38 = vector.load %arg4[%c0_14, %c0_15] : memref<12x16xf32, #tpu.memory_space<vmem>>, vector<12x16xf32>
    %cst_16 = arith.constant dense<0.000000e+00> : vector<64x16xf32>
    %39 = tpu.matmul %37, %38, %cst_16 {dimension_numbers = #tpu.dot_dimension_numbers<[1], [0], [0], [1], [0, 0, 1, 1], [], []>} : vector<64x12xf32>, vector<12x16xf32>, vector<64x16xf32> -> vector<64x16xf32>
    %40 = arith.addf %30, %39 : vector<64x16xf32>
    %cst_17 = arith.constant 0.000000e+00 : f32
    %41 = vector.broadcast %cst_17 : f32 to vector<8x12xf32>
    %42 = vector.extract_strided_slice %1 {offsets = [0, 0], sizes = [56, 12], strides = [1, 1]} : vector<64x12xf32> to vector<56x12xf32>
    %43 = tpu.concatenate %41, %42 in 0 : vector<8x12xf32>, vector<56x12xf32> -> vector<64x12xf32>
    %cst_18 = arith.constant 0.000000e+00 : f32
    %44 = vector.broadcast %cst_18 : f32 to vector<1x12xf32>
    %45 = vector.extract_strided_slice %43 {offsets = [0, 0], sizes = [63, 12], strides = [1, 1]} : vector<64x12xf32> to vector<63x12xf32>
    %46 = tpu.concatenate %44, %45 in 0 : vector<1x12xf32>, vector<63x12xf32> -> vector<64x12xf32>
    %cst_19 = arith.constant 0.000000e+00 : f32
    %47 = vector.broadcast %cst_19 : f32 to vector<64x12xf32>
    %48 = vector.shape_cast %20 : vector<64x1xi1> to vector<64x1xi1>
    %49 = vector.broadcast %48 : vector<64x1xi1> to vector<64x12xi1>
    %50 = arith.select %49, %46, %47 : vector<64x12xi1>, vector<64x12xf32>
    %c0_20 = arith.constant 0 : index
    %c0_21 = arith.constant 0 : index
    %51 = vector.load %arg5[%c0_20, %c0_21] : memref<12x16xf32, #tpu.memory_space<vmem>>, vector<12x16xf32>
    %cst_22 = arith.constant dense<0.000000e+00> : vector<64x16xf32>
    %52 = tpu.matmul %50, %51, %cst_22 {dimension_numbers = #tpu.dot_dimension_numbers<[1], [0], [0], [1], [0, 0, 1, 1], [], []>} : vector<64x12xf32>, vector<12x16xf32>, vector<64x16xf32> -> vector<64x16xf32>
    %53 = arith.addf %40, %52 : vector<64x16xf32>
    %c0_23 = arith.constant 0 : index
    %c0_24 = arith.constant 0 : index
    %54 = vector.load %arg6[%c0_23, %c0_24] : memref<1x16xf32, #tpu.memory_space<vmem>>, vector<1x16xf32>
    %55 = vector.broadcast %54 : vector<1x16xf32> to vector<64x16xf32>
    %56 = arith.addf %53, %55 : vector<64x16xf32>
    %cst_25 = arith.constant 0.000000e+00 : f32
    %57 = vector.broadcast %cst_25 : f32 to vector<64x16xf32>
    %58 = arith.maximumf %56, %57 : vector<64x16xf32>
    %59 = arith.truncf %58 : vector<64x16xf32> to vector<64x16xbf16>
    %c0_26 = arith.constant 0 : index
    %c0_27 = arith.constant 0 : index
    %60 = vector.load %arg7[%c0_26, %c0_27] : memref<16x32xbf16, #tpu.memory_space<vmem>>, vector<16x32xbf16>
    %cst_28 = arith.constant dense<0.000000e+00> : vector<64x32xf32>
    %61 = tpu.matmul %59, %60, %cst_28 {dimension_numbers = #tpu.dot_dimension_numbers<[1], [0], [0], [1], [0, 0, 1, 1], [], []>} : vector<64x16xbf16>, vector<16x32xbf16>, vector<64x32xf32> -> vector<64x32xf32>
    %c0_29 = arith.constant 0 : index
    %c0_30 = arith.constant 0 : index
    %62 = vector.load %arg8[%c0_29, %c0_30] : memref<1x32xf32, #tpu.memory_space<vmem>>, vector<1x32xf32>
    %63 = vector.broadcast %62 : vector<1x32xf32> to vector<64x32xf32>
    %64 = arith.addf %61, %63 : vector<64x32xf32>
    %cst_31 = arith.constant 0.000000e+00 : f32
    %65 = vector.broadcast %cst_31 : f32 to vector<64x32xf32>
    %66 = arith.maximumf %64, %65 : vector<64x32xf32>
    %67 = arith.truncf %66 : vector<64x32xf32> to vector<64x32xbf16>
    %c0_32 = arith.constant 0 : index
    %c0_33 = arith.constant 0 : index
    %68 = vector.load %arg9[%c0_32, %c0_33] : memref<9x32xf32, #tpu.memory_space<vmem>>, vector<9x32xf32>
    %cst_34 = arith.constant 0.000000e+00 : f32
    %69 = vector.broadcast %cst_34 : f32 to vector<64x32xf32>
    %cst_35 = arith.constant 0.000000e+00 : bf16
    %70 = vector.broadcast %cst_35 : bf16 to vector<8x32xbf16>
    %71 = vector.extract_strided_slice %67 {offsets = [0, 0], sizes = [56, 32], strides = [1, 1]} : vector<64x32xbf16> to vector<56x32xbf16>
    %72 = tpu.concatenate %70, %71 in 0 : vector<8x32xbf16>, vector<56x32xbf16> -> vector<64x32xbf16>
    %cst_36 = arith.constant 0.000000e+00 : bf16
    %73 = vector.broadcast %cst_36 : bf16 to vector<1x32xbf16>
    %74 = vector.extract_strided_slice %72 {offsets = [0, 0], sizes = [63, 32], strides = [1, 1]} : vector<64x32xbf16> to vector<63x32xbf16>
    %75 = tpu.concatenate %73, %74 in 0 : vector<1x32xbf16>, vector<63x32xbf16> -> vector<64x32xbf16>
    %cst_37 = arith.constant 0.000000e+00 : bf16
    %76 = vector.broadcast %cst_37 : bf16 to vector<64x32xbf16>
    %77 = vector.shape_cast %20 : vector<64x1xi1> to vector<64x1xi1>
    %78 = vector.broadcast %77 : vector<64x1xi1> to vector<64x32xi1>
    %79 = arith.select %78, %75, %76 : vector<64x32xi1>, vector<64x32xbf16>
    %80 = arith.extf %79 : vector<64x32xbf16> to vector<64x32xf32>
    %81 = vector.extract_strided_slice %68 {offsets = [0, 0], sizes = [1, 32], strides = [1, 1]} : vector<9x32xf32> to vector<1x32xf32>
    %82 = vector.broadcast %81 : vector<1x32xf32> to vector<64x32xf32>
    %83 = arith.mulf %80, %82 : vector<64x32xf32>
    %84 = arith.addf %69, %83 : vector<64x32xf32>
    %cst_38 = arith.constant 0.000000e+00 : bf16
    %85 = vector.broadcast %cst_38 : bf16 to vector<8x32xbf16>
    %86 = vector.extract_strided_slice %67 {offsets = [0, 0], sizes = [56, 32], strides = [1, 1]} : vector<64x32xbf16> to vector<56x32xbf16>
    %87 = tpu.concatenate %85, %86 in 0 : vector<8x32xbf16>, vector<56x32xbf16> -> vector<64x32xbf16>
    %88 = arith.extf %87 : vector<64x32xbf16> to vector<64x32xf32>
    %89 = vector.extract_strided_slice %68 {offsets = [1, 0], sizes = [1, 32], strides = [1, 1]} : vector<9x32xf32> to vector<1x32xf32>
    %90 = vector.broadcast %89 : vector<1x32xf32> to vector<64x32xf32>
    %91 = arith.mulf %88, %90 : vector<64x32xf32>
    %92 = arith.addf %84, %91 : vector<64x32xf32>
    %cst_39 = arith.constant 0.000000e+00 : bf16
    %93 = vector.broadcast %cst_39 : bf16 to vector<8x32xbf16>
    %94 = vector.extract_strided_slice %67 {offsets = [0, 0], sizes = [56, 32], strides = [1, 1]} : vector<64x32xbf16> to vector<56x32xbf16>
    %95 = tpu.concatenate %93, %94 in 0 : vector<8x32xbf16>, vector<56x32xbf16> -> vector<64x32xbf16>
    %96 = vector.extract_strided_slice %95 {offsets = [1, 0], sizes = [63, 32], strides = [1, 1]} : vector<64x32xbf16> to vector<63x32xbf16>
    %cst_40 = arith.constant 0.000000e+00 : bf16
    %97 = vector.broadcast %cst_40 : bf16 to vector<1x32xbf16>
    %98 = tpu.concatenate %96, %97 in 0 : vector<63x32xbf16>, vector<1x32xbf16> -> vector<64x32xbf16>
    %cst_41 = arith.constant 0.000000e+00 : bf16
    %99 = vector.broadcast %cst_41 : bf16 to vector<64x32xbf16>
    %100 = vector.shape_cast %22 : vector<64x1xi1> to vector<64x1xi1>
    %101 = vector.broadcast %100 : vector<64x1xi1> to vector<64x32xi1>
    %102 = arith.select %101, %98, %99 : vector<64x32xi1>, vector<64x32xbf16>
    %103 = arith.extf %102 : vector<64x32xbf16> to vector<64x32xf32>
    %104 = vector.extract_strided_slice %68 {offsets = [2, 0], sizes = [1, 32], strides = [1, 1]} : vector<9x32xf32> to vector<1x32xf32>
    %105 = vector.broadcast %104 : vector<1x32xf32> to vector<64x32xf32>
    %106 = arith.mulf %103, %105 : vector<64x32xf32>
    %107 = arith.addf %92, %106 : vector<64x32xf32>
    %cst_42 = arith.constant 0.000000e+00 : bf16
    %108 = vector.broadcast %cst_42 : bf16 to vector<1x32xbf16>
    %109 = vector.extract_strided_slice %67 {offsets = [0, 0], sizes = [63, 32], strides = [1, 1]} : vector<64x32xbf16> to vector<63x32xbf16>
    %110 = tpu.concatenate %108, %109 in 0 : vector<1x32xbf16>, vector<63x32xbf16> -> vector<64x32xbf16>
    %cst_43 = arith.constant 0.000000e+00 : bf16
    %111 = vector.broadcast %cst_43 : bf16 to vector<64x32xbf16>
    %112 = vector.shape_cast %20 : vector<64x1xi1> to vector<64x1xi1>
    %113 = vector.broadcast %112 : vector<64x1xi1> to vector<64x32xi1>
    %114 = arith.select %113, %110, %111 : vector<64x32xi1>, vector<64x32xbf16>
    %115 = arith.extf %114 : vector<64x32xbf16> to vector<64x32xf32>
    %116 = vector.extract_strided_slice %68 {offsets = [3, 0], sizes = [1, 32], strides = [1, 1]} : vector<9x32xf32> to vector<1x32xf32>
    %117 = vector.broadcast %116 : vector<1x32xf32> to vector<64x32xf32>
    %118 = arith.mulf %115, %117 : vector<64x32xf32>
    %119 = arith.addf %107, %118 : vector<64x32xf32>
    %120 = arith.extf %67 : vector<64x32xbf16> to vector<64x32xf32>
    %121 = vector.extract_strided_slice %68 {offsets = [4, 0], sizes = [1, 32], strides = [1, 1]} : vector<9x32xf32> to vector<1x32xf32>
    %122 = vector.broadcast %121 : vector<1x32xf32> to vector<64x32xf32>
    %123 = arith.mulf %120, %122 : vector<64x32xf32>
    %124 = arith.addf %119, %123 : vector<64x32xf32>
    %125 = vector.extract_strided_slice %67 {offsets = [1, 0], sizes = [63, 32], strides = [1, 1]} : vector<64x32xbf16> to vector<63x32xbf16>
    %cst_44 = arith.constant 0.000000e+00 : bf16
    %126 = vector.broadcast %cst_44 : bf16 to vector<1x32xbf16>
    %127 = tpu.concatenate %125, %126 in 0 : vector<63x32xbf16>, vector<1x32xbf16> -> vector<64x32xbf16>
    %cst_45 = arith.constant 0.000000e+00 : bf16
    %128 = vector.broadcast %cst_45 : bf16 to vector<64x32xbf16>
    %129 = vector.shape_cast %22 : vector<64x1xi1> to vector<64x1xi1>
    %130 = vector.broadcast %129 : vector<64x1xi1> to vector<64x32xi1>
    %131 = arith.select %130, %127, %128 : vector<64x32xi1>, vector<64x32xbf16>
    %132 = arith.extf %131 : vector<64x32xbf16> to vector<64x32xf32>
    %133 = vector.extract_strided_slice %68 {offsets = [5, 0], sizes = [1, 32], strides = [1, 1]} : vector<9x32xf32> to vector<1x32xf32>
    %134 = vector.broadcast %133 : vector<1x32xf32> to vector<64x32xf32>
    %135 = arith.mulf %132, %134 : vector<64x32xf32>
    %136 = arith.addf %124, %135 : vector<64x32xf32>
    %137 = vector.extract_strided_slice %67 {offsets = [8, 0], sizes = [56, 32], strides = [1, 1]} : vector<64x32xbf16> to vector<56x32xbf16>
    %cst_46 = arith.constant 0.000000e+00 : bf16
    %138 = vector.broadcast %cst_46 : bf16 to vector<8x32xbf16>
    %139 = tpu.concatenate %137, %138 in 0 : vector<56x32xbf16>, vector<8x32xbf16> -> vector<64x32xbf16>
    %cst_47 = arith.constant 0.000000e+00 : bf16
    %140 = vector.broadcast %cst_47 : bf16 to vector<1x32xbf16>
    %141 = vector.extract_strided_slice %139 {offsets = [0, 0], sizes = [63, 32], strides = [1, 1]} : vector<64x32xbf16> to vector<63x32xbf16>
    %142 = tpu.concatenate %140, %141 in 0 : vector<1x32xbf16>, vector<63x32xbf16> -> vector<64x32xbf16>
    %cst_48 = arith.constant 0.000000e+00 : bf16
    %143 = vector.broadcast %cst_48 : bf16 to vector<64x32xbf16>
    %144 = vector.shape_cast %20 : vector<64x1xi1> to vector<64x1xi1>
    %145 = vector.broadcast %144 : vector<64x1xi1> to vector<64x32xi1>
    %146 = arith.select %145, %142, %143 : vector<64x32xi1>, vector<64x32xbf16>
    %147 = arith.extf %146 : vector<64x32xbf16> to vector<64x32xf32>
    %148 = vector.extract_strided_slice %68 {offsets = [6, 0], sizes = [1, 32], strides = [1, 1]} : vector<9x32xf32> to vector<1x32xf32>
    %149 = vector.broadcast %148 : vector<1x32xf32> to vector<64x32xf32>
    %150 = arith.mulf %147, %149 : vector<64x32xf32>
    %151 = arith.addf %136, %150 : vector<64x32xf32>
    %152 = vector.extract_strided_slice %67 {offsets = [8, 0], sizes = [56, 32], strides = [1, 1]} : vector<64x32xbf16> to vector<56x32xbf16>
    %cst_49 = arith.constant 0.000000e+00 : bf16
    %153 = vector.broadcast %cst_49 : bf16 to vector<8x32xbf16>
    %154 = tpu.concatenate %152, %153 in 0 : vector<56x32xbf16>, vector<8x32xbf16> -> vector<64x32xbf16>
    %155 = arith.extf %154 : vector<64x32xbf16> to vector<64x32xf32>
    %156 = vector.extract_strided_slice %68 {offsets = [7, 0], sizes = [1, 32], strides = [1, 1]} : vector<9x32xf32> to vector<1x32xf32>
    %157 = vector.broadcast %156 : vector<1x32xf32> to vector<64x32xf32>
    %158 = arith.mulf %155, %157 : vector<64x32xf32>
    %159 = arith.addf %151, %158 : vector<64x32xf32>
    %160 = vector.extract_strided_slice %67 {offsets = [8, 0], sizes = [56, 32], strides = [1, 1]} : vector<64x32xbf16> to vector<56x32xbf16>
    %cst_50 = arith.constant 0.000000e+00 : bf16
    %161 = vector.broadcast %cst_50 : bf16 to vector<8x32xbf16>
    %162 = tpu.concatenate %160, %161 in 0 : vector<56x32xbf16>, vector<8x32xbf16> -> vector<64x32xbf16>
    %163 = vector.extract_strided_slice %162 {offsets = [1, 0], sizes = [63, 32], strides = [1, 1]} : vector<64x32xbf16> to vector<63x32xbf16>
    %cst_51 = arith.constant 0.000000e+00 : bf16
    %164 = vector.broadcast %cst_51 : bf16 to vector<1x32xbf16>
    %165 = tpu.concatenate %163, %164 in 0 : vector<63x32xbf16>, vector<1x32xbf16> -> vector<64x32xbf16>
    %cst_52 = arith.constant 0.000000e+00 : bf16
    %166 = vector.broadcast %cst_52 : bf16 to vector<64x32xbf16>
    %167 = vector.shape_cast %22 : vector<64x1xi1> to vector<64x1xi1>
    %168 = vector.broadcast %167 : vector<64x1xi1> to vector<64x32xi1>
    %169 = arith.select %168, %165, %166 : vector<64x32xi1>, vector<64x32xbf16>
    %170 = arith.extf %169 : vector<64x32xbf16> to vector<64x32xf32>
    %171 = vector.extract_strided_slice %68 {offsets = [8, 0], sizes = [1, 32], strides = [1, 1]} : vector<9x32xf32> to vector<1x32xf32>
    %172 = vector.broadcast %171 : vector<1x32xf32> to vector<64x32xf32>
    %173 = arith.mulf %170, %172 : vector<64x32xf32>
    %174 = arith.addf %159, %173 : vector<64x32xf32>
    %c0_53 = arith.constant 0 : index
    %c0_54 = arith.constant 0 : index
    %175 = vector.load %arg10[%c0_53, %c0_54] : memref<1x32xf32, #tpu.memory_space<vmem>>, vector<1x32xf32>
    %176 = vector.broadcast %175 : vector<1x32xf32> to vector<64x32xf32>
    %177 = arith.addf %174, %176 : vector<64x32xf32>
    %cst_55 = arith.constant 0.000000e+00 : f32
    %178 = vector.broadcast %cst_55 : f32 to vector<64x32xf32>
    %179 = arith.maximumf %177, %178 : vector<64x32xf32>
    %180 = arith.truncf %179 : vector<64x32xf32> to vector<64x32xbf16>
    %c0_56 = arith.constant 0 : index
    %c0_57 = arith.constant 0 : index
    %181 = vector.load %arg11[%c0_56, %c0_57] : memref<32x16xbf16, #tpu.memory_space<vmem>>, vector<32x16xbf16>
    %cst_58 = arith.constant dense<0.000000e+00> : vector<64x16xf32>
    %182 = tpu.matmul %180, %181, %cst_58 {dimension_numbers = #tpu.dot_dimension_numbers<[1], [0], [0], [1], [0, 0, 1, 1], [], []>} : vector<64x32xbf16>, vector<32x16xbf16>, vector<64x16xf32> -> vector<64x16xf32>
    %c0_59 = arith.constant 0 : index
    %c0_60 = arith.constant 0 : index
    %183 = vector.load %arg12[%c0_59, %c0_60] : memref<1x16xf32, #tpu.memory_space<vmem>>, vector<1x16xf32>
    %184 = vector.broadcast %183 : vector<1x16xf32> to vector<64x16xf32>
    %185 = arith.addf %182, %184 : vector<64x16xf32>
    %186 = arith.addf %185, %58 : vector<64x16xf32>
    %187 = arith.truncf %186 : vector<64x16xf32> to vector<64x16xbf16>
    %c0_61 = arith.constant 0 : index
    %c0_62 = arith.constant 0 : index
    %c0_63 = arith.constant 0 : index
    %188 = vector.load %arg13[%c0_61, %c0_62, %c0_63] : memref<1x64x16xbf16, #tpu.memory_space<vmem>>, vector<1x64x16xbf16>
    %189 = vector.shape_cast %188 : vector<1x64x16xbf16> to vector<64x16xbf16>
    %190 = vector.shape_cast %187 : vector<64x16xbf16> to vector<1x64x16xbf16>
    tpu.vector_store %arg13[%c0_61, %c0_62, %c0_63], %190 {strides = array<i32>} : memref<1x64x16xbf16, #tpu.memory_space<vmem>>, vector<1x64x16xbf16>,
    return
  }
  func.func @transform_0(%arg0: i32) -> (i32, i32, i32) {
    %c0_i32 = arith.constant 0 : i32
    %c0_i32_0 = arith.constant 0 : i32
    %c0_i32_1 = arith.constant 0 : i32
    return %arg0, %c0_i32, %c0_i32_0 : i32, i32, i32
  }
  func.func @transform_1(%arg0: i32) -> (i32, i32) {
    %c0_i32 = arith.constant 0 : i32
    %c0_i32_0 = arith.constant 0 : i32
    %c0_i32_1 = arith.constant 0 : i32
    return %c0_i32, %c0_i32_0 : i32, i32
  }
  func.func @transform_2(%arg0: i32) -> (i32, i32) {
    %c0_i32 = arith.constant 0 : i32
    %c0_i32_0 = arith.constant 0 : i32
    %c0_i32_1 = arith.constant 0 : i32
    return %c0_i32, %c0_i32_0 : i32, i32
  }
  func.func @transform_3(%arg0: i32) -> (i32, i32) {
    %c0_i32 = arith.constant 0 : i32
    %c0_i32_0 = arith.constant 0 : i32
    %c0_i32_1 = arith.constant 0 : i32
    return %c0_i32, %c0_i32_0 : i32, i32
  }
  func.func @transform_4(%arg0: i32) -> (i32, i32) {
    %c0_i32 = arith.constant 0 : i32
    %c0_i32_0 = arith.constant 0 : i32
    %c0_i32_1 = arith.constant 0 : i32
    return %c0_i32, %c0_i32_0 : i32, i32
  }
  func.func @transform_5(%arg0: i32) -> (i32, i32) {
    %c0_i32 = arith.constant 0 : i32
    %c0_i32_0 = arith.constant 0 : i32
    %c0_i32_1 = arith.constant 0 : i32
    return %c0_i32, %c0_i32_0 : i32, i32
  }
  func.func @transform_6(%arg0: i32) -> (i32, i32) {
    %c0_i32 = arith.constant 0 : i32
    %c0_i32_0 = arith.constant 0 : i32
    %c0_i32_1 = arith.constant 0 : i32
    return %c0_i32, %c0_i32_0 : i32, i32
  }
  func.func @transform_7(%arg0: i32) -> (i32, i32) {
    %c0_i32 = arith.constant 0 : i32
    %c0_i32_0 = arith.constant 0 : i32
    %c0_i32_1 = arith.constant 0 : i32
    return %c0_i32, %c0_i32_0 : i32, i32
  }
  func.func @transform_8(%arg0: i32) -> (i32, i32) {
    %c0_i32 = arith.constant 0 : i32
    %c0_i32_0 = arith.constant 0 : i32
    %c0_i32_1 = arith.constant 0 : i32
    return %c0_i32, %c0_i32_0 : i32, i32
  }
  func.func @transform_9(%arg0: i32) -> (i32, i32) {
    %c0_i32 = arith.constant 0 : i32
    %c0_i32_0 = arith.constant 0 : i32
    %c0_i32_1 = arith.constant 0 : i32
    return %c0_i32, %c0_i32_0 : i32, i32
  }
  func.func @transform_10(%arg0: i32) -> (i32, i32) {
    %c0_i32 = arith.constant 0 : i32
    %c0_i32_0 = arith.constant 0 : i32
    %c0_i32_1 = arith.constant 0 : i32
    return %c0_i32, %c0_i32_0 : i32, i32
  }
  func.func @transform_11(%arg0: i32) -> (i32, i32) {
    %c0_i32 = arith.constant 0 : i32
    %c0_i32_0 = arith.constant 0 : i32
    %c0_i32_1 = arith.constant 0 : i32
    return %c0_i32, %c0_i32_0 : i32, i32
  }
  func.func @transform_12(%arg0: i32) -> (i32, i32, i32) {
    %c0_i32 = arith.constant 0 : i32
    %c0_i32_0 = arith.constant 0 : i32
    %c0_i32_1 = arith.constant 0 : i32
    return %arg0, %c0_i32, %c0_i32_0 : i32, i32, i32
  }
}

module attributes {stable_mosaic.version = 11 : i64} {
  func.func @_block2_heads_kernel(%arg0: i32, %arg1: memref<1x16x64xbf16, #tpu.memory_space<vmem>>, %arg2: memref<16x48xbf16, #tpu.memory_space<vmem>>, %arg3: memref<1x48xf32, #tpu.memory_space<vmem>>, %arg4: memref<9x48xf32, #tpu.memory_space<vmem>>, %arg5: memref<1x48xf32, #tpu.memory_space<vmem>>, %arg6: memref<48x32xbf16, #tpu.memory_space<vmem>>, %arg7: memref<1x32xf32, #tpu.memory_space<vmem>>, %arg8: memref<32x65xbf16, #tpu.memory_space<vmem>>, %arg9: memref<1x65xf32, #tpu.memory_space<vmem>>, %arg10: memref<32x64xbf16, #tpu.memory_space<vmem>>, %arg11: memref<1x64xf32, #tpu.memory_space<vmem>>, %arg12: memref<1x16x65xf32, #tpu.memory_space<vmem>>, %arg13: memref<1x16x64xf32, #tpu.memory_space<vmem>>, %arg14: memref<1x1x32xf32, #tpu.memory_space<vmem>>) attributes {dimension_semantics = [#tpu.dimension_semantics<parallel>], iteration_bounds = array<i64: 2>, scalar_prefetch = 0 : i64, scratch_operands = 0 : i64, tpu.core_type = #tpu.core_type<tc>, window_params = [{transform_indices = @transform_0, window_bounds = array<i64: 1, 16, 64>}, {pipeline_mode = #tpu.pipeline_mode<synchronous>, transform_indices = @transform_1, window_bounds = array<i64: 16, 48>}, {pipeline_mode = #tpu.pipeline_mode<synchronous>, transform_indices = @transform_2, window_bounds = array<i64: 1, 48>}, {pipeline_mode = #tpu.pipeline_mode<synchronous>, transform_indices = @transform_3, window_bounds = array<i64: 9, 48>}, {pipeline_mode = #tpu.pipeline_mode<synchronous>, transform_indices = @transform_4, window_bounds = array<i64: 1, 48>}, {pipeline_mode = #tpu.pipeline_mode<synchronous>, transform_indices = @transform_5, window_bounds = array<i64: 48, 32>}, {pipeline_mode = #tpu.pipeline_mode<synchronous>, transform_indices = @transform_6, window_bounds = array<i64: 1, 32>}, {pipeline_mode = #tpu.pipeline_mode<synchronous>, transform_indices = @transform_7, window_bounds = array<i64: 32, 65>}, {pipeline_mode = #tpu.pipeline_mode<synchronous>, transform_indices = @transform_8, window_bounds = array<i64: 1, 65>}, {pipeline_mode = #tpu.pipeline_mode<synchronous>, transform_indices = @transform_9, window_bounds = array<i64: 32, 64>}, {pipeline_mode = #tpu.pipeline_mode<synchronous>, transform_indices = @transform_10, window_bounds = array<i64: 1, 64>}, {transform_indices = @transform_11, window_bounds = array<i64: 1, 16, 65>}, {transform_indices = @transform_12, window_bounds = array<i64: 1, 16, 64>}, {transform_indices = @transform_13, window_bounds = array<i64: 1, 1, 32>}]} {
    %c0 = arith.constant 0 : index
    %c0_0 = arith.constant 0 : index
    %c0_1 = arith.constant 0 : index
    %0 = vector.load %arg1[%c0, %c0_0, %c0_1] : memref<1x16x64xbf16, #tpu.memory_space<vmem>>, vector<1x16x64xbf16>
    %1 = vector.shape_cast %0 : vector<1x16x64xbf16> to vector<16x64xbf16>
    %2 = tpu.iota {dimensions = array<i32: 0>} : vector<16x1xi32>
    %c4_i32 = arith.constant 4 : i32
    %c0_i32 = arith.constant 0 : i32
    %3 = arith.cmpi eq, %c4_i32, %c0_i32 : i32
    %c1_i32 = arith.constant 1 : i32
    %4 = arith.select %3, %c1_i32, %c4_i32 : i32
    %5 = vector.broadcast %4 : i32 to vector<16x1xi32>
    %6 = arith.remsi %2, %5 : vector<16x1xi32>
    %c0_i32_2 = arith.constant 0 : i32
    %7 = vector.broadcast %c0_i32_2 : i32 to vector<16x1xi32>
    %8 = arith.cmpi ne, %6, %7 : vector<16x1xi32>
    %c0_i32_3 = arith.constant 0 : i32
    %9 = vector.broadcast %c0_i32_3 : i32 to vector<16x1xi32>
    %10 = arith.cmpi slt, %6, %9 : vector<16x1xi32>
    %c0_i32_4 = arith.constant 0 : i32
    %11 = arith.cmpi slt, %4, %c0_i32_4 : i32
    %12 = vector.broadcast %11 : i1 to vector<16x1xi1>
    %13 = vector.broadcast %12 : vector<16x1xi1> to vector<16x1xi1>
    %14 = arith.xori %10, %13 : vector<16x1xi1>
    %15 = arith.andi %14, %8 : vector<16x1xi1>
    %16 = vector.broadcast %4 : i32 to vector<16x1xi32>
    %17 = arith.addi %6, %16 : vector<16x1xi32>
    %18 = arith.select %15, %17, %6 : vector<16x1xi1>, vector<16x1xi32>
    %c0_i32_5 = arith.constant 0 : i32
    %19 = vector.broadcast %c0_i32_5 : i32 to vector<16x1xi32>
    %20 = arith.cmpi ne, %18, %19 : vector<16x1xi32>
    %c0_6 = arith.constant 0 : index
    %c0_7 = arith.constant 0 : index
    %21 = vector.load %arg2[%c0_6, %c0_7] : memref<16x48xbf16, #tpu.memory_space<vmem>>, vector<16x48xbf16>
    %c0_8 = arith.constant 0 : index
    %c0_9 = arith.constant 0 : index
    %22 = vector.load %arg3[%c0_8, %c0_9] : memref<1x48xf32, #tpu.memory_space<vmem>>, vector<1x48xf32>
    %23 = vector.extract_strided_slice %1 {offsets = [0, 0], sizes = [16, 16], strides = [1, 1]} : vector<16x64xbf16> to vector<16x16xbf16>
    %cst = arith.constant dense<0.000000e+00> : vector<16x48xf32>
    %24 = tpu.matmul %23, %21, %cst {dimension_numbers = #tpu.dot_dimension_numbers<[1], [0], [0], [1], [0, 0, 1, 1], [], []>} : vector<16x16xbf16>, vector<16x48xbf16>, vector<16x48xf32> -> vector<16x48xf32>
    %25 = vector.broadcast %22 : vector<1x48xf32> to vector<16x48xf32>
    %26 = arith.addf %24, %25 : vector<16x48xf32>
    %cst_10 = arith.constant 0.000000e+00 : f32
    %27 = vector.broadcast %cst_10 : f32 to vector<16x48xf32>
    %28 = arith.maximumf %26, %27 : vector<16x48xf32>
    %29 = arith.truncf %28 : vector<16x48xf32> to vector<16x48xbf16>
    %30 = vector.extract_strided_slice %1 {offsets = [0, 16], sizes = [16, 16], strides = [1, 1]} : vector<16x64xbf16> to vector<16x16xbf16>
    %cst_11 = arith.constant dense<0.000000e+00> : vector<16x48xf32>
    %31 = tpu.matmul %30, %21, %cst_11 {dimension_numbers = #tpu.dot_dimension_numbers<[1], [0], [0], [1], [0, 0, 1, 1], [], []>} : vector<16x16xbf16>, vector<16x48xbf16>, vector<16x48xf32> -> vector<16x48xf32>
    %32 = vector.broadcast %22 : vector<1x48xf32> to vector<16x48xf32>
    %33 = arith.addf %31, %32 : vector<16x48xf32>
    %cst_12 = arith.constant 0.000000e+00 : f32
    %34 = vector.broadcast %cst_12 : f32 to vector<16x48xf32>
    %35 = arith.maximumf %33, %34 : vector<16x48xf32>
    %36 = arith.truncf %35 : vector<16x48xf32> to vector<16x48xbf16>
    %37 = vector.extract_strided_slice %1 {offsets = [0, 32], sizes = [16, 16], strides = [1, 1]} : vector<16x64xbf16> to vector<16x16xbf16>
    %cst_13 = arith.constant dense<0.000000e+00> : vector<16x48xf32>
    %38 = tpu.matmul %37, %21, %cst_13 {dimension_numbers = #tpu.dot_dimension_numbers<[1], [0], [0], [1], [0, 0, 1, 1], [], []>} : vector<16x16xbf16>, vector<16x48xbf16>, vector<16x48xf32> -> vector<16x48xf32>
    %39 = vector.broadcast %22 : vector<1x48xf32> to vector<16x48xf32>
    %40 = arith.addf %38, %39 : vector<16x48xf32>
    %cst_14 = arith.constant 0.000000e+00 : f32
    %41 = vector.broadcast %cst_14 : f32 to vector<16x48xf32>
    %42 = arith.maximumf %40, %41 : vector<16x48xf32>
    %43 = arith.truncf %42 : vector<16x48xf32> to vector<16x48xbf16>
    %44 = vector.extract_strided_slice %1 {offsets = [0, 48], sizes = [16, 16], strides = [1, 1]} : vector<16x64xbf16> to vector<16x16xbf16>
    %cst_15 = arith.constant dense<0.000000e+00> : vector<16x48xf32>
    %45 = tpu.matmul %44, %21, %cst_15 {dimension_numbers = #tpu.dot_dimension_numbers<[1], [0], [0], [1], [0, 0, 1, 1], [], []>} : vector<16x16xbf16>, vector<16x48xbf16>, vector<16x48xf32> -> vector<16x48xf32>
    %46 = vector.broadcast %22 : vector<1x48xf32> to vector<16x48xf32>
    %47 = arith.addf %45, %46 : vector<16x48xf32>
    %cst_16 = arith.constant 0.000000e+00 : f32
    %48 = vector.broadcast %cst_16 : f32 to vector<16x48xf32>
    %49 = arith.maximumf %47, %48 : vector<16x48xf32>
    %50 = arith.truncf %49 : vector<16x48xf32> to vector<16x48xbf16>
    %c0_17 = arith.constant 0 : index
    %c0_18 = arith.constant 0 : index
    %51 = vector.load %arg4[%c0_17, %c0_18] : memref<9x48xf32, #tpu.memory_space<vmem>>, vector<9x48xf32>
    %cst_19 = arith.constant 0.000000e+00 : f32
    %52 = vector.broadcast %cst_19 : f32 to vector<16x48xf32>
    %cst_20 = arith.constant 0.000000e+00 : bf16
    %53 = vector.broadcast %cst_20 : bf16 to vector<4x48xbf16>
    %54 = vector.extract_strided_slice %50 {offsets = [0, 0], sizes = [12, 48], strides = [1, 1]} : vector<16x48xbf16> to vector<12x48xbf16>
    %55 = tpu.concatenate %53, %54 in 0 : vector<4x48xbf16>, vector<12x48xbf16> -> vector<16x48xbf16>
    %cst_21 = arith.constant 0.000000e+00 : bf16
    %56 = vector.broadcast %cst_21 : bf16 to vector<1x48xbf16>
    %57 = vector.extract_strided_slice %55 {offsets = [0, 0], sizes = [15, 48], strides = [1, 1]} : vector<16x48xbf16> to vector<15x48xbf16>
    %58 = tpu.concatenate %56, %57 in 0 : vector<1x48xbf16>, vector<15x48xbf16> -> vector<16x48xbf16>
    %cst_22 = arith.constant 0.000000e+00 : bf16
    %59 = vector.broadcast %cst_22 : bf16 to vector<16x48xbf16>
    %60 = vector.shape_cast %20 : vector<16x1xi1> to vector<16x1xi1>
    %61 = vector.broadcast %60 : vector<16x1xi1> to vector<16x48xi1>
    %62 = arith.select %61, %58, %59 : vector<16x48xi1>, vector<16x48xbf16>
    %63 = arith.extf %62 : vector<16x48xbf16> to vector<16x48xf32>
    %64 = vector.extract_strided_slice %51 {offsets = [0, 0], sizes = [1, 48], strides = [1, 1]} : vector<9x48xf32> to vector<1x48xf32>
    %65 = vector.broadcast %64 : vector<1x48xf32> to vector<16x48xf32>
    %66 = arith.mulf %63, %65 : vector<16x48xf32>
    %67 = arith.addf %52, %66 : vector<16x48xf32>
    %cst_23 = arith.constant 0.000000e+00 : bf16
    %68 = vector.broadcast %cst_23 : bf16 to vector<4x48xbf16>
    %69 = vector.extract_strided_slice %43 {offsets = [0, 0], sizes = [12, 48], strides = [1, 1]} : vector<16x48xbf16> to vector<12x48xbf16>
    %70 = tpu.concatenate %68, %69 in 0 : vector<4x48xbf16>, vector<12x48xbf16> -> vector<16x48xbf16>
    %71 = arith.extf %70 : vector<16x48xbf16> to vector<16x48xf32>
    %72 = vector.extract_strided_slice %51 {offsets = [1, 0], sizes = [1, 48], strides = [1, 1]} : vector<9x48xf32> to vector<1x48xf32>
    %73 = vector.broadcast %72 : vector<1x48xf32> to vector<16x48xf32>
    %74 = arith.mulf %71, %73 : vector<16x48xf32>
    %75 = arith.addf %67, %74 : vector<16x48xf32>
    %cst_24 = arith.constant 0.000000e+00 : bf16
    %76 = vector.broadcast %cst_24 : bf16 to vector<4x48xbf16>
    %77 = vector.extract_strided_slice %50 {offsets = [0, 0], sizes = [12, 48], strides = [1, 1]} : vector<16x48xbf16> to vector<12x48xbf16>
    %78 = tpu.concatenate %76, %77 in 0 : vector<4x48xbf16>, vector<12x48xbf16> -> vector<16x48xbf16>
    %79 = arith.extf %78 : vector<16x48xbf16> to vector<16x48xf32>
    %80 = vector.extract_strided_slice %51 {offsets = [2, 0], sizes = [1, 48], strides = [1, 1]} : vector<9x48xf32> to vector<1x48xf32>
    %81 = vector.broadcast %80 : vector<1x48xf32> to vector<16x48xf32>
    %82 = arith.mulf %79, %81 : vector<16x48xf32>
    %83 = arith.addf %75, %82 : vector<16x48xf32>
    %cst_25 = arith.constant 0.000000e+00 : bf16
    %84 = vector.broadcast %cst_25 : bf16 to vector<1x48xbf16>
    %85 = vector.extract_strided_slice %36 {offsets = [0, 0], sizes = [15, 48], strides = [1, 1]} : vector<16x48xbf16> to vector<15x48xbf16>
    %86 = tpu.concatenate %84, %85 in 0 : vector<1x48xbf16>, vector<15x48xbf16> -> vector<16x48xbf16>
    %cst_26 = arith.constant 0.000000e+00 : bf16
    %87 = vector.broadcast %cst_26 : bf16 to vector<16x48xbf16>
    %88 = vector.shape_cast %20 : vector<16x1xi1> to vector<16x1xi1>
    %89 = vector.broadcast %88 : vector<16x1xi1> to vector<16x48xi1>
    %90 = arith.select %89, %86, %87 : vector<16x48xi1>, vector<16x48xbf16>
    %91 = arith.extf %90 : vector<16x48xbf16> to vector<16x48xf32>
    %92 = vector.extract_strided_slice %51 {offsets = [3, 0], sizes = [1, 48], strides = [1, 1]} : vector<9x48xf32> to vector<1x48xf32>
    %93 = vector.broadcast %92 : vector<1x48xf32> to vector<16x48xf32>
    %94 = arith.mulf %91, %93 : vector<16x48xf32>
    %95 = arith.addf %83, %94 : vector<16x48xf32>
    %96 = arith.extf %29 : vector<16x48xbf16> to vector<16x48xf32>
    %97 = vector.extract_strided_slice %51 {offsets = [4, 0], sizes = [1, 48], strides = [1, 1]} : vector<9x48xf32> to vector<1x48xf32>
    %98 = vector.broadcast %97 : vector<1x48xf32> to vector<16x48xf32>
    %99 = arith.mulf %96, %98 : vector<16x48xf32>
    %100 = arith.addf %95, %99 : vector<16x48xf32>
    %101 = arith.extf %36 : vector<16x48xbf16> to vector<16x48xf32>
    %102 = vector.extract_strided_slice %51 {offsets = [5, 0], sizes = [1, 48], strides = [1, 1]} : vector<9x48xf32> to vector<1x48xf32>
    %103 = vector.broadcast %102 : vector<1x48xf32> to vector<16x48xf32>
    %104 = arith.mulf %101, %103 : vector<16x48xf32>
    %105 = arith.addf %100, %104 : vector<16x48xf32>
    %cst_27 = arith.constant 0.000000e+00 : bf16
    %106 = vector.broadcast %cst_27 : bf16 to vector<1x48xbf16>
    %107 = vector.extract_strided_slice %50 {offsets = [0, 0], sizes = [15, 48], strides = [1, 1]} : vector<16x48xbf16> to vector<15x48xbf16>
    %108 = tpu.concatenate %106, %107 in 0 : vector<1x48xbf16>, vector<15x48xbf16> -> vector<16x48xbf16>
    %cst_28 = arith.constant 0.000000e+00 : bf16
    %109 = vector.broadcast %cst_28 : bf16 to vector<16x48xbf16>
    %110 = vector.shape_cast %20 : vector<16x1xi1> to vector<16x1xi1>
    %111 = vector.broadcast %110 : vector<16x1xi1> to vector<16x48xi1>
    %112 = arith.select %111, %108, %109 : vector<16x48xi1>, vector<16x48xbf16>
    %113 = arith.extf %112 : vector<16x48xbf16> to vector<16x48xf32>
    %114 = vector.extract_strided_slice %51 {offsets = [6, 0], sizes = [1, 48], strides = [1, 1]} : vector<9x48xf32> to vector<1x48xf32>
    %115 = vector.broadcast %114 : vector<1x48xf32> to vector<16x48xf32>
    %116 = arith.mulf %113, %115 : vector<16x48xf32>
    %117 = arith.addf %105, %116 : vector<16x48xf32>
    %118 = arith.extf %43 : vector<16x48xbf16> to vector<16x48xf32>
    %119 = vector.extract_strided_slice %51 {offsets = [7, 0], sizes = [1, 48], strides = [1, 1]} : vector<9x48xf32> to vector<1x48xf32>
    %120 = vector.broadcast %119 : vector<1x48xf32> to vector<16x48xf32>
    %121 = arith.mulf %118, %120 : vector<16x48xf32>
    %122 = arith.addf %117, %121 : vector<16x48xf32>
    %123 = arith.extf %50 : vector<16x48xbf16> to vector<16x48xf32>
    %124 = vector.extract_strided_slice %51 {offsets = [8, 0], sizes = [1, 48], strides = [1, 1]} : vector<9x48xf32> to vector<1x48xf32>
    %125 = vector.broadcast %124 : vector<1x48xf32> to vector<16x48xf32>
    %126 = arith.mulf %123, %125 : vector<16x48xf32>
    %127 = arith.addf %122, %126 : vector<16x48xf32>
    %c0_29 = arith.constant 0 : index
    %c0_30 = arith.constant 0 : index
    %128 = vector.load %arg5[%c0_29, %c0_30] : memref<1x48xf32, #tpu.memory_space<vmem>>, vector<1x48xf32>
    %129 = vector.broadcast %128 : vector<1x48xf32> to vector<16x48xf32>
    %130 = arith.addf %127, %129 : vector<16x48xf32>
    %cst_31 = arith.constant 0.000000e+00 : f32
    %131 = vector.broadcast %cst_31 : f32 to vector<16x48xf32>
    %132 = arith.maximumf %130, %131 : vector<16x48xf32>
    %133 = arith.truncf %132 : vector<16x48xf32> to vector<16x48xbf16>
    %c0_32 = arith.constant 0 : index
    %c0_33 = arith.constant 0 : index
    %134 = vector.load %arg6[%c0_32, %c0_33] : memref<48x32xbf16, #tpu.memory_space<vmem>>, vector<48x32xbf16>
    %cst_34 = arith.constant dense<0.000000e+00> : vector<16x32xf32>
    %135 = tpu.matmul %133, %134, %cst_34 {dimension_numbers = #tpu.dot_dimension_numbers<[1], [0], [0], [1], [0, 0, 1, 1], [], []>} : vector<16x48xbf16>, vector<48x32xbf16>, vector<16x32xf32> -> vector<16x32xf32>
    %c0_35 = arith.constant 0 : index
    %c0_36 = arith.constant 0 : index
    %136 = vector.load %arg7[%c0_35, %c0_36] : memref<1x32xf32, #tpu.memory_space<vmem>>, vector<1x32xf32>
    %137 = vector.broadcast %136 : vector<1x32xf32> to vector<16x32xf32>
    %138 = arith.addf %135, %137 : vector<16x32xf32>
    %cst_37 = arith.constant dense<0.000000e+00> : vector<32xf32>
    %139 = vector.multi_reduction <add>, %138, %cst_37 [0] : vector<16x32xf32> to vector<32xf32>
    %140 = vector.shape_cast %139 : vector<32xf32> to vector<1x32xf32>
    %cst_38 = arith.constant 1.600000e+01 : f32
    %141 = vector.broadcast %cst_38 : f32 to vector<1x32xf32>
    %142 = arith.divf %140, %141 : vector<1x32xf32>
    %c0_39 = arith.constant 0 : index
    %c0_40 = arith.constant 0 : index
    %c0_41 = arith.constant 0 : index
    %143 = vector.load %arg14[%c0_39, %c0_40, %c0_41] : memref<1x1x32xf32, #tpu.memory_space<vmem>>, vector<1x1x32xf32>
    %144 = vector.shape_cast %143 : vector<1x1x32xf32> to vector<1x32xf32>
    %145 = vector.shape_cast %142 : vector<1x32xf32> to vector<1x1x32xf32>
    tpu.vector_store %arg14[%c0_39, %c0_40, %c0_41], %145 {strides = array<i32>} : memref<1x1x32xf32, #tpu.memory_space<vmem>>, vector<1x1x32xf32>,
    %146 = arith.truncf %138 : vector<16x32xf32> to vector<16x32xbf16>
    %c0_42 = arith.constant 0 : index
    %c0_43 = arith.constant 0 : index
    %147 = vector.load %arg8[%c0_42, %c0_43] : memref<32x65xbf16, #tpu.memory_space<vmem>>, vector<32x65xbf16>
    %cst_44 = arith.constant dense<0.000000e+00> : vector<16x65xf32>
    %148 = tpu.matmul %146, %147, %cst_44 {dimension_numbers = #tpu.dot_dimension_numbers<[1], [0], [0], [1], [0, 0, 1, 1], [], []>} : vector<16x32xbf16>, vector<32x65xbf16>, vector<16x65xf32> -> vector<16x65xf32>
    %c0_45 = arith.constant 0 : index
    %c0_46 = arith.constant 0 : index
    %149 = vector.load %arg9[%c0_45, %c0_46] : memref<1x65xf32, #tpu.memory_space<vmem>>, vector<1x65xf32>
    %150 = vector.broadcast %149 : vector<1x65xf32> to vector<16x65xf32>
    %151 = arith.addf %148, %150 : vector<16x65xf32>
    %c0_47 = arith.constant 0 : index
    %c0_48 = arith.constant 0 : index
    %c0_49 = arith.constant 0 : index
    %152 = vector.load %arg12[%c0_47, %c0_48, %c0_49] : memref<1x16x65xf32, #tpu.memory_space<vmem>>, vector<1x16x65xf32>
    %153 = vector.shape_cast %152 : vector<1x16x65xf32> to vector<16x65xf32>
    %154 = vector.shape_cast %151 : vector<16x65xf32> to vector<1x16x65xf32>
    tpu.vector_store %arg12[%c0_47, %c0_48, %c0_49], %154 {strides = array<i32>} : memref<1x16x65xf32, #tpu.memory_space<vmem>>, vector<1x16x65xf32>,
    %c0_50 = arith.constant 0 : index
    %c0_51 = arith.constant 0 : index
    %155 = vector.load %arg10[%c0_50, %c0_51] : memref<32x64xbf16, #tpu.memory_space<vmem>>, vector<32x64xbf16>
    %cst_52 = arith.constant dense<0.000000e+00> : vector<16x64xf32>
    %156 = tpu.matmul %146, %155, %cst_52 {dimension_numbers = #tpu.dot_dimension_numbers<[1], [0], [0], [1], [0, 0, 1, 1], [], []>} : vector<16x32xbf16>, vector<32x64xbf16>, vector<16x64xf32> -> vector<16x64xf32>
    %c0_53 = arith.constant 0 : index
    %c0_54 = arith.constant 0 : index
    %157 = vector.load %arg11[%c0_53, %c0_54] : memref<1x64xf32, #tpu.memory_space<vmem>>, vector<1x64xf32>
    %158 = vector.broadcast %157 : vector<1x64xf32> to vector<16x64xf32>
    %159 = arith.addf %156, %158 : vector<16x64xf32>
    %c0_55 = arith.constant 0 : index
    %c0_56 = arith.constant 0 : index
    %c0_57 = arith.constant 0 : index
    %160 = vector.load %arg13[%c0_55, %c0_56, %c0_57] : memref<1x16x64xf32, #tpu.memory_space<vmem>>, vector<1x16x64xf32>
    %161 = vector.shape_cast %160 : vector<1x16x64xf32> to vector<16x64xf32>
    %162 = vector.shape_cast %159 : vector<16x64xf32> to vector<1x16x64xf32>
    tpu.vector_store %arg13[%c0_55, %c0_56, %c0_57], %162 {strides = array<i32>} : memref<1x16x64xf32, #tpu.memory_space<vmem>>, vector<1x16x64xf32>,
    return
  }
  func.func @transform_0(%arg0: i32) -> (i32, i32, i32) {
    %c0_i32 = arith.constant 0 : i32
    %c0_i32_0 = arith.constant 0 : i32
    %c0_i32_1 = arith.constant 0 : i32
    return %arg0, %c0_i32, %c0_i32_0 : i32, i32, i32
  }
  func.func @transform_1(%arg0: i32) -> (i32, i32) {
    %c0_i32 = arith.constant 0 : i32
    %c0_i32_0 = arith.constant 0 : i32
    %c0_i32_1 = arith.constant 0 : i32
    return %c0_i32, %c0_i32_0 : i32, i32
  }
  func.func @transform_2(%arg0: i32) -> (i32, i32) {
    %c0_i32 = arith.constant 0 : i32
    %c0_i32_0 = arith.constant 0 : i32
    %c0_i32_1 = arith.constant 0 : i32
    return %c0_i32, %c0_i32_0 : i32, i32
  }
  func.func @transform_3(%arg0: i32) -> (i32, i32) {
    %c0_i32 = arith.constant 0 : i32
    %c0_i32_0 = arith.constant 0 : i32
    %c0_i32_1 = arith.constant 0 : i32
    return %c0_i32, %c0_i32_0 : i32, i32
  }
  func.func @transform_4(%arg0: i32) -> (i32, i32) {
    %c0_i32 = arith.constant 0 : i32
    %c0_i32_0 = arith.constant 0 : i32
    %c0_i32_1 = arith.constant 0 : i32
    return %c0_i32, %c0_i32_0 : i32, i32
  }
  func.func @transform_5(%arg0: i32) -> (i32, i32) {
    %c0_i32 = arith.constant 0 : i32
    %c0_i32_0 = arith.constant 0 : i32
    %c0_i32_1 = arith.constant 0 : i32
    return %c0_i32, %c0_i32_0 : i32, i32
  }
  func.func @transform_6(%arg0: i32) -> (i32, i32) {
    %c0_i32 = arith.constant 0 : i32
    %c0_i32_0 = arith.constant 0 : i32
    %c0_i32_1 = arith.constant 0 : i32
    return %c0_i32, %c0_i32_0 : i32, i32
  }
  func.func @transform_7(%arg0: i32) -> (i32, i32) {
    %c0_i32 = arith.constant 0 : i32
    %c0_i32_0 = arith.constant 0 : i32
    %c0_i32_1 = arith.constant 0 : i32
    return %c0_i32, %c0_i32_0 : i32, i32
  }
  func.func @transform_8(%arg0: i32) -> (i32, i32) {
    %c0_i32 = arith.constant 0 : i32
    %c0_i32_0 = arith.constant 0 : i32
    %c0_i32_1 = arith.constant 0 : i32
    return %c0_i32, %c0_i32_0 : i32, i32
  }
  func.func @transform_9(%arg0: i32) -> (i32, i32) {
    %c0_i32 = arith.constant 0 : i32
    %c0_i32_0 = arith.constant 0 : i32
    %c0_i32_1 = arith.constant 0 : i32
    return %c0_i32, %c0_i32_0 : i32, i32
  }
  func.func @transform_10(%arg0: i32) -> (i32, i32) {
    %c0_i32 = arith.constant 0 : i32
    %c0_i32_0 = arith.constant 0 : i32
    %c0_i32_1 = arith.constant 0 : i32
    return %c0_i32, %c0_i32_0 : i32, i32
  }
  func.func @transform_11(%arg0: i32) -> (i32, i32, i32) {
    %c0_i32 = arith.constant 0 : i32
    %c0_i32_0 = arith.constant 0 : i32
    %c0_i32_1 = arith.constant 0 : i32
    return %arg0, %c0_i32, %c0_i32_0 : i32, i32, i32
  }
  func.func @transform_12(%arg0: i32) -> (i32, i32, i32) {
    %c0_i32 = arith.constant 0 : i32
    %c0_i32_0 = arith.constant 0 : i32
    %c0_i32_1 = arith.constant 0 : i32
    return %arg0, %c0_i32, %c0_i32_0 : i32, i32, i32
  }
  func.func @transform_13(%arg0: i32) -> (i32, i32, i32) {
    %c0_i32 = arith.constant 0 : i32
    %c0_i32_0 = arith.constant 0 : i32
    %c0_i32_1 = arith.constant 0 : i32
    return %arg0, %c0_i32, %c0_i32_0 : i32, i32, i32
  }
}

</mosaic_0001>

<llo_original>
// kernel: forward.3
$region0: #{forward.3}
  #allocation0 [shape = 'u32[]', space=smem, size = 0x4, offset = 0x4, fixed_abs, tag = 'smem constant byte address 0x4 - core index']
  #allocation1 [shape = 'u32[144,128]{1,0:T(1,128)}', space=vmem, size = 0x12000, scoped, tag = 'internal scratch']
  %s0 = inlined_call_operand.vmem [shape: bf16[2,16,64], index: 0, kind: input, shape index: {}]
  %s1 = inlined_call_operand.vmem [shape: bf16[16,48], index: 1, kind: input, shape index: {}]
  %s2 = inlined_call_operand.vmem [shape: f32[1,48], index: 2, kind: input, shape index: {}]
  %s3 = inlined_call_operand.vmem [shape: f32[9,48], index: 3, kind: input, shape index: {}]
  %s4 = inlined_call_operand.vmem [shape: f32[1,48], index: 4, kind: input, shape index: {}]
  %s5 = inlined_call_operand.vmem [shape: bf16[48,32], index: 5, kind: input, shape index: {}]
  %s6 = inlined_call_operand.vmem [shape: f32[1,32], index: 6, kind: input, shape index: {}]
  %s7 = inlined_call_operand.vmem [shape: bf16[32,65], index: 7, kind: input, shape index: {}]
  %s8 = inlined_call_operand.vmem [shape: f32[1,65], index: 8, kind: input, shape index: {}]
  %s9 = inlined_call_operand.vmem [shape: bf16[32,64], index: 9, kind: input, shape index: {}]
  %s10 = inlined_call_operand.vmem [shape: f32[1,64], index: 10, kind: input, shape index: {}]
  %s11 = inlined_call_operand.hbm [shape: f32[2,16,65], index: 11, kind: output, shape index: {0}]
  %s12 = inlined_call_operand.hbm [shape: f32[2,16,64], index: 12, kind: output, shape index: {1}]
  %s13 = inlined_call_operand.hbm [shape: f32[2,1,32], index: 13, kind: output, shape index: {2}]
  %14 = xla_tuple %s11, %s12, %s13
  %s15 = sld [smem:[#allocation0]]
  $region93: #{forward.3} parent=0
    _
  %s17 = ssub.s32 1, %s15
  %s18 = scalar_select 0, %s17, %s15
  $region1: #{forward.3} parent=0
    #allocation2 [shape = 'u8[16384]{0}', space=vmem, size = 0x4000, scoped, tag = 'output window, operand 0']
    #allocation3 [shape = 's32[2]{0}', space=sflag, size = 0x8, scoped, tag = 'scoped memory for forward.3']
    #allocation4 [shape = 'u8[16384]{0}', space=vmem, size = 0x4000, scoped, tag = 'output window, operand 1']
    #allocation5 [shape = 's32[2]{0}', space=sflag, size = 0x8, scoped, tag = 'scoped memory for forward.3']
    #allocation6 [shape = 'u8[1024]{0}', space=vmem, size = 0x400, scoped, tag = 'output window, operand 2']
    %19 = vsyncpa [#allocation3], 0
    %s20 = scalar_lea.sflag [#allocation3], 1
    %21 = vsyncpa %s20, 0
    %22 = vsyncpa [#allocation5], 0
    %s23 = scalar_lea.sflag [#allocation5], 1
    %24 = vsyncpa %s23, 0
    loop: start=0, step=1, limit=4
    $region2: #{forward.3} parent=1 // loop_pre_header
      _
    $region3: #{forward.3} parent=1 // loop_header
      %s26 = sphi 0, %s30
      %p27 = scmp.ge.s32.totalorder %s26, 4
      %s36 = sphi 0, %s38
      %s39 = sphi 0, %s36
      %s40 = sphi 0, %s39
      %s56 = sphi 0, %s40
      %s60 = sphi 0, %s60
      %s62 = sphi 0, %s60
      %s63 = sphi 0, %s62
      %s77 = sphi 0, %s63
      %s81 = sphi 0, %s81
      %s83 = sphi 0, %s81
      %s84 = sphi 0, %s83
      %s98 = sphi 0, %s84
      %s102 = sphi 0, %s102
      %s104 = sphi 0, %s102
      %s105 = sphi 0, %s104
      %s119 = sphi 0, %s105
      %s123 = sphi 0, %s123
      %s125 = sphi 0, %s123
      %s126 = sphi 0, %s125
      %s140 = sphi 0, %s126
      %s144 = sphi 0, %s144
      %s146 = sphi 0, %s144
      %s147 = sphi 0, %s146
      %s161 = sphi 0, %s147
      %s165 = sphi 0, %s165
      %s167 = sphi 0, %s165
      %s168 = sphi 0, %s167
      %s182 = sphi 0, %s168
      %s186 = sphi 0, %s186
      %s188 = sphi 0, %s186
      %s189 = sphi 0, %s188
      %s203 = sphi 0, %s189
      %s207 = sphi 0, %s207
      %s209 = sphi 0, %s207
      %s210 = sphi 0, %s209
      %s224 = sphi 0, %s210
      %s228 = sphi 0, %s228
      %s230 = sphi 0, %s228
      %s231 = sphi 0, %s230
      %s245 = sphi 0, %s231
      %s249 = sphi 0, %s249
      %s251 = sphi 0, %s249
      %s252 = sphi 0, %s251
      %s266 = sphi 0, %s252
      %s272 = sphi 0, %s274
      %s275 = sphi 0, %s272
      %s276 = sphi 0, %s275
      %s292 = sphi 0, %s276
      %s298 = sphi 0, %s300
      %s301 = sphi 0, %s298
      %s302 = sphi 0, %s301
      %s318 = sphi 0, %s302
      %s324 = sphi 0, %s326
      %s327 = sphi 0, %s324
      %s328 = sphi 0, %s327
      %s344 = sphi 0, %s328
    $region4: #{forward.3} parent=1 // loop_header_branch
      %29 = sbr.rel (%p27) target = $region8
    $region5: #{forward.3} parent=1 // loop_body
      %s31 = ssub.s32 %s26, 1
      %s32 = ssub.s32 %s26, 2
      %s33 = sadd.s32 %s26, 1
      %s34 = ssub.s32 %s26, %s33
      %p35 = scmp.eq.s32.totalorder %s34, 0
      %s37 = sadd.s32 %s36, 1
      %s38 = scalar_select %p35, %s36, %s37
      %p41 = pneg %p35
      %p42 = scmp.eq.s32.totalorder %s26, 1
      %p43 = por %p41, %p42
      %p44 = scmp.ne.s32.totalorder %s36, %s39
      %p45 = scmp.eq.s32.totalorder %s26, 0
      %p46 = por %p44, %p45
      %p47 = scmp.ne.s32.totalorder %s36, %s39
      %p48 = scmp.eq.s32.totalorder %s31, 1
      %p49 = por %p47, %p48
      %p50 = scmp.ne.s32.totalorder %s39, %s40
      %p51 = scmp.eq.s32.totalorder %s31, 0
      %p52 = por %p50, %p51
      %p53 = scmp.ne.s32.totalorder %s39, %s40
      %p54 = scmp.eq.s32.totalorder %s32, 1
      %p55 = por %p53, %p54
      %p57 = scmp.ne.s32.totalorder %s40, %s56
      %p58 = scmp.eq.s32.totalorder %s32, 0
      %p59 = por %p57, %p58
      %s61 = sadd.s32 %s60, 1
      %p64 = scmp.eq.s32.totalorder %s26, 1
      %p65 = scmp.ne.s32.totalorder %s60, %s62
      %p66 = scmp.eq.s32.totalorder %s26, 0
      %p67 = por %p65, %p66
      %p68 = scmp.ne.s32.totalorder %s60, %s62
      %p69 = scmp.eq.s32.totalorder %s31, 1
      %p70 = por %p68, %p69
      %p71 = scmp.ne.s32.totalorder %s62, %s63
      %p72 = scmp.eq.s32.totalorder %s31, 0
      %p73 = por %p71, %p72
      %p74 = scmp.ne.s32.totalorder %s62, %s63
      %p75 = scmp.eq.s32.totalorder %s32, 1
      %p76 = por %p74, %p75
      %p78 = scmp.ne.s32.totalorder %s63, %s77
      %p79 = scmp.eq.s32.totalorder %s32, 0
      %p80 = por %p78, %p79
      %s82 = sadd.s32 %s81, 1
      %p85 = scmp.eq.s32.totalorder %s26, 1
      %p86 = scmp.ne.s32.totalorder %s81, %s83
      %p87 = scmp.eq.s32.totalorder %s26, 0
      %p88 = por %p86, %p87
      %p89 = scmp.ne.s32.totalorder %s81, %s83
      %p90 = scmp.eq.s32.totalorder %s31, 1
      %p91 = por %p89, %p90
      %p92 = scmp.ne.s32.totalorder %s83, %s84
      %p93 = scmp.eq.s32.totalorder %s31, 0
      %p94 = por %p92, %p93
      %p95 = scmp.ne.s32.totalorder %s83, %s84
      %p96 = scmp.eq.s32.totalorder %s32, 1
      %p97 = por %p95, %p96
      %p99 = scmp.ne.s32.totalorder %s84, %s98
      %p100 = scmp.eq.s32.totalorder %s32, 0
      %p101 = por %p99, %p100
      %s103 = sadd.s32 %s102, 1
      %p106 = scmp.eq.s32.totalorder %s26, 1
      %p107 = scmp.ne.s32.totalorder %s102, %s104
      %p108 = scmp.eq.s32.totalorder %s26, 0
      %p109 = por %p107, %p108
      %p110 = scmp.ne.s32.totalorder %s102, %s104
      %p111 = scmp.eq.s32.totalorder %s31, 1
      %p112 = por %p110, %p111
      %p113 = scmp.ne.s32.totalorder %s104, %s105
      %p114 = scmp.eq.s32.totalorder %s31, 0
      %p115 = por %p113, %p114
      %p116 = scmp.ne.s32.totalorder %s104, %s105
      %p117 = scmp.eq.s32.totalorder %s32, 1
      %p118 = por %p116, %p117
      %p120 = scmp.ne.s32.totalorder %s105, %s119
      %p121 = scmp.eq.s32.totalorder %s32, 0
      %p122 = por %p120, %p121
      %s124 = sadd.s32 %s123, 1
      %p127 = scmp.eq.s32.totalorder %s26, 1
      %p128 = scmp.ne.s32.totalorder %s123, %s125
      %p129 = scmp.eq.s32.totalorder %s26, 0
      %p130 = por %p128, %p129
      %p131 = scmp.ne.s32.totalorder %s123, %s125
      %p132 = scmp.eq.s32.totalorder %s31, 1
      %p133 = por %p131, %p132
      %p134 = scmp.ne.s32.totalorder %s125, %s126
      %p135 = scmp.eq.s32.totalorder %s31, 0
      %p136 = por %p134, %p135
      %p137 = scmp.ne.s32.totalorder %s125, %s126
      %p138 = scmp.eq.s32.totalorder %s32, 1
      %p139 = por %p137, %p138
      %p141 = scmp.ne.s32.totalorder %s126, %s140
      %p142 = scmp.eq.s32.totalorder %s32, 0
      %p143 = por %p141, %p142
      %s145 = sadd.s32 %s144, 1
      %p148 = scmp.eq.s32.totalorder %s26, 1
      %p149 = scmp.ne.s32.totalorder %s144, %s146
      %p150 = scmp.eq.s32.totalorder %s26, 0
      %p151 = por %p149, %p150
      %p152 = scmp.ne.s32.totalorder %s144, %s146
      %p153 = scmp.eq.s32.totalorder %s31, 1
      %p154 = por %p152, %p153
      %p155 = scmp.ne.s32.totalorder %s146, %s147
      %p156 = scmp.eq.s32.totalorder %s31, 0
      %p157 = por %p155, %p156
      %p158 = scmp.ne.s32.totalorder %s146, %s147
      %p159 = scmp.eq.s32.totalorder %s32, 1
      %p160 = por %p158, %p159
      %p162 = scmp.ne.s32.totalorder %s147, %s161
      %p163 = scmp.eq.s32.totalorder %s32, 0
      %p164 = por %p162, %p163
      %s166 = sadd.s32 %s165, 1
      %p169 = scmp.eq.s32.totalorder %s26, 1
      %p170 = scmp.ne.s32.totalorder %s165, %s167
      %p171 = scmp.eq.s32.totalorder %s26, 0
      %p172 = por %p170, %p171
      %p173 = scmp.ne.s32.totalorder %s165, %s167
      %p174 = scmp.eq.s32.totalorder %s31, 1
      %p175 = por %p173, %p174
      %p176 = scmp.ne.s32.totalorder %s167, %s168
      %p177 = scmp.eq.s32.totalorder %s31, 0
      %p178 = por %p176, %p177
      %p179 = scmp.ne.s32.totalorder %s167, %s168
      %p180 = scmp.eq.s32.totalorder %s32, 1
      %p181 = por %p179, %p180
      %p183 = scmp.ne.s32.totalorder %s168, %s182
      %p184 = scmp.eq.s32.totalorder %s32, 0
      %p185 = por %p183, %p184
      %s187 = sadd.s32 %s186, 1
      %p190 = scmp.eq.s32.totalorder %s26, 1
      %p191 = scmp.ne.s32.totalorder %s186, %s188
      %p192 = scmp.eq.s32.totalorder %s26, 0
      %p193 = por %p191, %p192
      %p194 = scmp.ne.s32.totalorder %s186, %s188
      %p195 = scmp.eq.s32.totalorder %s31, 1
      %p196 = por %p194, %p195
      %p197 = scmp.ne.s32.totalorder %s188, %s189
      %p198 = scmp.eq.s32.totalorder %s31, 0
      %p199 = por %p197, %p198
      %p200 = scmp.ne.s32.totalorder %s188, %s189
      %p201 = scmp.eq.s32.totalorder %s32, 1
      %p202 = por %p200, %p201
      %p204 = scmp.ne.s32.totalorder %s189, %s203
      %p205 = scmp.eq.s32.totalorder %s32, 0
      %p206 = por %p204, %p205
      %s208 = sadd.s32 %s207, 1
      %p211 = scmp.eq.s32.totalorder %s26, 1
      %p212 = scmp.ne.s32.totalorder %s207, %s209
      %p213 = scmp.eq.s32.totalorder %s26, 0
      %p214 = por %p212, %p213
      %p215 = scmp.ne.s32.totalorder %s207, %s209
      %p216 = scmp.eq.s32.totalorder %s31, 1
      %p217 = por %p215, %p216
      %p218 = scmp.ne.s32.totalorder %s209, %s210
      %p219 = scmp.eq.s32.totalorder %s31, 0
      %p220 = por %p218, %p219
      %p221 = scmp.ne.s32.totalorder %s209, %s210
      %p222 = scmp.eq.s32.totalorder %s32, 1
      %p223 = por %p221, %p222
      %p225 = scmp.ne.s32.totalorder %s210, %s224
      %p226 = scmp.eq.s32.totalorder %s32, 0
      %p227 = por %p225, %p226
      %s229 = sadd.s32 %s228, 1
      %p232 = scmp.eq.s32.totalorder %s26, 1
      %p233 = scmp.ne.s32.totalorder %s228, %s230
      %p234 = scmp.eq.s32.totalorder %s26, 0
      %p235 = por %p233, %p234
      %p236 = scmp.ne.s32.totalorder %s228, %s230
      %p237 = scmp.eq.s32.totalorder %s31, 1
      %p238 = por %p236, %p237
      %p239 = scmp.ne.s32.totalorder %s230, %s231
      %p240 = scmp.eq.s32.totalorder %s31, 0
      %p241 = por %p239, %p240
      %p242 = scmp.ne.s32.totalorder %s230, %s231
      %p243 = scmp.eq.s32.totalorder %s32, 1
      %p244 = por %p242, %p243
      %p246 = scmp.ne.s32.totalorder %s231, %s245
      %p247 = scmp.eq.s32.totalorder %s32, 0
      %p248 = por %p246, %p247
      %s250 = sadd.s32 %s249, 1
      %p253 = scmp.eq.s32.totalorder %s26, 1
      %p254 = scmp.ne.s32.totalorder %s249, %s251
      %p255 = scmp.eq.s32.totalorder %s26, 0
      %p256 = por %p254, %p255
      %p257 = scmp.ne.s32.totalorder %s249, %s251
      %p258 = scmp.eq.s32.totalorder %s31, 1
      %p259 = por %p257, %p258
      %p260 = scmp.ne.s32.totalorder %s251, %s252
      %p261 = scmp.eq.s32.totalorder %s31, 0
      %p262 = por %p260, %p261
      %p263 = scmp.ne.s32.totalorder %s251, %s252
      %p264 = scmp.eq.s32.totalorder %s32, 1
      %p265 = por %p263, %p264
      %p267 = scmp.ne.s32.totalorder %s252, %s266
      %p268 = scmp.eq.s32.totalorder %s32, 0
      %p269 = por %p267, %p268
      %s270 = ssub.s32 %s26, %s33
      %p271 = scmp.eq.s32.totalorder %s270, 0
      %s273 = sadd.s32 %s272, 1
      %s274 = scalar_select %p271, %s272, %s273
      %p277 = pneg %p271
      %p278 = scmp.eq.s32.totalorder %s26, 1
      %p279 = por %p277, %p278
      %p280 = scmp.ne.s32.totalorder %s272, %s275
      %p281 = scmp.eq.s32.totalorder %s26, 0
      %p282 = por %p280, %p281
      %p283 = scmp.ne.s32.totalorder %s272, %s275
      %p284 = scmp.eq.s32.totalorder %s31, 1
      %p285 = por %p283, %p284
      %p286 = scmp.ne.s32.totalorder %s275, %s276
      %p287 = scmp.eq.s32.totalorder %s31, 0
      %p288 = por %p286, %p287
      %p289 = scmp.ne.s32.totalorder %s275, %s276
      %p290 = scmp.eq.s32.totalorder %s32, 1
      %p291 = por %p289, %p290
      %p293 = scmp.ne.s32.totalorder %s276, %s292
      %p294 = scmp.eq.s32.totalorder %s32, 0
      %p295 = por %p293, %p294
      %s296 = ssub.s32 %s26, %s33
      %p297 = scmp.eq.s32.totalorder %s296, 0
      %s299 = sadd.s32 %s298, 1
      %s300 = scalar_select %p297, %s298, %s299
      %p303 = pneg %p297
      %p304 = scmp.eq.s32.totalorder %s26, 1
      %p305 = por %p303, %p304
      %p306 = scmp.ne.s32.totalorder %s298, %s301
      %p307 = scmp.eq.s32.totalorder %s26, 0
      %p308 = por %p306, %p307
      %p309 = scmp.ne.s32.totalorder %s298, %s301
      %p310 = scmp.eq.s32.totalorder %s31, 1
      %p311 = por %p309, %p310
      %p312 = scmp.ne.s32.totalorder %s301, %s302
      %p313 = scmp.eq.s32.totalorder %s31, 0
      %p314 = por %p312, %p313
      %p315 = scmp.ne.s32.totalorder %s301, %s302
      %p316 = scmp.eq.s32.totalorder %s32, 1
      %p317 = por %p315, %p316
      %p319 = scmp.ne.s32.totalorder %s302, %s318
      %p320 = scmp.eq.s32.totalorder %s32, 0
      %p321 = por %p319, %p320
      %s322 = ssub.s32 %s26, %s33
      %p323 = scmp.eq.s32.totalorder %s322, 0
      %s325 = sadd.s32 %s324, 1
      %s326 = scalar_select %p323, %s324, %s325
      %p329 = pneg %p323
      %p330 = scmp.eq.s32.totalorder %s26, 1
      %p331 = por %p329, %p330
      %p332 = scmp.ne.s32.totalorder %s324, %s327
      %p333 = scmp.eq.s32.totalorder %s26, 0
      %p334 = por %p332, %p333
      %p335 = scmp.ne.s32.totalorder %s324, %s327
      %p336 = scmp.eq.s32.totalorder %s31, 1
      %p337 = por %p335, %p336
      %p338 = scmp.ne.s32.totalorder %s327, %s328
      %p339 = scmp.eq.s32.totalorder %s31, 0
      %p340 = por %p338, %p339
      %p341 = scmp.ne.s32.totalorder %s327, %s328
      %p342 = scmp.eq.s32.totalorder %s32, 1
      %p343 = por %p341, %p342
      %p345 = scmp.ne.s32.totalorder %s328, %s344
      %p346 = scmp.eq.s32.totalorder %s32, 0
      %p347 = por %p345, %p346
      %p348 = scmp.le.s32.totalorder 1, %s26
      %p349 = scmp.lt.s32.totalorder %s26, 3
      %p350 = pnand %p348, %p349
      %p351 = pneg %p350
      // Predicated region
      $region9: #{forward.3} parent=5 // pred_check
        _
      $region10: #{forward.3} parent=5 // pred_check_branch
        %353 = sbr.rel (%p350) target = $region12
      $region11: #{forward.3} parent=5 // pred_region
        %s354 = ssub.s32 %s26, 1
        // Predicated region
        $region13: #{forward.3} parent=11 // pred_check
          %p355 = pneg %p73
        $region14: #{forward.3} parent=11 // pred_check_branch
          %357 = sbr.rel (%p355) target = $region16
        $region15: #{forward.3} parent=11 // pred_region
          _
        $region16: #{forward.3} parent=11 // pred_fallthru
          _
        // Predicated region
        $region17: #{forward.3} parent=11 // pred_check
          %p358 = pneg %p94
        $region18: #{forward.3} parent=11 // pred_check_branch
          %360 = sbr.rel (%p358) target = $region20
        $region19: #{forward.3} parent=11 // pred_region
          _
        $region20: #{forward.3} parent=11 // pred_fallthru
          _
        // Predicated region
        $region21: #{forward.3} parent=11 // pred_check
          %p361 = pneg %p115
        $region22: #{forward.3} parent=11 // pred_check_branch
          %363 = sbr.rel (%p361) target = $region24
        $region23: #{forward.3} parent=11 // pred_region
          _
        $region24: #{forward.3} parent=11 // pred_fallthru
          _
        // Predicated region
        $region25: #{forward.3} parent=11 // pred_check
          %p364 = pneg %p136
        $region26: #{forward.3} parent=11 // pred_check_branch
          %366 = sbr.rel (%p364) target = $region28
        $region27: #{forward.3} parent=11 // pred_region
          _
        $region28: #{forward.3} parent=11 // pred_fallthru
          _
        // Predicated region
        $region29: #{forward.3} parent=11 // pred_check
          %p367 = pneg %p157
        $region30: #{forward.3} parent=11 // pred_check_branch
          %369 = sbr.rel (%p367) target = $region32
        $region31: #{forward.3} parent=11 // pred_region
          _
        $region32: #{forward.3} parent=11 // pred_fallthru
          _
        // Predicated region
        $region33: #{forward.3} parent=11 // pred_check
          %p370 = pneg %p178
        $region34: #{forward.3} parent=11 // pred_check_branch
          %372 = sbr.rel (%p370) target = $region36
        $region35: #{forward.3} parent=11 // pred_region
          _
        $region36: #{forward.3} parent=11 // pred_fallthru
          _
        // Predicated region
        $region37: #{forward.3} parent=11 // pred_check
          %p373 = pneg %p199
        $region38: #{forward.3} parent=11 // pred_check_branch
          %375 = sbr.rel (%p373) target = $region40
        $region39: #{forward.3} parent=11 // pred_region
          _
        $region40: #{forward.3} parent=11 // pred_fallthru
          _
        // Predicated region
        $region41: #{forward.3} parent=11 // pred_check
          %p376 = pneg %p220
        $region42: #{forward.3} parent=11 // pred_check_branch
          %378 = sbr.rel (%p376) target = $region44
        $region43: #{forward.3} parent=11 // pred_region
          _
        $region44: #{forward.3} parent=11 // pred_fallthru
          _
        // Predicated region
        $region45: #{forward.3} parent=11 // pred_check
          %p379 = pneg %p241
        $region46: #{forward.3} parent=11 // pred_check_branch
          %381 = sbr.rel (%p379) target = $region48
        $region47: #{forward.3} parent=11 // pred_region
          _
        $region48: #{forward.3} parent=11 // pred_fallthru
          _
        // Predicated region
        $region49: #{forward.3} parent=11 // pred_check
          %p382 = pneg %p262
        $region50: #{forward.3} parent=11 // pred_check_branch
          %384 = sbr.rel (%p382) target = $region52
        $region51: #{forward.3} parent=11 // pred_region
          _
        $region52: #{forward.3} parent=11 // pred_fallthru
          _
      $region12: #{forward.3} parent=5 // pred_fallthru
        _
      %p385 = scmp.lt.s32.totalorder %s26, 2
      // Predicated region
      $region53: #{forward.3} parent=5 // pred_check
        %p386 = pneg %p385
      $region54: #{forward.3} parent=5 // pred_check_branch
        %388 = sbr.rel (%p386) target = $region56
      $region55: #{forward.3} parent=5 // pred_region
        // Predicated region
        $region57: #{forward.3} parent=55 // pred_check
          %p389 = pneg %p46
        $region58: #{forward.3} parent=55 // pred_check_branch
          %391 = sbr.rel (%p389) target = $region60
        $region59: #{forward.3} parent=55 // pred_region
          %p392 = scmp.lt.s32.totalorder %s26, 1
          %s393 = scalar_select %p392, %s26, 1
          %s394 = smul.addr %s393, 2
          %s395 = smul.addr %s394, 4
          %s396 = scalar_lea.vmem %s0, %s395
        $region60: #{forward.3} parent=55 // pred_fallthru
          _
      $region56: #{forward.3} parent=5 // pred_fallthru
        _
      %p397 = scmp.le.s32.totalorder 1, %s26
      %p398 = scmp.lt.s32.totalorder %s26, 3
      %p399 = pnand %p397, %p398
      %p400 = pneg %p399
      // Predicated region
      $region61: #{forward.3} parent=5 // pred_check
        _
      $region62: #{forward.3} parent=5 // pred_check_branch
        %402 = sbr.rel (%p399) target = $region64
      $region63: #{forward.3} parent=5 // pred_region
        %s403 = ssub.s32 %s26, 1
        %p404 = scmp.lt.s32.totalorder %s31, 1
        %s405 = scalar_select %p404, %s31, 1
        %s406 = smul.addr %s405, 2
        %s407 = smul.addr %s406, 4
        %s408 = scalar_lea.vmem %s0, %s407
        %p409 = pneg %p52
        %p410 = pneg %p49
        %p411 = pneg %p73
        %p412 = pneg %p70
        %p413 = pneg %p94
        %p414 = pneg %p91
        %p415 = pneg %p115
        %p416 = pneg %p112
        %p417 = pneg %p136
        %p418 = pneg %p133
        %p419 = pneg %p157
        %p420 = pneg %p154
        %p421 = pneg %p178
        %p422 = pneg %p175
        %p423 = pneg %p199
        %p424 = pneg %p196
        %p425 = pneg %p220
        %p426 = pneg %p217
        %p427 = pneg %p241
        %p428 = pneg %p238
        %p429 = pneg %p262
        %p430 = pneg %p259
        %p431 = pneg %p288
        %p432 = pneg %p285
        %s433 = sand.u32 %s275, 1
        %s434 = scalar_lea.sflag [#allocation3], %s433
        %s435 = sand.u32 %s275, 1
        %s436 = smul.addr %s435, 16
        %s437 = scalar_lea.vmem [#allocation2], %s436
        %p438 = pneg %p314
        %p439 = pneg %p311
        %s440 = sand.u32 %s31, 1
        %s441 = scalar_lea.sflag [#allocation5], %s440
        %s442 = sand.u32 %s301, 1
        %s443 = smul.addr %s442, 16
        %s444 = scalar_lea.vmem [#allocation4], %s443
        %p445 = pneg %p340
        %p446 = pneg %p337
        %s447 = sand.u32 %s31, 1
        %s448 = scalar_lea.sflag [#allocation5], %s447
        %s449 = sand.u32 %s327, 1
        %s450 = scalar_lea.vmem [#allocation6], %s449
        %p451 = scmp.lt.s32.totalorder %s31, 1
        %s452 = scalar_select %p451, %s31, 1
        %s453 = smul.addr %s452, 2
        %s454 = smul.addr %s453, 4
        %s455 = scalar_lea.vmem %s0, %s454
        %v459 = vld [vmem:[%s455] sm:$0xf]
        %v460 = vld [vmem:[%s455 + $0x4] sm:$0xf]
        %v461 = vlaneseq
        %v462 = vshrl.u32 %v461, 7
        %v463 = vadd.s32 %v462, 8
        %vm464 = vcmp.lt.s32.totalorder %v462, 0
        %v465 = vsub.s32 0, %v462
        %v466 = vsel %vm464, %v465, %v462
        %v467 = vshrl.u32 %v466, 2
        %v468 = vand.u32 %v466, 3
        %v469 = vsub.s32 0, %v468
        %v470 = vsel %vm464, %v469, %v468
        %vm471 = vcmp.lt.s32.totalorder %v463, 0
        %v472 = vsub.s32 0, %v463
        %v473 = vsel %vm471, %v472, %v463
        %v474 = vshrl.u32 %v473, 2
        %v475 = vand.u32 %v473, 3
        %v476 = vsub.s32 0, %v475
        %v477 = vsel %vm471, %v476, %v475
        %vm478 = vcmp.ne.s32.totalorder %v470, 0
        %vm479 = vcmp.ne.s32.totalorder %v477, 0
        %vm480 = vcmp.lt.s32.totalorder %v470, 0
        %vm481 = vcmp.lt.s32.totalorder %v477, 0
        %vm482 = vmand %vm480, %vm478
        %vm483 = vmand %vm481, %vm479
        %v484 = vadd.s32 %v470, 4
        %v485 = vadd.s32 %v477, 4
        %v486 = vsel %vm482, %v484, %v470
        %v487 = vsel %vm483, %v485, %v477
        %vm488 = vcmp.ne.s32.totalorder %v486, 0
        %vm489 = vcmp.ne.s32.totalorder %v487, 0
        %v490 = vld [vmem:[%s1] sm:$0xf]
        %v491 = vld [vmem:[%s1 + $0x4] sm:$0xf]
        %v492 = vld [vmem:[%s2] sm:$0x1]
        %v494 = vlaneseq
        %v495 = vshrl.u32 %v494, 7
        %v496 = vsub.s32 0, %v495
        %v497 = vrot.slane %v492, %v496
        %v501 = vunpack.c.l.b16 %v459
        %v502 = vunpack.c.l.b16 %v460
        %v503 = vpack.c.b16 %v502, %v501
        %v506 = vunpack.c.l.b16 %v490
        %v507 = vunpack.c.l.b16 %v491
        %v508 = vpack.c.b16 %v507, %v506
        %vm510 = vcmask 130048
        %v512 = vsel %vm510, %v503, 0
        %514 = vmatprep.subr.bf16.mxu0 0
        %515 = vmatpush1.bf16.msra.mxu0 %v508
        %516 = vmatprep.subr.bf16.mxu0 0
        %517 = vmatpush1.bf16.msra.mxu0 0
        %518 = vmatprep.subr.bf16.mxu0 0
        %519 = vmatpush1.bf16.msra.mxu0 0
        %520 = vmatprep.subr.bf16.mxu0 0
        %521 = vmatpush1.bf16.msra.mxu0 0
        %522 = vmatprep.subr.bf16.mxu0 0
        %523 = vmatpush1.bf16.msra.mxu0 0
        %524 = vmatprep.subr.bf16.mxu0 0
        %525 = vmatpush1.bf16.msra.mxu0 0
        %526 = vmatprep.subr.bf16.mxu0 0
        %527 = vmatpush1.bf16.msra.mxu0 0
        %528 = vmatprep.subr.bf16.mxu0 0
        %529 = vmatpush1.bf16.msra.mxu0 0
        %530 = vmatprep.subr.bf16.mxu0 0
        %531 = vmatpush1.bf16.msra.mxu0 0
        %532 = vmatprep.subr.bf16.mxu0 0
        %533 = vmatpush1.bf16.msra.mxu0 0
        %534 = vmatprep.subr.bf16.mxu0 0
        %535 = vmatpush1.bf16.msra.mxu0 0
        %536 = vmatprep.subr.bf16.mxu0 0
        %537 = vmatpush1.bf16.msra.mxu0 0
        %538 = vmatprep.subr.bf16.mxu0 0
        %539 = vmatpush1.bf16.msra.mxu0 0
        %540 = vmatprep.subr.bf16.mxu0 0
        %541 = vmatpush1.bf16.msra.mxu0 0
        %542 = vmatprep.subr.bf16.mxu0 0
        %543 = vmatpush1.bf16.msra.mxu0 0
        %544 = vmatprep.subr.bf16.mxu0 0
        %545 = vmatpush1.bf16.msra.mxu0 0
        %546 = vmatprep.mubr.bf16.mxu0 0
        %547 = vmatmul.mubr.bf16.gmra.mrb[0].mxu0 %v512
        %v548 = vpop.f32.mrb[0].mxu0
        %v549 = vadd.f32 %v497, %v548
        %v550 = vpop.f32.mrb[0].mxu0
        %v551 = vpop.f32.mrb[0].mxu0
        %v552 = vadd.f32 %v497, %v551
        %v553 = vpop.f32.mrb[0].mxu0
        %554 = vdwg.mxu0
        %v555 = vmax.f32 %v549, 0.0
        %v556 = vmax.f32 %v552, 0.0
        %v557 = vpack.c.bf16 %v556, %v555
        %558 = vrot.lane.b32.xlu0 %v503, 112
        %v559 = vpop.permute.xlu0 %558
        %v561 = vsel %vm510, %v559, 0
        %563 = vmatprep.subr.bf16.mxu0 0
        %564 = vmatpush1.bf16.msra.mxu0 %v508
        %565 = vmatprep.subr.bf16.mxu0 0
        %566 = vmatpush1.bf16.msra.mxu0 0
        %567 = vmatprep.subr.bf16.mxu0 0
        %568 = vmatpush1.bf16.msra.mxu0 0
        %569 = vmatprep.subr.bf16.mxu0 0
        %570 = vmatpush1.bf16.msra.mxu0 0
        %571 = vmatprep.subr.bf16.mxu0 0
        %572 = vmatpush1.bf16.msra.mxu0 0
        %573 = vmatprep.subr.bf16.mxu0 0
        %574 = vmatpush1.bf16.msra.mxu0 0
        %575 = vmatprep.subr.bf16.mxu0 0
        %576 = vmatpush1.bf16.msra.mxu0 0
        %577 = vmatprep.subr.bf16.mxu0 0
        %578 = vmatpush1.bf16.msra.mxu0 0
        %579 = vmatprep.subr.bf16.mxu0 0
        %580 = vmatpush1.bf16.msra.mxu0 0
        %581 = vmatprep.subr.bf16.mxu0 0
        %582 = vmatpush1.bf16.msra.mxu0 0
        %583 = vmatprep.subr.bf16.mxu0 0
        %584 = vmatpush1.bf16.msra.mxu0 0
        %585 = vmatprep.subr.bf16.mxu0 0
        %586 = vmatpush1.bf16.msra.mxu0 0
        %587 = vmatprep.subr.bf16.mxu0 0
        %588 = vmatpush1.bf16.msra.mxu0 0
        %589 = vmatprep.subr.bf16.mxu0 0
        %590 = vmatpush1.bf16.msra.mxu0 0
        %591 = vmatprep.subr.bf16.mxu0 0
        %592 = vmatpush1.bf16.msra.mxu0 0
        %593 = vmatprep.subr.bf16.mxu0 0
        %594 = vmatpush1.bf16.msra.mxu0 0
        %595 = vmatprep.mubr.bf16.mxu0 0
        %596 = vmatmul.mubr.bf16.gmra.mrb[0].mxu0 %v561
        %v597 = vpop.f32.mrb[0].mxu0
        %v598 = vadd.f32 %v497, %v597
        %v599 = vpop.f32.mrb[0].mxu0
        %v600 = vpop.f32.mrb[0].mxu0
        %v601 = vadd.f32 %v497, %v600
        %v602 = vpop.f32.mrb[0].mxu0
        %603 = vdwg.mxu0
        %v604 = vmax.f32 %v598, 0.0
        %v605 = vmax.f32 %v601, 0.0
        %v606 = vpack.c.bf16 %v605, %v604
        %607 = vrot.lane.b32.xlu0 %v503, 96
        %v608 = vpop.permute.xlu0 %607
        %v610 = vsel %vm510, %v608, 0
        %612 = vmatprep.subr.bf16.mxu0 0
        %613 = vmatpush1.bf16.msra.mxu0 %v508
        %614 = vmatprep.subr.bf16.mxu0 0
        %615 = vmatpush1.bf16.msra.mxu0 0
        %616 = vmatprep.subr.bf16.mxu0 0
        %617 = vmatpush1.bf16.msra.mxu0 0
        %618 = vmatprep.subr.bf16.mxu0 0
        %619 = vmatpush1.bf16.msra.mxu0 0
        %620 = vmatprep.subr.bf16.mxu0 0
        %621 = vmatpush1.bf16.msra.mxu0 0
        %622 = vmatprep.subr.bf16.mxu0 0
        %623 = vmatpush1.bf16.msra.mxu0 0
        %624 = vmatprep.subr.bf16.mxu0 0
        %625 = vmatpush1.bf16.msra.mxu0 0
        %626 = vmatprep.subr.bf16.mxu0 0
        %627 = vmatpush1.bf16.msra.mxu0 0
        %628 = vmatprep.subr.bf16.mxu0 0
        %629 = vmatpush1.bf16.msra.mxu0 0
        %630 = vmatprep.subr.bf16.mxu0 0
        %631 = vmatpush1.bf16.msra.mxu0 0
        %632 = vmatprep.subr.bf16.mxu0 0
        %633 = vmatpush1.bf16.msra.mxu0 0
        %634 = vmatprep.subr.bf16.mxu0 0
        %635 = vmatpush1.bf16.msra.mxu0 0
        %636 = vmatprep.subr.bf16.mxu0 0
        %637 = vmatpush1.bf16.msra.mxu0 0
        %638 = vmatprep.subr.bf16.mxu0 0
        %639 = vmatpush1.bf16.msra.mxu0 0
        %640 = vmatprep.subr.bf16.mxu0 0
        %641 = vmatpush1.bf16.msra.mxu0 0
        %642 = vmatprep.subr.bf16.mxu0 0
        %643 = vmatpush1.bf16.msra.mxu0 0
        %644 = vmatprep.mubr.bf16.mxu0 0
        %645 = vmatmul.mubr.bf16.gmra.mrb[0].mxu0 %v610
        %v646 = vpop.f32.mrb[0].mxu0
        %v647 = vadd.f32 %v497, %v646
        %v648 = vpop.f32.mrb[0].mxu0
        %v649 = vpop.f32.mrb[0].mxu0
        %v650 = vadd.f32 %v497, %v649
        %v651 = vpop.f32.mrb[0].mxu0
        %652 = vdwg.mxu0
        %v653 = vmax.f32 %v647, 0.0
        %v654 = vmax.f32 %v650, 0.0
        %v655 = vpack.c.bf16 %v654, %v653
        %656 = vrot.lane.b32.xlu0 %v503, 80
        %v657 = vpop.permute.xlu0 %656
        %v659 = vsel %vm510, %v657, 0
        %661 = vmatprep.subr.bf16.mxu0 0
        %662 = vmatpush1.bf16.msra.mxu0 %v508
        %663 = vmatprep.subr.bf16.mxu0 0
        %664 = vmatpush1.bf16.msra.mxu0 0
        %665 = vmatprep.subr.bf16.mxu0 0
        %666 = vmatpush1.bf16.msra.mxu0 0
        %667 = vmatprep.subr.bf16.mxu0 0
        %668 = vmatpush1.bf16.msra.mxu0 0
        %669 = vmatprep.subr.bf16.mxu0 0
        %670 = vmatpush1.bf16.msra.mxu0 0
        %671 = vmatprep.subr.bf16.mxu0 0
        %672 = vmatpush1.bf16.msra.mxu0 0
        %673 = vmatprep.subr.bf16.mxu0 0
        %674 = vmatpush1.bf16.msra.mxu0 0
        %675 = vmatprep.subr.bf16.mxu0 0
        %676 = vmatpush1.bf16.msra.mxu0 0
        %677 = vmatprep.subr.bf16.mxu0 0
        %678 = vmatpush1.bf16.msra.mxu0 0
        %679 = vmatprep.subr.bf16.mxu0 0
        %680 = vmatpush1.bf16.msra.mxu0 0
        %681 = vmatprep.subr.bf16.mxu0 0
        %682 = vmatpush1.bf16.msra.mxu0 0
        %683 = vmatprep.subr.bf16.mxu0 0
        %684 = vmatpush1.bf16.msra.mxu0 0
        %685 = vmatprep.subr.bf16.mxu0 0
        %686 = vmatpush1.bf16.msra.mxu0 0
        %687 = vmatprep.subr.bf16.mxu0 0
        %688 = vmatpush1.bf16.msra.mxu0 0
        %689 = vmatprep.subr.bf16.mxu0 0
        %690 = vmatpush1.bf16.msra.mxu0 0
        %691 = vmatprep.subr.bf16.mxu0 0
        %692 = vmatpush1.bf16.msra.mxu0 0
        %693 = vmatprep.mubr.bf16.mxu0 0
        %694 = vmatmul.mubr.bf16.gmra.mrb[0].mxu0 %v659
        %v695 = vpop.f32.mrb[0].mxu0
        %v696 = vadd.f32 %v497, %v695
        %v697 = vpop.f32.mrb[0].mxu0
        %v698 = vpop.f32.mrb[0].mxu0
        %v699 = vadd.f32 %v497, %v698
        %v700 = vpop.f32.mrb[0].mxu0
        %701 = vdwg.mxu0
        %v702 = vmax.f32 %v696, 0.0
        %v703 = vmax.f32 %v699, 0.0
        %v704 = vpack.c.bf16 %v703, %v702
        %v705 = vld [vmem:[%s3] sm:$0xff]
        %v706 = vld [vmem:[%s3 + $0x8] sm:$0x1]
        %v708 = vrot.slane %v704, 6
        %vm709 = vcmask 1041408
        %v712 = vsel %vm709, 0, %v708
        %v714 = vshrl.u32 %v712, 16
        %v716 = vrot.slane %v714, 7
        %v717 = vshll.u32 %v712, 16
        %v719 = vor.u32 %v716, %v717
        %vm721 = vcmask 1040384
        %vm722 = vsmask.f32 256
        %vm723 = vmand %vm721, %vm722
        %v724 = vsel %vm723, 0, %v719
        %v725 = vsel %vm488, 1, 0
        %v726 = vsel %vm489, 1, 0
        %vm727 = vcmp.eq.s32.totalorder %v725, 1
        %vm728 = vcmp.eq.s32.totalorder %v726, 1
        %vm729 = vmpackc.low %vm727, %vm727
        %vm730 = vmpackc.low %vm728, %vm728
        %v731 = vsel %vm729, 65537, 0
        %v732 = vsel %vm730, 65537, 0
        %v733 = vunpack.c.l.b16 %v731
        %v734 = vunpack.c.l.b16 %v732
        %v735 = vpack.c.b16 %v734, %v733
        %vm736 = vcmp.ne.s16.totalorder %v735, 0
        %v737 = vsel %vm736, %v724, 0
        %v738 = vunpack.c.l.bf16 %v737
        %v739 = vunpack.c.h.bf16 %v737
        %v740 = vlaneseq
        %v741 = vshrl.u32 %v740, 7
        %v742 = vsub.s32 0, %v741
        %v743 = vrot.slane %v705, %v742
        %v744 = vmul.f32 %v738, %v743
        %v745 = vmul.f32 %v739, %v743
        %v746 = vadd.f32 %v744, 0.0
        %v747 = vadd.f32 %v745, 0.0
        %v749 = vrot.slane %v655, 6
        %v751 = vsel %vm709, 0, %v749
        %v753 = vunpack.c.l.bf16 %v751
        %v754 = vunpack.c.h.bf16 %v751
        %v755 = vlaneseq
        %v756 = vshrl.u32 %v755, 7
        %v757 = vsub.s32 1, %v756
        %v758 = vrot.slane %v705, %v757
        %v759 = vmul.f32 %v753, %v758
        %v760 = vmul.f32 %v754, %v758
        %v761 = vadd.f32 %v746, %v759
        %v762 = vadd.f32 %v747, %v760
        %v763 = vunpack.c.l.bf16 %v712
        %v764 = vunpack.c.h.bf16 %v712
        %v765 = vlaneseq
        %v766 = vshrl.u32 %v765, 7
        %v767 = vsub.s32 2, %v766
        %v768 = vrot.slane %v705, %v767
        %v769 = vmul.f32 %v763, %v768
        %v770 = vmul.f32 %v764, %v768
        %v771 = vadd.f32 %v761, %v769
        %v772 = vadd.f32 %v762, %v770
        %v774 = vshrl.u32 %v606, 16
        %v776 = vrot.slane %v774, 7
        %v777 = vshll.u32 %v606, 16
        %v779 = vor.u32 %v776, %v777
        %v781 = vsel %vm723, 0, %v779
        %v782 = vsel %vm736, %v781, 0
        %v783 = vunpack.c.l.bf16 %v782
        %v784 = vunpack.c.h.bf16 %v782
        %v785 = vlaneseq
        %v786 = vshrl.u32 %v785, 7
        %v787 = vsub.s32 3, %v786
        %v788 = vrot.slane %v705, %v787
        %v789 = vmul.f32 %v783, %v788
        %v790 = vmul.f32 %v784, %v788
        %v791 = vadd.f32 %v771, %v789
        %v792 = vadd.f32 %v772, %v790
        %v793 = vunpack.c.l.bf16 %v557
        %v794 = vunpack.c.h.bf16 %v557
        %v795 = vlaneseq
        %v796 = vshrl.u32 %v795, 7
        %v797 = vsub.s32 4, %v796
        %v798 = vrot.slane %v705, %v797
        %v799 = vmul.f32 %v793, %v798
        %v800 = vmul.f32 %v794, %v798
        %v801 = vadd.f32 %v791, %v799
        %v802 = vadd.f32 %v792, %v800
        %v803 = vunpack.c.l.bf16 %v606
        %v804 = vunpack.c.h.bf16 %v606
        %v805 = vlaneseq
        %v806 = vshrl.u32 %v805, 7
        %v807 = vsub.s32 5, %v806
        %v808 = vrot.slane %v705, %v807
        %v809 = vmul.f32 %v803, %v808
        %v810 = vmul.f32 %v804, %v808
        %v811 = vadd.f32 %v801, %v809
        %v812 = vadd.f32 %v802, %v810
        %v814 = vshrl.u32 %v704, 16
        %v816 = vrot.slane %v814, 7
        %v817 = vshll.u32 %v704, 16
        %v819 = vor.u32 %v816, %v817
        %v821 = vsel %vm723, 0, %v819
        %v822 = vsel %vm736, %v821, 0
        %v823 = vunpack.c.l.bf16 %v822
        %v824 = vunpack.c.h.bf16 %v822
        %v825 = vlaneseq
        %v826 = vshrl.u32 %v825, 7
        %v827 = vsub.s32 6, %v826
        %v828 = vrot.slane %v705, %v827
        %v829 = vmul.f32 %v823, %v828
        %v830 = vmul.f32 %v824, %v828
        %v831 = vadd.f32 %v811, %v829
        %v832 = vadd.f32 %v812, %v830
        %v833 = vunpack.c.l.bf16 %v655
        %v834 = vunpack.c.h.bf16 %v655
        %v835 = vlaneseq
        %v836 = vshrl.u32 %v835, 7
        %v837 = vsub.s32 7, %v836
        %v838 = vrot.slane %v705, %v837
        %v839 = vmul.f32 %v833, %v838
        %v840 = vmul.f32 %v834, %v838
        %v841 = vadd.f32 %v831, %v839
        %v842 = vadd.f32 %v832, %v840
        %v843 = vunpack.c.l.bf16 %v704
        %v844 = vunpack.c.h.bf16 %v704
        %v845 = vlaneseq
        %v846 = vshrl.u32 %v845, 7
        %v847 = vsub.s32 0, %v846
        %v848 = vrot.slane %v706, %v847
        %v849 = vmul.f32 %v843, %v848
        %v850 = vmul.f32 %v844, %v848
        %v851 = vadd.f32 %v841, %v849
        %v852 = vadd.f32 %v842, %v850
        %v853 = vld [vmem:[%s4] sm:$0x1]
        %v855 = vlaneseq
        %v856 = vshrl.u32 %v855, 7
        %v857 = vsub.s32 0, %v856
        %v858 = vrot.slane %v853, %v857
        %v860 = vadd.f32 %v851, %v858
        %v861 = vadd.f32 %v852, %v858
        %v862 = vmax.f32 %v860, 0.0
        %v863 = vmax.f32 %v861, 0.0
        %v864 = vpack.c.bf16 %v863, %v862
        %v865 = vld [vmem:[%s5] sm:$0xf]
        %v866 = vld [vmem:[%s5 + $0x4] sm:$0xf]
        %v867 = vld [vmem:[%s5 + $0x8] sm:$0xf]
        %v868 = vld [vmem:[%s5 + $0xc] sm:$0xf]
        %v869 = vld [vmem:[%s5 + $0x10] sm:$0xf]
        %v870 = vld [vmem:[%s5 + $0x14] sm:$0xf]
        %v871 = vld [vmem:[%s6] sm:$0x1]
        %v873 = vlaneseq
        %v874 = vshrl.u32 %v873, 7
        %v875 = vsub.s32 0, %v874
        %v876 = vrot.slane %v871, %v875
        %v884 = vunpack.c.l.b16 %v865
        %v885 = vunpack.c.l.b16 %v866
        %v886 = vunpack.c.l.b16 %v867
        %v887 = vunpack.c.l.b16 %v868
        %v888 = vunpack.c.l.b16 %v869
        %v889 = vunpack.c.l.b16 %v870
        %v890 = vpack.c.b16 %v885, %v884
        %v891 = vpack.c.b16 %v887, %v886
        %v892 = vpack.c.b16 %v889, %v888
        %vm896 = vcmask 392192
        %v898 = vsel %vm896, %v864, 0
        %900 = vmatprep.subr.bf16.mxu0 0
        %901 = vmatpush1.bf16.msra.mxu0 %v890
        %902 = vmatprep.subr.bf16.mxu0 0
        %903 = vmatpush1.bf16.msra.mxu0 %v891
        %904 = vmatprep.subr.bf16.mxu0 0
        %905 = vmatpush1.bf16.msra.mxu0 %v892
        %906 = vmatprep.subr.bf16.mxu0 0
        %907 = vmatpush1.bf16.msra.mxu0 0
        %908 = vmatprep.subr.bf16.mxu0 0
        %909 = vmatpush1.bf16.msra.mxu0 0
        %910 = vmatprep.subr.bf16.mxu0 0
        %911 = vmatpush1.bf16.msra.mxu0 0
        %912 = vmatprep.subr.bf16.mxu0 0
        %913 = vmatpush1.bf16.msra.mxu0 0
        %914 = vmatprep.subr.bf16.mxu0 0
        %915 = vmatpush1.bf16.msra.mxu0 0
        %916 = vmatprep.subr.bf16.mxu0 0
        %917 = vmatpush1.bf16.msra.mxu0 0
        %918 = vmatprep.subr.bf16.mxu0 0
        %919 = vmatpush1.bf16.msra.mxu0 0
        %920 = vmatprep.subr.bf16.mxu0 0
        %921 = vmatpush1.bf16.msra.mxu0 0
        %922 = vmatprep.subr.bf16.mxu0 0
        %923 = vmatpush1.bf16.msra.mxu0 0
        %924 = vmatprep.subr.bf16.mxu0 0
        %925 = vmatpush1.bf16.msra.mxu0 0
        %926 = vmatprep.subr.bf16.mxu0 0
        %927 = vmatpush1.bf16.msra.mxu0 0
        %928 = vmatprep.subr.bf16.mxu0 0
        %929 = vmatpush1.bf16.msra.mxu0 0
        %930 = vmatprep.subr.bf16.mxu0 0
        %931 = vmatpush1.bf16.msra.mxu0 0
        %932 = vmatprep.mubr.bf16.mxu0 0
        %933 = vmatmul.mubr.bf16.gmra.mrb[0].mxu0 %v898
        %v934 = vpop.f32.mrb[0].mxu0
        %v935 = vadd.f32 %v876, %v934
        %v936 = vpop.f32.mrb[0].mxu0
        %v937 = vpop.f32.mrb[0].mxu0
        %v938 = vadd.f32 %v876, %v937
        %v939 = vpop.f32.mrb[0].mxu0
        %940 = vdwg.mxu0
        %vm941 = vcmask 261120
        %v942 = vsel %vm941, %v935, 0.0
        %v943 = vsel %vm941, %v938, 0.0
        %v944 = vadd.f32 %v942, %v943
        %v945 = vrot.slane %v944, 4
        %v946 = vadd.f32 %v944, %v945
        %v947 = vrot.slane %v946, 2
        %v948 = vadd.f32 %v946, %v947
        %v949 = vrot.slane %v948, 1
        %v950 = vadd.f32 %v948, %v949
        %v951 = vrcp.pop 16.0
        %v952 = vmul.f32 %v950, %v951
        %vm953 = vcmask 253952
        %954 = vst.msk [vmem:[%s450] sm:$0x1] %vm953, %v952
        %v955 = vpack.c.bf16 %v938, %v935
        %v956 = vld [vmem:[%s7] sm:$0xf]
        %v957 = vld [vmem:[%s7 + $0x4] sm:$0xf]
        %v958 = vld [vmem:[%s7 + $0x8] sm:$0xf]
        %v959 = vld [vmem:[%s7 + $0xc] sm:$0xf]
        %v960 = vld [vmem:[%s8] sm:$0x1]
        %v962 = vlaneseq
        %v963 = vshrl.u32 %v962, 7
        %v964 = vsub.s32 0, %v963
        %v965 = vrot.slane %v960, %v964
        %v971 = vunpack.c.l.b16 %v956
        %v972 = vunpack.c.l.b16 %v957
        %v973 = vunpack.c.l.b16 %v958
        %v974 = vunpack.c.l.b16 %v959
        %v975 = vpack.c.b16 %v972, %v971
        %v976 = vpack.c.b16 %v974, %v973
        %v980 = vsel %vm941, %v955, 0
        %982 = vmatprep.subr.bf16.mxu0 0
        %983 = vmatpush1.bf16.msra.mxu0 %v975
        %984 = vmatprep.subr.bf16.mxu0 0
        %985 = vmatpush1.bf16.msra.mxu0 %v976
        %986 = vmatprep.subr.bf16.mxu0 0
        %987 = vmatpush1.bf16.msra.mxu0 0
        %988 = vmatprep.subr.bf16.mxu0 0
        %989 = vmatpush1.bf16.msra.mxu0 0
        %990 = vmatprep.subr.bf16.mxu0 0
        %991 = vmatpush1.bf16.msra.mxu0 0
        %992 = vmatprep.subr.bf16.mxu0 0
        %993 = vmatpush1.bf16.msra.mxu0 0
        %994 = vmatprep.subr.bf16.mxu0 0
        %995 = vmatpush1.bf16.msra.mxu0 0
        %996 = vmatprep.subr.bf16.mxu0 0
        %997 = vmatpush1.bf16.msra.mxu0 0
        %998 = vmatprep.subr.bf16.mxu0 0
        %999 = vmatpush1.bf16.msra.mxu0 0
        %1000 = vmatprep.subr.bf16.mxu0 0
        %1001 = vmatpush1.bf16.msra.mxu0 0
        %1002 = vmatprep.subr.bf16.mxu0 0
        %1003 = vmatpush1.bf16.msra.mxu0 0
        %1004 = vmatprep.subr.bf16.mxu0 0
        %1005 = vmatpush1.bf16.msra.mxu0 0
        %1006 = vmatprep.subr.bf16.mxu0 0
        %1007 = vmatpush1.bf16.msra.mxu0 0
        %1008 = vmatprep.subr.bf16.mxu0 0
        %1009 = vmatpush1.bf16.msra.mxu0 0
        %1010 = vmatprep.subr.bf16.mxu0 0
        %1011 = vmatpush1.bf16.msra.mxu0 0
        %1012 = vmatprep.subr.bf16.mxu0 0
        %1013 = vmatpush1.bf16.msra.mxu0 0
        %1014 = vmatprep.mubr.bf16.mxu0 0
        %1015 = vmatmul.mubr.bf16.gmra.mrb[0].mxu0 %v980
        %v1016 = vpop.f32.mrb[0].mxu0
        %v1017 = vadd.f32 %v965, %v1016
        %v1018 = vpop.f32.mrb[0].mxu0
        %v1019 = vpop.f32.mrb[0].mxu0
        %v1020 = vadd.f32 %v965, %v1019
        %v1021 = vpop.f32.mrb[0].mxu0
        %1022 = vdwg.mxu0
        %vm1023 = vcmask 531456
        %1024 = vst.msk [vmem:[%s437] sm:$0xff] %vm1023, %v1017
        %1025 = vst.msk [vmem:[%s437 + $0x8] sm:$0xff] %vm1023, %v1020
        %v1026 = vld [vmem:[%s9] sm:$0xf]
        %v1027 = vld [vmem:[%s9 + $0x4] sm:$0xf]
        %v1028 = vld [vmem:[%s9 + $0x8] sm:$0xf]
        %v1029 = vld [vmem:[%s9 + $0xc] sm:$0xf]
        %v1030 = vld [vmem:[%s10] sm:$0x1]
        %v1032 = vlaneseq
        %v1033 = vshrl.u32 %v1032, 7
        %v1034 = vsub.s32 0, %v1033
        %v1035 = vrot.slane %v1030, %v1034
        %v1041 = vunpack.c.l.b16 %v1026
        %v1042 = vunpack.c.l.b16 %v1027
        %v1043 = vunpack.c.l.b16 %v1028
        %v1044 = vunpack.c.l.b16 %v1029
        %v1045 = vpack.c.b16 %v1042, %v1041
        %v1046 = vpack.c.b16 %v1044, %v1043
        %1049 = vmatprep.subr.bf16.mxu0 0
        %1050 = vmatpush1.bf16.msra.mxu0 %v1045
        %1051 = vmatprep.subr.bf16.mxu0 0
        %1052 = vmatpush1.bf16.msra.mxu0 %v1046
        %1053 = vmatprep.subr.bf16.mxu0 0
        %1054 = vmatpush1.bf16.msra.mxu0 0
        %1055 = vmatprep.subr.bf16.mxu0 0
        %1056 = vmatpush1.bf16.msra.mxu0 0
        %1057 = vmatprep.subr.bf16.mxu0 0
        %1058 = vmatpush1.bf16.msra.mxu0 0
        %1059 = vmatprep.subr.bf16.mxu0 0
        %1060 = vmatpush1.bf16.msra.mxu0 0
        %1061 = vmatprep.subr.bf16.mxu0 0
        %1062 = vmatpush1.bf16.msra.mxu0 0
        %1063 = vmatprep.subr.bf16.mxu0 0
        %1064 = vmatpush1.bf16.msra.mxu0 0
        %1065 = vmatprep.subr.bf16.mxu0 0
        %1066 = vmatpush1.bf16.msra.mxu0 0
        %1067 = vmatprep.subr.bf16.mxu0 0
        %1068 = vmatpush1.bf16.msra.mxu0 0
        %1069 = vmatprep.subr.bf16.mxu0 0
        %1070 = vmatpush1.bf16.msra.mxu0 0
        %1071 = vmatprep.subr.bf16.mxu0 0
        %1072 = vmatpush1.bf16.msra.mxu0 0
        %1073 = vmatprep.subr.bf16.mxu0 0
        %1074 = vmatpush1.bf16.msra.mxu0 0
        %1075 = vmatprep.subr.bf16.mxu0 0
        %1076 = vmatpush1.bf16.msra.mxu0 0
        %1077 = vmatprep.subr.bf16.mxu0 0
        %1078 = vmatpush1.bf16.msra.mxu0 0
        %1079 = vmatprep.subr.bf16.mxu0 0
        %1080 = vmatpush1.bf16.msra.mxu0 0
        %1081 = vmatprep.mubr.bf16.mxu0 0
        %1082 = vmatmul.mubr.bf16.gmra.mrb[0].mxu0 %v980
        %v1083 = vpop.f32.mrb[0].mxu0
        %v1084 = vadd.f32 %v1035, %v1083
        %v1085 = vpop.f32.mrb[0].mxu0
        %v1086 = vpop.f32.mrb[0].mxu0
        %v1087 = vadd.f32 %v1035, %v1086
        %v1088 = vpop.f32.mrb[0].mxu0
        %1089 = vdwg.mxu0
        %vm1090 = vcmask 523264
        %1091 = vst.msk [vmem:[%s444] sm:$0xff] %vm1090, %v1084
        %1092 = vst.msk [vmem:[%s444 + $0x8] sm:$0xff] %vm1090, %v1087
        %s1093 = sand.u32 %s275, 1
        %s1094 = scalar_lea.sflag [#allocation3], %s1093
        %s1095 = sand.u32 %s275, 1
        %s1096 = smul.addr %s1095, 16
        %s1097 = scalar_lea.vmem [#allocation2], %s1096
        %s1098 = sand.u32 %s31, 1
        %s1099 = scalar_lea.sflag [#allocation5], %s1098
        %s1100 = sand.u32 %s301, 1
        %s1101 = smul.addr %s1100, 16
        %s1102 = scalar_lea.vmem [#allocation4], %s1101
        %s1103 = sand.u32 %s31, 1
        %s1104 = scalar_lea.sflag [#allocation5], %s1103
        %s1105 = sand.u32 %s327, 1
        %s1106 = scalar_lea.vmem [#allocation6], %s1105
        // Predicated region
        $region65: #{forward.3} parent=63 // pred_check
          %p1107 = pneg %p285
        $region66: #{forward.3} parent=63 // pred_check_branch
          %1109 = sbr.rel (%p1107) target = $region68
        $region67: #{forward.3} parent=63 // pred_region
          %s1111 = ssub.s32 256, 256
          %1112 = vsyncadd %s1094, %s1111
          %s1113 = smul.addr %s31, 2
          %s1114 = smul.addr %s1113, 128
          %s1115 = scalar_lea.hbm %s11, %s1114
          %s1116 = sshll.u32 %s1097, 4
          %s1117 = int_to_ptr.vmem [resolvable:$true] %s1116
          %1122 = dma.vmem_to_hbm [thread:$0]  %s1117, 256, %s1115, %s1094, 128, 128, 8
        $region68: #{forward.3} parent=63 // pred_fallthru
          _
        // Predicated region
        $region69: #{forward.3} parent=63 // pred_check
          %p1123 = pneg %p311
        $region70: #{forward.3} parent=63 // pred_check_branch
          %1125 = sbr.rel (%p1123) target = $region72
        $region71: #{forward.3} parent=63 // pred_region
          %s1127 = ssub.s32 256, 256
          %1128 = vsyncadd %s1099, %s1127
          %s1129 = smul.addr %s31, 2
          %s1130 = smul.addr %s1129, 128
          %s1131 = scalar_lea.hbm %s12, %s1130
          %s1132 = sshll.u32 %s1102, 4
          %s1133 = int_to_ptr.vmem [resolvable:$true] %s1132
          %1138 = dma.vmem_to_hbm [thread:$0]  %s1133, 256, %s1131, %s1099, 128, 128, 8
        $region72: #{forward.3} parent=63 // pred_fallthru
          _
        // Predicated region
        $region73: #{forward.3} parent=63 // pred_check
          %p1139 = pneg %p337
        $region74: #{forward.3} parent=63 // pred_check_branch
          %1141 = sbr.rel (%p1139) target = $region76
        $region75: #{forward.3} parent=63 // pred_region
          %s1143 = ssub.s32 16, 16
          %1144 = vsyncadd %s1104, %s1143
          %s1145 = smul.addr %s31, 16
          %s1146 = scalar_lea.hbm %s13, %s1145
          %s1148 = sshll.u32 %s1106, 4
          %s1149 = int_to_ptr.vmem [resolvable:$true] %s1148
          %1151 = dma.vmem_to_hbm [thread:$0]  %s1149, 16, %s1146, %s1104
        $region76: #{forward.3} parent=63 // pred_fallthru
          _
      $region64: #{forward.3} parent=5 // pred_fallthru
        _
      %p1152 = scmp.le.s32.totalorder 2, %s26
      // Predicated region
      $region77: #{forward.3} parent=5 // pred_check
        %p1153 = pneg %p1152
      $region78: #{forward.3} parent=5 // pred_check_branch
        %1155 = sbr.rel (%p1153) target = $region80
      $region79: #{forward.3} parent=5 // pred_region
        %s1156 = ssub.s32 %s26, 2
        // Predicated region
        $region81: #{forward.3} parent=79 // pred_check
          %p1157 = pneg %p291
        $region82: #{forward.3} parent=79 // pred_check_branch
          %1159 = sbr.rel (%p1157) target = $region84
        $region83: #{forward.3} parent=79 // pred_region
          %s1160 = sand.u32 %s276, 1
          %s1161 = scalar_lea.sflag [#allocation3], %s1160
          %s1162 = sand.u32 %s276, 1
          %s1163 = smul.addr %s1162, 16
          %s1164 = scalar_lea.vmem [#allocation2], %s1163
          %1165 = dma.done %s1161, 256
        $region84: #{forward.3} parent=79 // pred_fallthru
          _
        // Predicated region
        $region85: #{forward.3} parent=79 // pred_check
          %p1166 = pneg %p317
        $region86: #{forward.3} parent=79 // pred_check_branch
          %1168 = sbr.rel (%p1166) target = $region88
        $region87: #{forward.3} parent=79 // pred_region
          %s1169 = sand.u32 %s32, 1
          %s1170 = scalar_lea.sflag [#allocation5], %s1169
          %s1171 = sand.u32 %s302, 1
          %s1172 = smul.addr %s1171, 16
          %s1173 = scalar_lea.vmem [#allocation4], %s1172
          %1174 = dma.done %s1170, 256
        $region88: #{forward.3} parent=79 // pred_fallthru
          _
        // Predicated region
        $region89: #{forward.3} parent=79 // pred_check
          %p1175 = pneg %p343
        $region90: #{forward.3} parent=79 // pred_check_branch
          %1177 = sbr.rel (%p1175) target = $region92
        $region91: #{forward.3} parent=79 // pred_region
          %s1178 = sand.u32 %s32, 1
          %s1179 = scalar_lea.sflag [#allocation5], %s1178
          %s1180 = sand.u32 %s328, 1
          %s1181 = scalar_lea.vmem [#allocation6], %s1180
          %1182 = dma.done %s1179, 16
        $region92: #{forward.3} parent=79 // pred_fallthru
          _
      $region80: #{forward.3} parent=5 // pred_fallthru
        _
    $region6: #{forward.3} parent=1 // loop_footer
      %s30 = sadd.s32 1, %s26
    $region7: #{forward.3} parent=1 // loop_footer_branch
      %25 = sbr.rel target = $region3
    $region8: #{forward.3} parent=1 // loop_exit
      _
    %1183 = vsyncpa [#allocation3], 1
    %s1184 = scalar_lea.sflag [#allocation3], 1
    %1185 = vsyncpa %s1184, 1
    %1186 = vsyncpa [#allocation5], 1
    %s1187 = scalar_lea.sflag [#allocation5], 1
    %1188 = vsyncpa %s1187, 1

// kernel: forward.2
$region0: #{forward.2}
  #allocation0 [shape = 'u32[]', space=smem, size = 0x4, offset = 0x4, fixed_abs, tag = 'smem constant byte address 0x4 - core index']
  #allocation1 [shape = 'u32[144,128]{1,0:T(1,128)}', space=vmem, size = 0x12000, scoped, tag = 'internal scratch']
  %s0 = inlined_call_operand.vmem [shape: f32[2,64,12], index: 0, kind: input, shape index: {}]
  %s1 = inlined_call_operand.vmem [shape: f32[12,16], index: 1, kind: input, shape index: {}]
  %s2 = inlined_call_operand.vmem [shape: f32[12,16], index: 2, kind: input, shape index: {}]
  %s3 = inlined_call_operand.vmem [shape: f32[12,16], index: 3, kind: input, shape index: {}]
  %s4 = inlined_call_operand.vmem [shape: f32[12,16], index: 4, kind: input, shape index: {}]
  %s5 = inlined_call_operand.vmem [shape: f32[1,16], index: 5, kind: input, shape index: {}]
  %s6 = inlined_call_operand.vmem [shape: bf16[16,32], index: 6, kind: input, shape index: {}]
  %s7 = inlined_call_operand.vmem [shape: f32[1,32], index: 7, kind: input, shape index: {}]
  %s8 = inlined_call_operand.vmem [shape: f32[9,32], index: 8, kind: input, shape index: {}]
  %s9 = inlined_call_operand.vmem [shape: f32[1,32], index: 9, kind: input, shape index: {}]
  %s10 = inlined_call_operand.vmem [shape: bf16[32,16], index: 10, kind: input, shape index: {}]
  %s11 = inlined_call_operand.vmem [shape: f32[1,16], index: 11, kind: input, shape index: {}]
  %s12 = inlined_call_operand.vmem [shape: bf16[2,64,16], index: 12, kind: output, shape index: {}]
  %s13 = sld [smem:[#allocation0]]
  $region81: #{forward.2} parent=0
    _
  %s15 = ssub.s32 1, %s13
  %s16 = scalar_select 0, %s15, %s13
  loop: start=0, step=1, limit=4
  $region2: #{forward.2} parent=0 // loop_pre_header
    _
  $region3: #{forward.2} parent=0 // loop_header
    %s18 = sphi 0, %s22
    %p19 = scmp.ge.s32.totalorder %s18, 4
    %s28 = sphi 0, %s30
    %s31 = sphi 0, %s28
    %s32 = sphi 0, %s31
    %s48 = sphi 0, %s32
    %s52 = sphi 0, %s52
    %s54 = sphi 0, %s52
    %s55 = sphi 0, %s54
    %s69 = sphi 0, %s55
    %s73 = sphi 0, %s73
    %s75 = sphi 0, %s73
    %s76 = sphi 0, %s75
    %s90 = sphi 0, %s76
    %s94 = sphi 0, %s94
    %s96 = sphi 0, %s94
    %s97 = sphi 0, %s96
    %s111 = sphi 0, %s97
    %s115 = sphi 0, %s115
    %s117 = sphi 0, %s115
    %s118 = sphi 0, %s117
    %s132 = sphi 0, %s118
    %s136 = sphi 0, %s136
    %s138 = sphi 0, %s136
    %s139 = sphi 0, %s138
    %s153 = sphi 0, %s139
    %s157 = sphi 0, %s157
    %s159 = sphi 0, %s157
    %s160 = sphi 0, %s159
    %s174 = sphi 0, %s160
    %s178 = sphi 0, %s178
    %s180 = sphi 0, %s178
    %s181 = sphi 0, %s180
    %s195 = sphi 0, %s181
    %s199 = sphi 0, %s199
    %s201 = sphi 0, %s199
    %s202 = sphi 0, %s201
    %s216 = sphi 0, %s202
    %s220 = sphi 0, %s220
    %s222 = sphi 0, %s220
    %s223 = sphi 0, %s222
    %s237 = sphi 0, %s223
    %s241 = sphi 0, %s241
    %s243 = sphi 0, %s241
    %s244 = sphi 0, %s243
    %s258 = sphi 0, %s244
    %s262 = sphi 0, %s262
    %s264 = sphi 0, %s262
    %s265 = sphi 0, %s264
    %s279 = sphi 0, %s265
    %s285 = sphi 0, %s287
    %s288 = sphi 0, %s285
    %s289 = sphi 0, %s288
    %s305 = sphi 0, %s289
  $region4: #{forward.2} parent=0 // loop_header_branch
    %21 = sbr.rel (%p19) target = $region8
  $region5: #{forward.2} parent=0 // loop_body
    %s23 = ssub.s32 %s18, 1
    %s24 = ssub.s32 %s18, 2
    %s25 = sadd.s32 %s18, 1
    %s26 = ssub.s32 %s18, %s25
    %p27 = scmp.eq.s32.totalorder %s26, 0
    %s29 = sadd.s32 %s28, 1
    %s30 = scalar_select %p27, %s28, %s29
    %p33 = pneg %p27
    %p34 = scmp.eq.s32.totalorder %s18, 1
    %p35 = por %p33, %p34
    %p36 = scmp.ne.s32.totalorder %s28, %s31
    %p37 = scmp.eq.s32.totalorder %s18, 0
    %p38 = por %p36, %p37
    %p39 = scmp.ne.s32.totalorder %s28, %s31
    %p40 = scmp.eq.s32.totalorder %s23, 1
    %p41 = por %p39, %p40
    %p42 = scmp.ne.s32.totalorder %s31, %s32
    %p43 = scmp.eq.s32.totalorder %s23, 0
    %p44 = por %p42, %p43
    %p45 = scmp.ne.s32.totalorder %s31, %s32
    %p46 = scmp.eq.s32.totalorder %s24, 1
    %p47 = por %p45, %p46
    %p49 = scmp.ne.s32.totalorder %s32, %s48
    %p50 = scmp.eq.s32.totalorder %s24, 0
    %p51 = por %p49, %p50
    %s53 = sadd.s32 %s52, 1
    %p56 = scmp.eq.s32.totalorder %s18, 1
    %p57 = scmp.ne.s32.totalorder %s52, %s54
    %p58 = scmp.eq.s32.totalorder %s18, 0
    %p59 = por %p57, %p58
    %p60 = scmp.ne.s32.totalorder %s52, %s54
    %p61 = scmp.eq.s32.totalorder %s23, 1
    %p62 = por %p60, %p61
    %p63 = scmp.ne.s32.totalorder %s54, %s55
    %p64 = scmp.eq.s32.totalorder %s23, 0
    %p65 = por %p63, %p64
    %p66 = scmp.ne.s32.totalorder %s54, %s55
    %p67 = scmp.eq.s32.totalorder %s24, 1
    %p68 = por %p66, %p67
    %p70 = scmp.ne.s32.totalorder %s55, %s69
    %p71 = scmp.eq.s32.totalorder %s24, 0
    %p72 = por %p70, %p71
    %s74 = sadd.s32 %s73, 1
    %p77 = scmp.eq.s32.totalorder %s18, 1
    %p78 = scmp.ne.s32.totalorder %s73, %s75
    %p79 = scmp.eq.s32.totalorder %s18, 0
    %p80 = por %p78, %p79
    %p81 = scmp.ne.s32.totalorder %s73, %s75
    %p82 = scmp.eq.s32.totalorder %s23, 1
    %p83 = por %p81, %p82
    %p84 = scmp.ne.s32.totalorder %s75, %s76
    %p85 = scmp.eq.s32.totalorder %s23, 0
    %p86 = por %p84, %p85
    %p87 = scmp.ne.s32.totalorder %s75, %s76
    %p88 = scmp.eq.s32.totalorder %s24, 1
    %p89 = por %p87, %p88
    %p91 = scmp.ne.s32.totalorder %s76, %s90
    %p92 = scmp.eq.s32.totalorder %s24, 0
    %p93 = por %p91, %p92
    %s95 = sadd.s32 %s94, 1
    %p98 = scmp.eq.s32.totalorder %s18, 1
    %p99 = scmp.ne.s32.totalorder %s94, %s96
    %p100 = scmp.eq.s32.totalorder %s18, 0
    %p101 = por %p99, %p100
    %p102 = scmp.ne.s32.totalorder %s94, %s96
    %p103 = scmp.eq.s32.totalorder %s23, 1
    %p104 = por %p102, %p103
    %p105 = scmp.ne.s32.totalorder %s96, %s97
    %p106 = scmp.eq.s32.totalorder %s23, 0
    %p107 = por %p105, %p106
    %p108 = scmp.ne.s32.totalorder %s96, %s97
    %p109 = scmp.eq.s32.totalorder %s24, 1
    %p110 = por %p108, %p109
    %p112 = scmp.ne.s32.totalorder %s97, %s111
    %p113 = scmp.eq.s32.totalorder %s24, 0
    %p114 = por %p112, %p113
    %s116 = sadd.s32 %s115, 1
    %p119 = scmp.eq.s32.totalorder %s18, 1
    %p120 = scmp.ne.s32.totalorder %s115, %s117
    %p121 = scmp.eq.s32.totalorder %s18, 0
    %p122 = por %p120, %p121
    %p123 = scmp.ne.s32.totalorder %s115, %s117
    %p124 = scmp.eq.s32.totalorder %s23, 1
    %p125 = por %p123, %p124
    %p126 = scmp.ne.s32.totalorder %s117, %s118
    %p127 = scmp.eq.s32.totalorder %s23, 0
    %p128 = por %p126, %p127
    %p129 = scmp.ne.s32.totalorder %s117, %s118
    %p130 = scmp.eq.s32.totalorder %s24, 1
    %p131 = por %p129, %p130
    %p133 = scmp.ne.s32.totalorder %s118, %s132
    %p134 = scmp.eq.s32.totalorder %s24, 0
    %p135 = por %p133, %p134
    %s137 = sadd.s32 %s136, 1
    %p140 = scmp.eq.s32.totalorder %s18, 1
    %p141 = scmp.ne.s32.totalorder %s136, %s138
    %p142 = scmp.eq.s32.totalorder %s18, 0
    %p143 = por %p141, %p142
    %p144 = scmp.ne.s32.totalorder %s136, %s138
    %p145 = scmp.eq.s32.totalorder %s23, 1
    %p146 = por %p144, %p145
    %p147 = scmp.ne.s32.totalorder %s138, %s139
    %p148 = scmp.eq.s32.totalorder %s23, 0
    %p149 = por %p147, %p148
    %p150 = scmp.ne.s32.totalorder %s138, %s139
    %p151 = scmp.eq.s32.totalorder %s24, 1
    %p152 = por %p150, %p151
    %p154 = scmp.ne.s32.totalorder %s139, %s153
    %p155 = scmp.eq.s32.totalorder %s24, 0
    %p156 = por %p154, %p155
    %s158 = sadd.s32 %s157, 1
    %p161 = scmp.eq.s32.totalorder %s18, 1
    %p162 = scmp.ne.s32.totalorder %s157, %s159
    %p163 = scmp.eq.s32.totalorder %s18, 0
    %p164 = por %p162, %p163
    %p165 = scmp.ne.s32.totalorder %s157, %s159
    %p166 = scmp.eq.s32.totalorder %s23, 1
    %p167 = por %p165, %p166
    %p168 = scmp.ne.s32.totalorder %s159, %s160
    %p169 = scmp.eq.s32.totalorder %s23, 0
    %p170 = por %p168, %p169
    %p171 = scmp.ne.s32.totalorder %s159, %s160
    %p172 = scmp.eq.s32.totalorder %s24, 1
    %p173 = por %p171, %p172
    %p175 = scmp.ne.s32.totalorder %s160, %s174
    %p176 = scmp.eq.s32.totalorder %s24, 0
    %p177 = por %p175, %p176
    %s179 = sadd.s32 %s178, 1
    %p182 = scmp.eq.s32.totalorder %s18, 1
    %p183 = scmp.ne.s32.totalorder %s178, %s180
    %p184 = scmp.eq.s32.totalorder %s18, 0
    %p185 = por %p183, %p184
    %p186 = scmp.ne.s32.totalorder %s178, %s180
    %p187 = scmp.eq.s32.totalorder %s23, 1
    %p188 = por %p186, %p187
    %p189 = scmp.ne.s32.totalorder %s180, %s181
    %p190 = scmp.eq.s32.totalorder %s23, 0
    %p191 = por %p189, %p190
    %p192 = scmp.ne.s32.totalorder %s180, %s181
    %p193 = scmp.eq.s32.totalorder %s24, 1
    %p194 = por %p192, %p193
    %p196 = scmp.ne.s32.totalorder %s181, %s195
    %p197 = scmp.eq.s32.totalorder %s24, 0
    %p198 = por %p196, %p197
    %s200 = sadd.s32 %s199, 1
    %p203 = scmp.eq.s32.totalorder %s18, 1
    %p204 = scmp.ne.s32.totalorder %s199, %s201
    %p205 = scmp.eq.s32.totalorder %s18, 0
    %p206 = por %p204, %p205
    %p207 = scmp.ne.s32.totalorder %s199, %s201
    %p208 = scmp.eq.s32.totalorder %s23, 1
    %p209 = por %p207, %p208
    %p210 = scmp.ne.s32.totalorder %s201, %s202
    %p211 = scmp.eq.s32.totalorder %s23, 0
    %p212 = por %p210, %p211
    %p213 = scmp.ne.s32.totalorder %s201, %s202
    %p214 = scmp.eq.s32.totalorder %s24, 1
    %p215 = por %p213, %p214
    %p217 = scmp.ne.s32.totalorder %s202, %s216
    %p218 = scmp.eq.s32.totalorder %s24, 0
    %p219 = por %p217, %p218
    %s221 = sadd.s32 %s220, 1
    %p224 = scmp.eq.s32.totalorder %s18, 1
    %p225 = scmp.ne.s32.totalorder %s220, %s222
    %p226 = scmp.eq.s32.totalorder %s18, 0
    %p227 = por %p225, %p226
    %p228 = scmp.ne.s32.totalorder %s220, %s222
    %p229 = scmp.eq.s32.totalorder %s23, 1
    %p230 = por %p228, %p229
    %p231 = scmp.ne.s32.totalorder %s222, %s223
    %p232 = scmp.eq.s32.totalorder %s23, 0
    %p233 = por %p231, %p232
    %p234 = scmp.ne.s32.totalorder %s222, %s223
    %p235 = scmp.eq.s32.totalorder %s24, 1
    %p236 = por %p234, %p235
    %p238 = scmp.ne.s32.totalorder %s223, %s237
    %p239 = scmp.eq.s32.totalorder %s24, 0
    %p240 = por %p238, %p239
    %s242 = sadd.s32 %s241, 1
    %p245 = scmp.eq.s32.totalorder %s18, 1
    %p246 = scmp.ne.s32.totalorder %s241, %s243
    %p247 = scmp.eq.s32.totalorder %s18, 0
    %p248 = por %p246, %p247
    %p249 = scmp.ne.s32.totalorder %s241, %s243
    %p250 = scmp.eq.s32.totalorder %s23, 1
    %p251 = por %p249, %p250
    %p252 = scmp.ne.s32.totalorder %s243, %s244
    %p253 = scmp.eq.s32.totalorder %s23, 0
    %p254 = por %p252, %p253
    %p255 = scmp.ne.s32.totalorder %s243, %s244
    %p256 = scmp.eq.s32.totalorder %s24, 1
    %p257 = por %p255, %p256
    %p259 = scmp.ne.s32.totalorder %s244, %s258
    %p260 = scmp.eq.s32.totalorder %s24, 0
    %p261 = por %p259, %p260
    %s263 = sadd.s32 %s262, 1
    %p266 = scmp.eq.s32.totalorder %s18, 1
    %p267 = scmp.ne.s32.totalorder %s262, %s264
    %p268 = scmp.eq.s32.totalorder %s18, 0
    %p269 = por %p267, %p268
    %p270 = scmp.ne.s32.totalorder %s262, %s264
    %p271 = scmp.eq.s32.totalorder %s23, 1
    %p272 = por %p270, %p271
    %p273 = scmp.ne.s32.totalorder %s264, %s265
    %p274 = scmp.eq.s32.totalorder %s23, 0
    %p275 = por %p273, %p274
    %p276 = scmp.ne.s32.totalorder %s264, %s265
    %p277 = scmp.eq.s32.totalorder %s24, 1
    %p278 = por %p276, %p277
    %p280 = scmp.ne.s32.totalorder %s265, %s279
    %p281 = scmp.eq.s32.totalorder %s24, 0
    %p282 = por %p280, %p281
    %s283 = ssub.s32 %s18, %s25
    %p284 = scmp.eq.s32.totalorder %s283, 0
    %s286 = sadd.s32 %s285, 1
    %s287 = scalar_select %p284, %s285, %s286
    %p290 = pneg %p284
    %p291 = scmp.eq.s32.totalorder %s18, 1
    %p292 = por %p290, %p291
    %p293 = scmp.ne.s32.totalorder %s285, %s288
    %p294 = scmp.eq.s32.totalorder %s18, 0
    %p295 = por %p293, %p294
    %p296 = scmp.ne.s32.totalorder %s285, %s288
    %p297 = scmp.eq.s32.totalorder %s23, 1
    %p298 = por %p296, %p297
    %p299 = scmp.ne.s32.totalorder %s288, %s289
    %p300 = scmp.eq.s32.totalorder %s23, 0
    %p301 = por %p299, %p300
    %p302 = scmp.ne.s32.totalorder %s288, %s289
    %p303 = scmp.eq.s32.totalorder %s24, 1
    %p304 = por %p302, %p303
    %p306 = scmp.ne.s32.totalorder %s289, %s305
    %p307 = scmp.eq.s32.totalorder %s24, 0
    %p308 = por %p306, %p307
    %p309 = scmp.le.s32.totalorder 1, %s18
    %p310 = scmp.lt.s32.totalorder %s18, 3
    %p311 = pnand %p309, %p310
    %p312 = pneg %p311
    // Predicated region
    $region9: #{forward.2} parent=5 // pred_check
      _
    $region10: #{forward.2} parent=5 // pred_check_branch
      %314 = sbr.rel (%p311) target = $region12
    $region11: #{forward.2} parent=5 // pred_region
      %s315 = ssub.s32 %s18, 1
      // Predicated region
      $region13: #{forward.2} parent=11 // pred_check
        %p316 = pneg %p65
      $region14: #{forward.2} parent=11 // pred_check_branch
        %318 = sbr.rel (%p316) target = $region16
      $region15: #{forward.2} parent=11 // pred_region
        _
      $region16: #{forward.2} parent=11 // pred_fallthru
        _
      // Predicated region
      $region17: #{forward.2} parent=11 // pred_check
        %p319 = pneg %p86
      $region18: #{forward.2} parent=11 // pred_check_branch
        %321 = sbr.rel (%p319) target = $region20
      $region19: #{forward.2} parent=11 // pred_region
        _
      $region20: #{forward.2} parent=11 // pred_fallthru
        _
      // Predicated region
      $region21: #{forward.2} parent=11 // pred_check
        %p322 = pneg %p107
      $region22: #{forward.2} parent=11 // pred_check_branch
        %324 = sbr.rel (%p322) target = $region24
      $region23: #{forward.2} parent=11 // pred_region
        _
      $region24: #{forward.2} parent=11 // pred_fallthru
        _
      // Predicated region
      $region25: #{forward.2} parent=11 // pred_check
        %p325 = pneg %p128
      $region26: #{forward.2} parent=11 // pred_check_branch
        %327 = sbr.rel (%p325) target = $region28
      $region27: #{forward.2} parent=11 // pred_region
        _
      $region28: #{forward.2} parent=11 // pred_fallthru
        _
      // Predicated region
      $region29: #{forward.2} parent=11 // pred_check
        %p328 = pneg %p149
      $region30: #{forward.2} parent=11 // pred_check_branch
        %330 = sbr.rel (%p328) target = $region32
      $region31: #{forward.2} parent=11 // pred_region
        _
      $region32: #{forward.2} parent=11 // pred_fallthru
        _
      // Predicated region
      $region33: #{forward.2} parent=11 // pred_check
        %p331 = pneg %p170
      $region34: #{forward.2} parent=11 // pred_check_branch
        %333 = sbr.rel (%p331) target = $region36
      $region35: #{forward.2} parent=11 // pred_region
        _
      $region36: #{forward.2} parent=11 // pred_fallthru
        _
      // Predicated region
      $region37: #{forward.2} parent=11 // pred_check
        %p334 = pneg %p191
      $region38: #{forward.2} parent=11 // pred_check_branch
        %336 = sbr.rel (%p334) target = $region40
      $region39: #{forward.2} parent=11 // pred_region
        _
      $region40: #{forward.2} parent=11 // pred_fallthru
        _
      // Predicated region
      $region41: #{forward.2} parent=11 // pred_check
        %p337 = pneg %p212
      $region42: #{forward.2} parent=11 // pred_check_branch
        %339 = sbr.rel (%p337) target = $region44
      $region43: #{forward.2} parent=11 // pred_region
        _
      $region44: #{forward.2} parent=11 // pred_fallthru
        _
      // Predicated region
      $region45: #{forward.2} parent=11 // pred_check
        %p340 = pneg %p233
      $region46: #{forward.2} parent=11 // pred_check_branch
        %342 = sbr.rel (%p340) target = $region48
      $region47: #{forward.2} parent=11 // pred_region
        _
      $region48: #{forward.2} parent=11 // pred_fallthru
        _
      // Predicated region
      $region49: #{forward.2} parent=11 // pred_check
        %p343 = pneg %p254
      $region50: #{forward.2} parent=11 // pred_check_branch
        %345 = sbr.rel (%p343) target = $region52
      $region51: #{forward.2} parent=11 // pred_region
        _
      $region52: #{forward.2} parent=11 // pred_fallthru
        _
      // Predicated region
      $region53: #{forward.2} parent=11 // pred_check
        %p346 = pneg %p275
      $region54: #{forward.2} parent=11 // pred_check_branch
        %348 = sbr.rel (%p346) target = $region56
      $region55: #{forward.2} parent=11 // pred_region
        _
      $region56: #{forward.2} parent=11 // pred_fallthru
        _
    $region12: #{forward.2} parent=5 // pred_fallthru
      _
    %p349 = scmp.lt.s32.totalorder %s18, 2
    // Predicated region
    $region57: #{forward.2} parent=5 // pred_check
      %p350 = pneg %p349
    $region58: #{forward.2} parent=5 // pred_check_branch
      %352 = sbr.rel (%p350) target = $region60
    $region59: #{forward.2} parent=5 // pred_region
      // Predicated region
      $region61: #{forward.2} parent=59 // pred_check
        %p353 = pneg %p38
      $region62: #{forward.2} parent=59 // pred_check_branch
        %355 = sbr.rel (%p353) target = $region64
      $region63: #{forward.2} parent=59 // pred_region
        %p356 = scmp.lt.s32.totalorder %s18, 1
        %s357 = scalar_select %p356, %s18, 1
        %s358 = smul.addr %s357, 8
        %s359 = smul.addr %s358, 8
        %s360 = scalar_lea.vmem %s0, %s359
      $region64: #{forward.2} parent=59 // pred_fallthru
        _
    $region60: #{forward.2} parent=5 // pred_fallthru
      _
    %p361 = scmp.le.s32.totalorder 1, %s18
    %p362 = scmp.lt.s32.totalorder %s18, 3
    %p363 = pnand %p361, %p362
    %p364 = pneg %p363
    // Predicated region
    $region65: #{forward.2} parent=5 // pred_check
      _
    $region66: #{forward.2} parent=5 // pred_check_branch
      %366 = sbr.rel (%p363) target = $region68
    $region67: #{forward.2} parent=5 // pred_region
      %s367 = ssub.s32 %s18, 1
      %p368 = scmp.lt.s32.totalorder %s23, 1
      %s369 = scalar_select %p368, %s23, 1
      %s370 = smul.addr %s369, 8
      %s371 = smul.addr %s370, 8
      %s372 = scalar_lea.vmem %s0, %s371
      %p373 = pneg %p44
      %p374 = pneg %p41
      %p375 = pneg %p65
      %p376 = pneg %p62
      %p377 = pneg %p86
      %p378 = pneg %p83
      %p379 = pneg %p107
      %p380 = pneg %p104
      %p381 = pneg %p128
      %p382 = pneg %p125
      %p383 = pneg %p149
      %p384 = pneg %p146
      %p385 = pneg %p170
      %p386 = pneg %p167
      %p387 = pneg %p191
      %p388 = pneg %p188
      %p389 = pneg %p212
      %p390 = pneg %p209
      %p391 = pneg %p233
      %p392 = pneg %p230
      %p393 = pneg %p254
      %p394 = pneg %p251
      %p395 = pneg %p275
      %p396 = pneg %p272
      %p397 = pneg %p301
      %p398 = pneg %p298
      %p399 = scmp.lt.s32.totalorder %s23, 1
      %s400 = scalar_select %p399, %s23, 1
      %s401 = smul.addr %s400, 8
      %s402 = smul.addr %s401, 4
      %s403 = scalar_lea.vmem %s12, %s402
      %p404 = scmp.lt.s32.totalorder %s23, 1
      %s405 = scalar_select %p404, %s23, 1
      %s406 = smul.addr %s405, 8
      %s407 = smul.addr %s406, 8
      %s408 = scalar_lea.vmem %s0, %s407
      %p409 = scmp.lt.s32.totalorder %s23, 1
      %s410 = scalar_select %p409, %s23, 1
      %s411 = smul.addr %s410, 8
      %s412 = smul.addr %s411, 4
      %s413 = scalar_lea.vmem %s12, %s412
      %v417 = vld [vmem:[%s408] sm:$0xff]
      %v418 = vld [vmem:[%s408 + $0x8] sm:$0xff]
      %v419 = vld [vmem:[%s408 + $0x10] sm:$0xff]
      %v420 = vld [vmem:[%s408 + $0x18] sm:$0xff]
      %v421 = vld [vmem:[%s408 + $0x20] sm:$0xff]
      %v422 = vld [vmem:[%s408 + $0x28] sm:$0xff]
      %v423 = vld [vmem:[%s408 + $0x30] sm:$0xff]
      %v424 = vld [vmem:[%s408 + $0x38] sm:$0xff]
      %v425 = vlaneseq
      %v426 = vshrl.u32 %v425, 7
      %v427 = vadd.s32 %v426, 8
      %v428 = vadd.s32 %v426, 16
      %v429 = vadd.s32 %v426, 24
      %v430 = vadd.s32 %v426, 32
      %v431 = vadd.s32 %v426, 40
      %v432 = vadd.s32 %v426, 48
      %v433 = vadd.s32 %v426, 56
      %vm434 = vcmp.lt.s32.totalorder %v426, 0
      %v435 = vsub.s32 0, %v426
      %v436 = vsel %vm434, %v435, %v426
      %v437 = vshrl.u32 %v436, 3
      %v438 = vand.u32 %v436, 7
      %v439 = vsub.s32 0, %v438
      %v440 = vsel %vm434, %v439, %v438
      %vm441 = vcmp.lt.s32.totalorder %v427, 0
      %v442 = vsub.s32 0, %v427
      %v443 = vsel %vm441, %v442, %v427
      %v444 = vshrl.u32 %v443, 3
      %v445 = vand.u32 %v443, 7
      %v446 = vsub.s32 0, %v445
      %v447 = vsel %vm441, %v446, %v445
      %vm448 = vcmp.lt.s32.totalorder %v428, 0
      %v449 = vsub.s32 0, %v428
      %v450 = vsel %vm448, %v449, %v428
      %v451 = vshrl.u32 %v450, 3
      %v452 = vand.u32 %v450, 7
      %v453 = vsub.s32 0, %v452
      %v454 = vsel %vm448, %v453, %v452
      %vm455 = vcmp.lt.s32.totalorder %v429, 0
      %v456 = vsub.s32 0, %v429
      %v457 = vsel %vm455, %v456, %v429
      %v458 = vshrl.u32 %v457, 3
      %v459 = vand.u32 %v457, 7
      %v460 = vsub.s32 0, %v459
      %v461 = vsel %vm455, %v460, %v459
      %vm462 = vcmp.lt.s32.totalorder %v430, 0
      %v463 = vsub.s32 0, %v430
      %v464 = vsel %vm462, %v463, %v430
      %v465 = vshrl.u32 %v464, 3
      %v466 = vand.u32 %v464, 7
      %v467 = vsub.s32 0, %v466
      %v468 = vsel %vm462, %v467, %v466
      %vm469 = vcmp.lt.s32.totalorder %v431, 0
      %v470 = vsub.s32 0, %v431
      %v471 = vsel %vm469, %v470, %v431
      %v472 = vshrl.u32 %v471, 3
      %v473 = vand.u32 %v471, 7
      %v474 = vsub.s32 0, %v473
      %v475 = vsel %vm469, %v474, %v473
      %vm476 = vcmp.lt.s32.totalorder %v432, 0
      %v477 = vsub.s32 0, %v432
      %v478 = vsel %vm476, %v477, %v432
      %v479 = vshrl.u32 %v478, 3
      %v480 = vand.u32 %v478, 7
      %v481 = vsub.s32 0, %v480
      %v482 = vsel %vm476, %v481, %v480
      %vm483 = vcmp.lt.s32.totalorder %v433, 0
      %v484 = vsub.s32 0, %v433
      %v485 = vsel %vm483, %v484, %v433
      %v486 = vshrl.u32 %v485, 3
      %v487 = vand.u32 %v485, 7
      %v488 = vsub.s32 0, %v487
      %v489 = vsel %vm483, %v488, %v487
      %vm490 = vcmp.ne.s32.totalorder %v440, 0
      %vm491 = vcmp.ne.s32.totalorder %v447, 0
      %vm492 = vcmp.ne.s32.totalorder %v454, 0
      %vm493 = vcmp.ne.s32.totalorder %v461, 0
      %vm494 = vcmp.ne.s32.totalorder %v468, 0
      %vm495 = vcmp.ne.s32.totalorder %v475, 0
      %vm496 = vcmp.ne.s32.totalorder %v482, 0
      %vm497 = vcmp.ne.s32.totalorder %v489, 0
      %vm498 = vcmp.lt.s32.totalorder %v440, 0
      %vm499 = vcmp.lt.s32.totalorder %v447, 0
      %vm500 = vcmp.lt.s32.totalorder %v454, 0
      %vm501 = vcmp.lt.s32.totalorder %v461, 0
      %vm502 = vcmp.lt.s32.totalorder %v468, 0
      %vm503 = vcmp.lt.s32.totalorder %v475, 0
      %vm504 = vcmp.lt.s32.totalorder %v482, 0
      %vm505 = vcmp.lt.s32.totalorder %v489, 0
      %vm506 = vmand %vm498, %vm490
      %vm507 = vmand %vm499, %vm491
      %vm508 = vmand %vm500, %vm492
      %vm509 = vmand %vm501, %vm493
      %vm510 = vmand %vm502, %vm494
      %vm511 = vmand %vm503, %vm495
      %vm512 = vmand %vm504, %vm496
      %vm513 = vmand %vm505, %vm497
      %v514 = vadd.s32 %v440, 8
      %v515 = vadd.s32 %v447, 8
      %v516 = vadd.s32 %v454, 8
      %v517 = vadd.s32 %v461, 8
      %v518 = vadd.s32 %v468, 8
      %v519 = vadd.s32 %v475, 8
      %v520 = vadd.s32 %v482, 8
      %v521 = vadd.s32 %v489, 8
      %v522 = vsel %vm506, %v514, %v440
      %v523 = vsel %vm507, %v515, %v447
      %v524 = vsel %vm508, %v516, %v454
      %v525 = vsel %vm509, %v517, %v461
      %v526 = vsel %vm510, %v518, %v468
      %v527 = vsel %vm511, %v519, %v475
      %v528 = vsel %vm512, %v520, %v482
      %v529 = vsel %vm513, %v521, %v489
      %vm530 = vcmp.ne.s32.totalorder %v522, 0
      %vm531 = vcmp.ne.s32.totalorder %v523, 0
      %vm532 = vcmp.ne.s32.totalorder %v524, 0
      %vm533 = vcmp.ne.s32.totalorder %v525, 0
      %vm534 = vcmp.ne.s32.totalorder %v526, 0
      %vm535 = vcmp.ne.s32.totalorder %v527, 0
      %vm536 = vcmp.ne.s32.totalorder %v528, 0
      %vm537 = vcmp.ne.s32.totalorder %v529, 0
      %vm538 = vcmp.ne.s32.totalorder %v522, 7
      %vm539 = vcmp.ne.s32.totalorder %v523, 7
      %vm540 = vcmp.ne.s32.totalorder %v524, 7
      %vm541 = vcmp.ne.s32.totalorder %v525, 7
      %vm542 = vcmp.ne.s32.totalorder %v526, 7
      %vm543 = vcmp.ne.s32.totalorder %v527, 7
      %vm544 = vcmp.ne.s32.totalorder %v528, 7
      %vm545 = vcmp.ne.s32.totalorder %v529, 7
      %v546 = vld [vmem:[%s1] sm:$0xff]
      %v547 = vld [vmem:[%s1 + $0x8] sm:$0xf]
      %v548 = vld [vmem:[%s2] sm:$0xff]
      %v549 = vld [vmem:[%s2 + $0x8] sm:$0xf]
      %vm550 = vcmask 97280
      %v552 = vsel %vm550, 0.0, 0
      %v555 = vsel %vm550, %v417, 0
      %v558 = vsel %vm550, %v418, 0
      %v561 = vsel %vm550, %v419, 0
      %v564 = vsel %vm550, %v420, 0
      %v567 = vsel %vm550, %v421, 0
      %v570 = vsel %vm550, %v422, 0
      %v573 = vsel %vm550, %v423, 0
      %vm575 = vcmask 1043456
      %v577 = vsel %vm575, %v549, 0
      %579 = vmatprep.subr.mxu0 0.0
      %580 = vmatpush1.msra.mxu0 %v548
      %581 = vmatprep.subr.mxu0 0.0
      %582 = vmatpush1.msra.mxu0 %v577
      %583 = vmatprep.subr.mxu0 0.0
      %584 = vmatpush1.msra.mxu0 0.0
      %585 = vmatprep.subr.mxu0 0.0
      %586 = vmatpush1.msra.mxu0 0.0
      %587 = vmatprep.subr.mxu0 0.0
      %588 = vmatpush1.msra.mxu0 0.0
      %589 = vmatprep.subr.mxu0 0.0
      %590 = vmatpush1.msra.mxu0 0.0
      %591 = vmatprep.subr.mxu0 0.0
      %592 = vmatpush1.msra.mxu0 0.0
      %593 = vmatprep.subr.mxu0 0.0
      %594 = vmatpush1.msra.mxu0 0.0
      %595 = vmatprep.subr.mxu0 0.0
      %596 = vmatpush1.msra.mxu0 0.0
      %597 = vmatprep.subr.mxu0 0.0
      %598 = vmatpush1.msra.mxu0 0.0
      %599 = vmatprep.subr.mxu0 0.0
      %600 = vmatpush1.msra.mxu0 0.0
      %601 = vmatprep.subr.mxu0 0.0
      %602 = vmatpush1.msra.mxu0 0.0
      %603 = vmatprep.subr.mxu0 0.0
      %604 = vmatpush1.msra.mxu0 0.0
      %605 = vmatprep.subr.mxu0 0.0
      %606 = vmatpush1.msra.mxu0 0.0
      %607 = vmatprep.subr.mxu0 0.0
      %608 = vmatpush1.msra.mxu0 0.0
      %609 = vmatprep.subr.mxu0 0.0
      %610 = vmatpush1.msra.mxu0 0.0
      %611 = vmatprep.subr.mxu0 0.0
      %612 = vmatpush1.msra.mxu0 0.0
      %613 = vmatprep.subr.mxu0 0.0
      %614 = vmatpush1.msra.mxu0 0.0
      %615 = vmatprep.subr.mxu0 0.0
      %616 = vmatpush1.msra.mxu0 0.0
      %617 = vmatprep.subr.mxu0 0.0
      %618 = vmatpush1.msra.mxu0 0.0
      %619 = vmatprep.subr.mxu0 0.0
      %620 = vmatpush1.msra.mxu0 0.0
      %621 = vmatprep.subr.mxu0 0.0
      %622 = vmatpush1.msra.mxu0 0.0
      %623 = vmatprep.subr.mxu0 0.0
      %624 = vmatpush1.msra.mxu0 0.0
      %625 = vmatprep.subr.mxu0 0.0
      %626 = vmatpush1.msra.mxu0 0.0
      %627 = vmatprep.subr.mxu0 0.0
      %628 = vmatpush1.msra.mxu0 0.0
      %629 = vmatprep.subr.mxu0 0.0
      %630 = vmatpush1.msra.mxu0 0.0
      %631 = vmatprep.subr.mxu0 0.0
      %632 = vmatpush1.msra.mxu0 0.0
      %633 = vmatprep.subr.mxu0 0.0
      %634 = vmatpush1.msra.mxu0 0.0
      %635 = vmatprep.subr.mxu0 0.0
      %636 = vmatpush1.msra.mxu0 0.0
      %637 = vmatprep.subr.mxu0 0.0
      %638 = vmatpush1.msra.mxu0 0.0
      %639 = vmatprep.subr.mxu0 0.0
      %640 = vmatpush1.msra.mxu0 0.0
      %641 = vmatprep.subr.mxu0 0.0
      %642 = vmatpush1.msra.mxu0 0.0
      %643 = vmatprep.mubr.f32.mxu0 0.0
      %644 = vmatmul.mubr.f32.gmra.mrb[0].mxu0 %v552
      %v645 = vpop.f32.mrb[0].mxu0
      %v646 = vadd.f32 0.0, %v645
      %v647 = vpop.f32.mrb[0].mxu0
      %648 = vmatprep.mubr.f32.mxu0 0.0
      %649 = vmatmul.mubr.f32.gmra.mrb[0].mxu0 %v555
      %v650 = vpop.f32.mrb[0].mxu0
      %v651 = vadd.f32 0.0, %v650
      %v652 = vpop.f32.mrb[0].mxu0
      %653 = vmatprep.mubr.f32.mxu0 0.0
      %654 = vmatmul.mubr.f32.gmra.mrb[0].mxu0 %v558
      %v655 = vpop.f32.mrb[0].mxu0
      %v656 = vadd.f32 0.0, %v655
      %v657 = vpop.f32.mrb[0].mxu0
      %658 = vmatprep.mubr.f32.mxu0 0.0
      %659 = vmatmul.mubr.f32.gmra.mrb[0].mxu0 %v561
      %v660 = vpop.f32.mrb[0].mxu0
      %v661 = vadd.f32 0.0, %v660
      %v662 = vpop.f32.mrb[0].mxu0
      %663 = vmatprep.mubr.f32.mxu0 0.0
      %664 = vmatmul.mubr.f32.gmra.mrb[0].mxu0 %v564
      %v665 = vpop.f32.mrb[0].mxu0
      %v666 = vadd.f32 0.0, %v665
      %v667 = vpop.f32.mrb[0].mxu0
      %668 = vmatprep.mubr.f32.mxu0 0.0
      %669 = vmatmul.mubr.f32.gmra.mrb[0].mxu0 %v567
      %v670 = vpop.f32.mrb[0].mxu0
      %v671 = vadd.f32 0.0, %v670
      %v672 = vpop.f32.mrb[0].mxu0
      %673 = vmatprep.mubr.f32.mxu0 0.0
      %674 = vmatmul.mubr.f32.gmra.mrb[0].mxu0 %v570
      %v675 = vpop.f32.mrb[0].mxu0
      %v676 = vadd.f32 0.0, %v675
      %v677 = vpop.f32.mrb[0].mxu0
      %678 = vmatprep.mubr.f32.mxu0 0.0
      %679 = vmatmul.mubr.f32.gmra.mrb[0].mxu0 %v573
      %v680 = vpop.f32.mrb[0].mxu0
      %v681 = vadd.f32 0.0, %v680
      %v682 = vpop.f32.mrb[0].mxu0
      %683 = vdwg.mxu0
      %v685 = vsel %vm550, %v424, 0
      %v688 = vsel %vm575, %v547, 0
      %690 = vmatprep.subr.mxu0 0.0
      %691 = vmatpush1.msra.mxu0 %v546
      %692 = vmatprep.subr.mxu0 0.0
      %693 = vmatpush1.msra.mxu0 %v688
      %694 = vmatprep.subr.mxu0 0.0
      %695 = vmatpush1.msra.mxu0 0.0
      %696 = vmatprep.subr.mxu0 0.0
      %697 = vmatpush1.msra.mxu0 0.0
      %698 = vmatprep.subr.mxu0 0.0
      %699 = vmatpush1.msra.mxu0 0.0
      %700 = vmatprep.subr.mxu0 0.0
      %701 = vmatpush1.msra.mxu0 0.0
      %702 = vmatprep.subr.mxu0 0.0
      %703 = vmatpush1.msra.mxu0 0.0
      %704 = vmatprep.subr.mxu0 0.0
      %705 = vmatpush1.msra.mxu0 0.0
      %706 = vmatprep.subr.mxu0 0.0
      %707 = vmatpush1.msra.mxu0 0.0
      %708 = vmatprep.subr.mxu0 0.0
      %709 = vmatpush1.msra.mxu0 0.0
      %710 = vmatprep.subr.mxu0 0.0
      %711 = vmatpush1.msra.mxu0 0.0
      %712 = vmatprep.subr.mxu0 0.0
      %713 = vmatpush1.msra.mxu0 0.0
      %714 = vmatprep.subr.mxu0 0.0
      %715 = vmatpush1.msra.mxu0 0.0
      %716 = vmatprep.subr.mxu0 0.0
      %717 = vmatpush1.msra.mxu0 0.0
      %718 = vmatprep.subr.mxu0 0.0
      %719 = vmatpush1.msra.mxu0 0.0
      %720 = vmatprep.subr.mxu0 0.0
      %721 = vmatpush1.msra.mxu0 0.0
      %722 = vmatprep.subr.mxu0 0.0
      %723 = vmatpush1.msra.mxu0 0.0
      %724 = vmatprep.subr.mxu0 0.0
      %725 = vmatpush1.msra.mxu0 0.0
      %726 = vmatprep.subr.mxu0 0.0
      %727 = vmatpush1.msra.mxu0 0.0
      %728 = vmatprep.subr.mxu0 0.0
      %729 = vmatpush1.msra.mxu0 0.0
      %730 = vmatprep.subr.mxu0 0.0
      %731 = vmatpush1.msra.mxu0 0.0
      %732 = vmatprep.subr.mxu0 0.0
      %733 = vmatpush1.msra.mxu0 0.0
      %734 = vmatprep.subr.mxu0 0.0
      %735 = vmatpush1.msra.mxu0 0.0
      %736 = vmatprep.subr.mxu0 0.0
      %737 = vmatpush1.msra.mxu0 0.0
      %738 = vmatprep.subr.mxu0 0.0
      %739 = vmatpush1.msra.mxu0 0.0
      %740 = vmatprep.subr.mxu0 0.0
      %741 = vmatpush1.msra.mxu0 0.0
      %742 = vmatprep.subr.mxu0 0.0
      %743 = vmatpush1.msra.mxu0 0.0
      %744 = vmatprep.subr.mxu0 0.0
      %745 = vmatpush1.msra.mxu0 0.0
      %746 = vmatprep.subr.mxu0 0.0
      %747 = vmatpush1.msra.mxu0 0.0
      %748 = vmatprep.subr.mxu0 0.0
      %749 = vmatpush1.msra.mxu0 0.0
      %750 = vmatprep.subr.mxu0 0.0
      %751 = vmatpush1.msra.mxu0 0.0
      %752 = vmatprep.subr.mxu0 0.0
      %753 = vmatpush1.msra.mxu0 0.0
      %754 = vmatprep.mubr.f32.mxu0 0.0
      %755 = vmatmul.mubr.f32.gmra.mrb[0].mxu0 %v555
      %v756 = vpop.f32.mrb[0].mxu0
      %v757 = vadd.f32 %v646, %v756
      %v758 = vpop.f32.mrb[0].mxu0
      %759 = vmatprep.mubr.f32.mxu0 0.0
      %760 = vmatmul.mubr.f32.gmra.mrb[0].mxu0 %v558
      %v761 = vpop.f32.mrb[0].mxu0
      %v762 = vadd.f32 %v651, %v761
      %v763 = vpop.f32.mrb[0].mxu0
      %764 = vmatprep.mubr.f32.mxu0 0.0
      %765 = vmatmul.mubr.f32.gmra.mrb[0].mxu0 %v561
      %v766 = vpop.f32.mrb[0].mxu0
      %v767 = vadd.f32 %v656, %v766
      %v768 = vpop.f32.mrb[0].mxu0
      %769 = vmatprep.mubr.f32.mxu0 0.0
      %770 = vmatmul.mubr.f32.gmra.mrb[0].mxu0 %v564
      %v771 = vpop.f32.mrb[0].mxu0
      %v772 = vadd.f32 %v661, %v771
      %v773 = vpop.f32.mrb[0].mxu0
      %774 = vmatprep.mubr.f32.mxu0 0.0
      %775 = vmatmul.mubr.f32.gmra.mrb[0].mxu0 %v567
      %v776 = vpop.f32.mrb[0].mxu0
      %v777 = vadd.f32 %v666, %v776
      %v778 = vpop.f32.mrb[0].mxu0
      %779 = vmatprep.mubr.f32.mxu0 0.0
      %780 = vmatmul.mubr.f32.gmra.mrb[0].mxu0 %v570
      %v781 = vpop.f32.mrb[0].mxu0
      %v782 = vadd.f32 %v671, %v781
      %v783 = vpop.f32.mrb[0].mxu0
      %784 = vmatprep.mubr.f32.mxu0 0.0
      %785 = vmatmul.mubr.f32.gmra.mrb[0].mxu0 %v573
      %v786 = vpop.f32.mrb[0].mxu0
      %v787 = vadd.f32 %v676, %v786
      %v788 = vpop.f32.mrb[0].mxu0
      %789 = vmatprep.mubr.f32.mxu0 0.0
      %790 = vmatmul.mubr.f32.gmra.mrb[0].mxu0 %v685
      %v791 = vpop.f32.mrb[0].mxu0
      %v792 = vadd.f32 %v681, %v791
      %v793 = vpop.f32.mrb[0].mxu0
      %794 = vdwg.mxu0
      %vm795 = vcmask 1040384
      %v796 = vrot.slane %v417, 7
      %v797 = vrot.slane %v418, 7
      %v798 = vsel %vm795, %v796, %v797
      %v799 = vrot.slane %v419, 7
      %v800 = vsel %vm795, %v797, %v799
      %v801 = vrot.slane %v420, 7
      %v802 = vsel %vm795, %v799, %v801
      %v803 = vrot.slane %v421, 7
      %v804 = vsel %vm795, %v801, %v803
      %v805 = vrot.slane %v422, 7
      %v806 = vsel %vm795, %v803, %v805
      %v807 = vrot.slane %v423, 7
      %v808 = vsel %vm795, %v805, %v807
      %v809 = vrot.slane %v424, 7
      %v810 = vsel %vm795, %v807, %v809
      %v819 = vsel %vm795, 0.0, %v796
      %v820 = vsel %vm530, 1, 0
      %v821 = vsel %vm531, 1, 0
      %v822 = vsel %vm532, 1, 0
      %v823 = vsel %vm533, 1, 0
      %v824 = vsel %vm534, 1, 0
      %v825 = vsel %vm535, 1, 0
      %v826 = vsel %vm536, 1, 0
      %v827 = vsel %vm537, 1, 0
      %vm828 = vcmp.eq.s32.totalorder %v820, 1
      %vm829 = vcmp.eq.s32.totalorder %v821, 1
      %vm830 = vcmp.eq.s32.totalorder %v822, 1
      %vm831 = vcmp.eq.s32.totalorder %v823, 1
      %vm832 = vcmp.eq.s32.totalorder %v824, 1
      %vm833 = vcmp.eq.s32.totalorder %v825, 1
      %vm834 = vcmp.eq.s32.totalorder %v826, 1
      %vm835 = vcmp.eq.s32.totalorder %v827, 1
      %v836 = vsel %vm828, %v819, 0.0
      %v837 = vsel %vm829, %v798, 0.0
      %v838 = vsel %vm830, %v800, 0.0
      %v839 = vsel %vm831, %v802, 0.0
      %v840 = vsel %vm832, %v804, 0.0
      %v841 = vsel %vm833, %v806, 0.0
      %v842 = vsel %vm834, %v808, 0.0
      %v843 = vsel %vm835, %v810, 0.0
      %v844 = vld [vmem:[%s3] sm:$0xff]
      %v845 = vld [vmem:[%s3 + $0x8] sm:$0xf]
      %v847 = vsel %vm550, %v836, 0
      %v850 = vsel %vm550, %v837, 0
      %v853 = vsel %vm550, %v838, 0
      %v856 = vsel %vm550, %v839, 0
      %v859 = vsel %vm550, %v840, 0
      %v862 = vsel %vm550, %v841, 0
      %v865 = vsel %vm550, %v842, 0
      %v868 = vsel %vm550, %v843, 0
      %v871 = vsel %vm575, %v845, 0
      %873 = vmatprep.subr.mxu0 0.0
      %874 = vmatpush1.msra.mxu0 %v844
      %875 = vmatprep.subr.mxu0 0.0
      %876 = vmatpush1.msra.mxu0 %v871
      %877 = vmatprep.subr.mxu0 0.0
      %878 = vmatpush1.msra.mxu0 0.0
      %879 = vmatprep.subr.mxu0 0.0
      %880 = vmatpush1.msra.mxu0 0.0
      %881 = vmatprep.subr.mxu0 0.0
      %882 = vmatpush1.msra.mxu0 0.0
      %883 = vmatprep.subr.mxu0 0.0
      %884 = vmatpush1.msra.mxu0 0.0
      %885 = vmatprep.subr.mxu0 0.0
      %886 = vmatpush1.msra.mxu0 0.0
      %887 = vmatprep.subr.mxu0 0.0
      %888 = vmatpush1.msra.mxu0 0.0
      %889 = vmatprep.subr.mxu0 0.0
      %890 = vmatpush1.msra.mxu0 0.0
      %891 = vmatprep.subr.mxu0 0.0
      %892 = vmatpush1.msra.mxu0 0.0
      %893 = vmatprep.subr.mxu0 0.0
      %894 = vmatpush1.msra.mxu0 0.0
      %895 = vmatprep.subr.mxu0 0.0
      %896 = vmatpush1.msra.mxu0 0.0
      %897 = vmatprep.subr.mxu0 0.0
      %898 = vmatpush1.msra.mxu0 0.0
      %899 = vmatprep.subr.mxu0 0.0
      %900 = vmatpush1.msra.mxu0 0.0
      %901 = vmatprep.subr.mxu0 0.0
      %902 = vmatpush1.msra.mxu0 0.0
      %903 = vmatprep.subr.mxu0 0.0
      %904 = vmatpush1.msra.mxu0 0.0
      %905 = vmatprep.subr.mxu0 0.0
      %906 = vmatpush1.msra.mxu0 0.0
      %907 = vmatprep.subr.mxu0 0.0
      %908 = vmatpush1.msra.mxu0 0.0
      %909 = vmatprep.subr.mxu0 0.0
      %910 = vmatpush1.msra.mxu0 0.0
      %911 = vmatprep.subr.mxu0 0.0
      %912 = vmatpush1.msra.mxu0 0.0
      %913 = vmatprep.subr.mxu0 0.0
      %914 = vmatpush1.msra.mxu0 0.0
      %915 = vmatprep.subr.mxu0 0.0
      %916 = vmatpush1.msra.mxu0 0.0
      %917 = vmatprep.subr.mxu0 0.0
      %918 = vmatpush1.msra.mxu0 0.0
      %919 = vmatprep.subr.mxu0 0.0
      %920 = vmatpush1.msra.mxu0 0.0
      %921 = vmatprep.subr.mxu0 0.0
      %922 = vmatpush1.msra.mxu0 0.0
      %923 = vmatprep.subr.mxu0 0.0
      %924 = vmatpush1.msra.mxu0 0.0
      %925 = vmatprep.subr.mxu0 0.0
      %926 = vmatpush1.msra.mxu0 0.0
      %927 = vmatprep.subr.mxu0 0.0
      %928 = vmatpush1.msra.mxu0 0.0
      %929 = vmatprep.subr.mxu0 0.0
      %930 = vmatpush1.msra.mxu0 0.0
      %931 = vmatprep.subr.mxu0 0.0
      %932 = vmatpush1.msra.mxu0 0.0
      %933 = vmatprep.subr.mxu0 0.0
      %934 = vmatpush1.msra.mxu0 0.0
      %935 = vmatprep.subr.mxu0 0.0
      %936 = vmatpush1.msra.mxu0 0.0
      %937 = vmatprep.mubr.f32.mxu0 0.0
      %938 = vmatmul.mubr.f32.gmra.mrb[0].mxu0 %v847
      %v939 = vpop.f32.mrb[0].mxu0
      %v940 = vadd.f32 0.0, %v939
      %v941 = vpop.f32.mrb[0].mxu0
      %942 = vmatprep.mubr.f32.mxu0 0.0
      %943 = vmatmul.mubr.f32.gmra.mrb[0].mxu0 %v850
      %v944 = vpop.f32.mrb[0].mxu0
      %v945 = vadd.f32 0.0, %v944
      %v946 = vpop.f32.mrb[0].mxu0
      %947 = vmatprep.mubr.f32.mxu0 0.0
      %948 = vmatmul.mubr.f32.gmra.mrb[0].mxu0 %v853
      %v949 = vpop.f32.mrb[0].mxu0
      %v950 = vadd.f32 0.0, %v949
      %v951 = vpop.f32.mrb[0].mxu0
      %952 = vmatprep.mubr.f32.mxu0 0.0
      %953 = vmatmul.mubr.f32.gmra.mrb[0].mxu0 %v856
      %v954 = vpop.f32.mrb[0].mxu0
      %v955 = vadd.f32 0.0, %v954
      %v956 = vpop.f32.mrb[0].mxu0
      %957 = vmatprep.mubr.f32.mxu0 0.0
      %958 = vmatmul.mubr.f32.gmra.mrb[0].mxu0 %v859
      %v959 = vpop.f32.mrb[0].mxu0
      %v960 = vadd.f32 0.0, %v959
      %v961 = vpop.f32.mrb[0].mxu0
      %962 = vmatprep.mubr.f32.mxu0 0.0
      %963 = vmatmul.mubr.f32.gmra.mrb[0].mxu0 %v862
      %v964 = vpop.f32.mrb[0].mxu0
      %v965 = vadd.f32 0.0, %v964
      %v966 = vpop.f32.mrb[0].mxu0
      %967 = vmatprep.mubr.f32.mxu0 0.0
      %968 = vmatmul.mubr.f32.gmra.mrb[0].mxu0 %v865
      %v969 = vpop.f32.mrb[0].mxu0
      %v970 = vadd.f32 0.0, %v969
      %v971 = vpop.f32.mrb[0].mxu0
      %972 = vmatprep.mubr.f32.mxu0 0.0
      %973 = vmatmul.mubr.f32.gmra.mrb[0].mxu0 %v868
      %v974 = vpop.f32.mrb[0].mxu0
      %v975 = vadd.f32 0.0, %v974
      %v976 = vpop.f32.mrb[0].mxu0
      %977 = vdwg.mxu0
      %v978 = vadd.f32 %v757, %v940
      %v979 = vadd.f32 %v762, %v945
      %v980 = vadd.f32 %v767, %v950
      %v981 = vadd.f32 %v772, %v955
      %v982 = vadd.f32 %v777, %v960
      %v983 = vadd.f32 %v782, %v965
      %v984 = vadd.f32 %v787, %v970
      %v985 = vadd.f32 %v792, %v975
      %v986 = vrot.slane 0.0, 7
      %v987 = vsel %vm795, %v986, %v796
      %v990 = vsel %vm795, 0.0, %v986
      %v991 = vsel %vm828, %v990, 0.0
      %v992 = vsel %vm829, %v987, 0.0
      %v993 = vsel %vm830, %v798, 0.0
      %v994 = vsel %vm831, %v800, 0.0
      %v995 = vsel %vm832, %v802, 0.0
      %v996 = vsel %vm833, %v804, 0.0
      %v997 = vsel %vm834, %v806, 0.0
      %v998 = vsel %vm835, %v808, 0.0
      %v999 = vld [vmem:[%s4] sm:$0xff]
      %v1000 = vld [vmem:[%s4 + $0x8] sm:$0xf]
      %v1002 = vsel %vm550, %v991, 0
      %v1005 = vsel %vm550, %v992, 0
      %v1008 = vsel %vm550, %v993, 0
      %v1011 = vsel %vm550, %v994, 0
      %v1014 = vsel %vm550, %v995, 0
      %v1017 = vsel %vm550, %v996, 0
      %v1020 = vsel %vm550, %v997, 0
      %v1023 = vsel %vm550, %v998, 0
      %v1026 = vsel %vm575, %v1000, 0
      %1028 = vmatprep.subr.mxu0 0.0
      %1029 = vmatpush1.msra.mxu0 %v999
      %1030 = vmatprep.subr.mxu0 0.0
      %1031 = vmatpush1.msra.mxu0 %v1026
      %1032 = vmatprep.subr.mxu0 0.0
      %1033 = vmatpush1.msra.mxu0 0.0
      %1034 = vmatprep.subr.mxu0 0.0
      %1035 = vmatpush1.msra.mxu0 0.0
      %1036 = vmatprep.subr.mxu0 0.0
      %1037 = vmatpush1.msra.mxu0 0.0
      %1038 = vmatprep.subr.mxu0 0.0
      %1039 = vmatpush1.msra.mxu0 0.0
      %1040 = vmatprep.subr.mxu0 0.0
      %1041 = vmatpush1.msra.mxu0 0.0
      %1042 = vmatprep.subr.mxu0 0.0
      %1043 = vmatpush1.msra.mxu0 0.0
      %1044 = vmatprep.subr.mxu0 0.0
      %1045 = vmatpush1.msra.mxu0 0.0
      %1046 = vmatprep.subr.mxu0 0.0
      %1047 = vmatpush1.msra.mxu0 0.0
      %1048 = vmatprep.subr.mxu0 0.0
      %1049 = vmatpush1.msra.mxu0 0.0
      %1050 = vmatprep.subr.mxu0 0.0
      %1051 = vmatpush1.msra.mxu0 0.0
      %1052 = vmatprep.subr.mxu0 0.0
      %1053 = vmatpush1.msra.mxu0 0.0
      %1054 = vmatprep.subr.mxu0 0.0
      %1055 = vmatpush1.msra.mxu0 0.0
      %1056 = vmatprep.subr.mxu0 0.0
      %1057 = vmatpush1.msra.mxu0 0.0
      %1058 = vmatprep.subr.mxu0 0.0
      %1059 = vmatpush1.msra.mxu0 0.0
      %1060 = vmatprep.subr.mxu0 0.0
      %1061 = vmatpush1.msra.mxu0 0.0
      %1062 = vmatprep.subr.mxu0 0.0
      %1063 = vmatpush1.msra.mxu0 0.0
      %1064 = vmatprep.subr.mxu0 0.0
      %1065 = vmatpush1.msra.mxu0 0.0
      %1066 = vmatprep.subr.mxu0 0.0
      %1067 = vmatpush1.msra.mxu0 0.0
      %1068 = vmatprep.subr.mxu0 0.0
      %1069 = vmatpush1.msra.mxu0 0.0
      %1070 = vmatprep.subr.mxu0 0.0
      %1071 = vmatpush1.msra.mxu0 0.0
      %1072 = vmatprep.subr.mxu0 0.0
      %1073 = vmatpush1.msra.mxu0 0.0
      %1074 = vmatprep.subr.mxu0 0.0
      %1075 = vmatpush1.msra.mxu0 0.0
      %1076 = vmatprep.subr.mxu0 0.0
      %1077 = vmatpush1.msra.mxu0 0.0
      %1078 = vmatprep.subr.mxu0 0.0
      %1079 = vmatpush1.msra.mxu0 0.0
      %1080 = vmatprep.subr.mxu0 0.0
      %1081 = vmatpush1.msra.mxu0 0.0
      %1082 = vmatprep.subr.mxu0 0.0
      %1083 = vmatpush1.msra.mxu0 0.0
      %1084 = vmatprep.subr.mxu0 0.0
      %1085 = vmatpush1.msra.mxu0 0.0
      %1086 = vmatprep.subr.mxu0 0.0
      %1087 = vmatpush1.msra.mxu0 0.0
      %1088 = vmatprep.subr.mxu0 0.0
      %1089 = vmatpush1.msra.mxu0 0.0
      %1090 = vmatprep.subr.mxu0 0.0
      %1091 = vmatpush1.msra.mxu0 0.0
      %1092 = vmatprep.mubr.f32.mxu0 0.0
      %1093 = vmatmul.mubr.f32.gmra.mrb[0].mxu0 %v1002
      %v1094 = vpop.f32.mrb[0].mxu0
      %v1095 = vadd.f32 0.0, %v1094
      %v1096 = vpop.f32.mrb[0].mxu0
      %1097 = vmatprep.mubr.f32.mxu0 0.0
      %1098 = vmatmul.mubr.f32.gmra.mrb[0].mxu0 %v1005
      %v1099 = vpop.f32.mrb[0].mxu0
      %v1100 = vadd.f32 0.0, %v1099
      %v1101 = vpop.f32.mrb[0].mxu0
      %1102 = vmatprep.mubr.f32.mxu0 0.0
      %1103 = vmatmul.mubr.f32.gmra.mrb[0].mxu0 %v1008
      %v1104 = vpop.f32.mrb[0].mxu0
      %v1105 = vadd.f32 0.0, %v1104
      %v1106 = vpop.f32.mrb[0].mxu0
      %1107 = vmatprep.mubr.f32.mxu0 0.0
      %1108 = vmatmul.mubr.f32.gmra.mrb[0].mxu0 %v1011
      %v1109 = vpop.f32.mrb[0].mxu0
      %v1110 = vadd.f32 0.0, %v1109
      %v1111 = vpop.f32.mrb[0].mxu0
      %1112 = vmatprep.mubr.f32.mxu0 0.0
      %1113 = vmatmul.mubr.f32.gmra.mrb[0].mxu0 %v1014
      %v1114 = vpop.f32.mrb[0].mxu0
      %v1115 = vadd.f32 0.0, %v1114
      %v1116 = vpop.f32.mrb[0].mxu0
      %1117 = vmatprep.mubr.f32.mxu0 0.0
      %1118 = vmatmul.mubr.f32.gmra.mrb[0].mxu0 %v1017
      %v1119 = vpop.f32.mrb[0].mxu0
      %v1120 = vadd.f32 0.0, %v1119
      %v1121 = vpop.f32.mrb[0].mxu0
      %1122 = vmatprep.mubr.f32.mxu0 0.0
      %1123 = vmatmul.mubr.f32.gmra.mrb[0].mxu0 %v1020
      %v1124 = vpop.f32.mrb[0].mxu0
      %v1125 = vadd.f32 0.0, %v1124
      %v1126 = vpop.f32.mrb[0].mxu0
      %1127 = vmatprep.mubr.f32.mxu0 0.0
      %1128 = vmatmul.mubr.f32.gmra.mrb[0].mxu0 %v1023
      %v1129 = vpop.f32.mrb[0].mxu0
      %v1130 = vadd.f32 0.0, %v1129
      %v1131 = vpop.f32.mrb[0].mxu0
      %1132 = vdwg.mxu0
      %v1133 = vadd.f32 %v978, %v1095
      %v1134 = vadd.f32 %v979, %v1100
      %v1135 = vadd.f32 %v980, %v1105
      %v1136 = vadd.f32 %v981, %v1110
      %v1137 = vadd.f32 %v982, %v1115
      %v1138 = vadd.f32 %v983, %v1120
      %v1139 = vadd.f32 %v984, %v1125
      %v1140 = vadd.f32 %v985, %v1130
      %v1141 = vld [vmem:[%s5] sm:$0x1]
      %v1143 = vlaneseq
      %v1144 = vshrl.u32 %v1143, 7
      %v1145 = vsub.s32 0, %v1144
      %v1146 = vrot.slane %v1141, %v1145
      %v1148 = vadd.f32 %v1133, %v1146
      %v1149 = vadd.f32 %v1134, %v1146
      %v1150 = vadd.f32 %v1135, %v1146
      %v1151 = vadd.f32 %v1136, %v1146
      %v1152 = vadd.f32 %v1137, %v1146
      %v1153 = vadd.f32 %v1138, %v1146
      %v1154 = vadd.f32 %v1139, %v1146
      %v1155 = vadd.f32 %v1140, %v1146
      %v1156 = vmax.f32 %v1148, 0.0
      %v1157 = vmax.f32 %v1149, 0.0
      %v1158 = vmax.f32 %v1150, 0.0
      %v1159 = vmax.f32 %v1151, 0.0
      %v1160 = vmax.f32 %v1152, 0.0
      %v1161 = vmax.f32 %v1153, 0.0
      %v1162 = vmax.f32 %v1154, 0.0
      %v1163 = vmax.f32 %v1155, 0.0
      %v1164 = vpack.c.bf16 %v1157, %v1156
      %v1165 = vpack.c.bf16 %v1159, %v1158
      %v1166 = vpack.c.bf16 %v1161, %v1160
      %v1167 = vpack.c.bf16 %v1163, %v1162
      %v1168 = vld [vmem:[%s6] sm:$0xf]
      %v1169 = vld [vmem:[%s6 + $0x4] sm:$0xf]
      %v1170 = vld [vmem:[%s7] sm:$0x1]
      %v1172 = vlaneseq
      %v1173 = vshrl.u32 %v1172, 7
      %v1174 = vsub.s32 0, %v1173
      %v1175 = vrot.slane %v1170, %v1174
      %v1179 = vunpack.c.l.b16 %v1168
      %v1180 = vunpack.c.l.b16 %v1169
      %v1181 = vpack.c.b16 %v1180, %v1179
      %vm1183 = vcmask 130048
      %v1185 = vsel %vm1183, %v1164, 0
      %v1188 = vsel %vm1183, %v1165, 0
      %v1191 = vsel %vm1183, %v1166, 0
      %v1194 = vsel %vm1183, %v1167, 0
      %1196 = vmatprep.subr.bf16.mxu0 0
      %1197 = vmatpush1.bf16.msra.mxu0 %v1181
      %1198 = vmatprep.subr.bf16.mxu0 0
      %1199 = vmatpush1.bf16.msra.mxu0 0
      %1200 = vmatprep.subr.bf16.mxu0 0
      %1201 = vmatpush1.bf16.msra.mxu0 0
      %1202 = vmatprep.subr.bf16.mxu0 0
      %1203 = vmatpush1.bf16.msra.mxu0 0
      %1204 = vmatprep.subr.bf16.mxu0 0
      %1205 = vmatpush1.bf16.msra.mxu0 0
      %1206 = vmatprep.subr.bf16.mxu0 0
      %1207 = vmatpush1.bf16.msra.mxu0 0
      %1208 = vmatprep.subr.bf16.mxu0 0
      %1209 = vmatpush1.bf16.msra.mxu0 0
      %1210 = vmatprep.subr.bf16.mxu0 0
      %1211 = vmatpush1.bf16.msra.mxu0 0
      %1212 = vmatprep.subr.bf16.mxu0 0
      %1213 = vmatpush1.bf16.msra.mxu0 0
      %1214 = vmatprep.subr.bf16.mxu0 0
      %1215 = vmatpush1.bf16.msra.mxu0 0
      %1216 = vmatprep.subr.bf16.mxu0 0
      %1217 = vmatpush1.bf16.msra.mxu0 0
      %1218 = vmatprep.subr.bf16.mxu0 0
      %1219 = vmatpush1.bf16.msra.mxu0 0
      %1220 = vmatprep.subr.bf16.mxu0 0
      %1221 = vmatpush1.bf16.msra.mxu0 0
      %1222 = vmatprep.subr.bf16.mxu0 0
      %1223 = vmatpush1.bf16.msra.mxu0 0
      %1224 = vmatprep.subr.bf16.mxu0 0
      %1225 = vmatpush1.bf16.msra.mxu0 0
      %1226 = vmatprep.subr.bf16.mxu0 0
      %1227 = vmatpush1.bf16.msra.mxu0 0
      %1228 = vmatprep.mubr.bf16.mxu0 0
      %1229 = vmatmul.mubr.bf16.gmra.mrb[0].mxu0 %v1185
      %v1230 = vpop.f32.mrb[0].mxu0
      %v1231 = vadd.f32 %v1175, %v1230
      %v1232 = vpop.f32.mrb[0].mxu0
      %v1233 = vpop.f32.mrb[0].mxu0
      %v1234 = vadd.f32 %v1175, %v1233
      %v1235 = vpop.f32.mrb[0].mxu0
      %1236 = vmatprep.mubr.bf16.mxu0 0
      %1237 = vmatmul.mubr.bf16.gmra.mrb[0].mxu0 %v1188
      %v1238 = vpop.f32.mrb[0].mxu0
      %v1239 = vadd.f32 %v1175, %v1238
      %v1240 = vpop.f32.mrb[0].mxu0
      %v1241 = vpop.f32.mrb[0].mxu0
      %v1242 = vadd.f32 %v1175, %v1241
      %v1243 = vpop.f32.mrb[0].mxu0
      %1244 = vmatprep.mubr.bf16.mxu0 0
      %1245 = vmatmul.mubr.bf16.gmra.mrb[0].mxu0 %v1191
      %v1246 = vpop.f32.mrb[0].mxu0
      %v1247 = vadd.f32 %v1175, %v1246
      %v1248 = vpop.f32.mrb[0].mxu0
      %v1249 = vpop.f32.mrb[0].mxu0
      %v1250 = vadd.f32 %v1175, %v1249
      %v1251 = vpop.f32.mrb[0].mxu0
      %1252 = vmatprep.mubr.bf16.mxu0 0
      %1253 = vmatmul.mubr.bf16.gmra.mrb[0].mxu0 %v1194
      %v1254 = vpop.f32.mrb[0].mxu0
      %v1255 = vadd.f32 %v1175, %v1254
      %v1256 = vpop.f32.mrb[0].mxu0
      %v1257 = vpop.f32.mrb[0].mxu0
      %v1258 = vadd.f32 %v1175, %v1257
      %v1259 = vpop.f32.mrb[0].mxu0
      %1260 = vdwg.mxu0
      %v1261 = vmax.f32 %v1231, 0.0
      %v1262 = vmax.f32 %v1234, 0.0
      %v1263 = vmax.f32 %v1239, 0.0
      %v1264 = vmax.f32 %v1242, 0.0
      %v1265 = vmax.f32 %v1247, 0.0
      %v1266 = vmax.f32 %v1250, 0.0
      %v1267 = vmax.f32 %v1255, 0.0
      %v1268 = vmax.f32 %v1258, 0.0
      %v1269 = vpack.c.bf16 %v1262, %v1261
      %v1270 = vpack.c.bf16 %v1264, %v1263
      %v1271 = vpack.c.bf16 %v1266, %v1265
      %v1272 = vpack.c.bf16 %v1268, %v1267
      %v1273 = vld [vmem:[%s8] sm:$0xff]
      %v1274 = vld [vmem:[%s8 + $0x8] sm:$0x1]
      %vm1279 = vcmask 1043456
      %v1280 = vrot.slane %v1269, 4
      %v1281 = vrot.slane %v1270, 4
      %v1282 = vsel %vm1279, %v1280, %v1281
      %v1283 = vrot.slane %v1271, 4
      %v1284 = vsel %vm1279, %v1281, %v1283
      %v1285 = vrot.slane %v1272, 4
      %v1286 = vsel %vm1279, %v1283, %v1285
      %v1292 = vsel %vm575, 0, %v1280
      %vm1294 = vsmask.f32 256
      %v1295 = vshrl.u32 %v1292, 16
      %v1297 = vrot.slane %v1295, 7
      %v1298 = vshll.u32 %v1292, 16
      %v1300 = vor.u32 %v1297, %v1298
      %v1302 = vshrl.u32 %v1282, 16
      %v1304 = vrot.slane %v1302, 7
      %v1305 = vshll.u32 %v1282, 16
      %v1307 = vor.u32 %v1304, %v1305
      %v1308 = vsel %vm1294, %v1297, %v1307
      %v1310 = vshrl.u32 %v1284, 16
      %v1312 = vrot.slane %v1310, 7
      %v1313 = vshll.u32 %v1284, 16
      %v1315 = vor.u32 %v1312, %v1313
      %v1316 = vsel %vm1294, %v1304, %v1315
      %v1318 = vshrl.u32 %v1286, 16
      %v1320 = vrot.slane %v1318, 7
      %v1321 = vshll.u32 %v1286, 16
      %v1323 = vor.u32 %v1320, %v1321
      %v1324 = vsel %vm1294, %v1312, %v1323
      %vm1329 = vcmask 1040384
      %vm1330 = vmand %vm1329, %vm1294
      %v1331 = vsel %vm1330, 0, %v1300
      %vm1332 = vmpackc.low %vm828, %vm828
      %vm1333 = vmpackc.low %vm829, %vm829
      %vm1334 = vmpackc.low %vm830, %vm830
      %vm1335 = vmpackc.low %vm831, %vm831
      %vm1336 = vmpackc.low %vm832, %vm832
      %vm1337 = vmpackc.low %vm833, %vm833
      %vm1338 = vmpackc.low %vm834, %vm834
      %vm1339 = vmpackc.low %vm835, %vm835
      %v1340 = vsel %vm1332, 65537, 0
      %v1341 = vsel %vm1333, 65537, 0
      %v1342 = vsel %vm1334, 65537, 0
      %v1343 = vsel %vm1335, 65537, 0
      %v1344 = vsel %vm1336, 65537, 0
      %v1345 = vsel %vm1337, 65537, 0
      %v1346 = vsel %vm1338, 65537, 0
      %v1347 = vsel %vm1339, 65537, 0
      %v1348 = vunpack.c.l.b16 %v1340
      %v1349 = vunpack.c.l.b16 %v1341
      %v1350 = vunpack.c.l.b16 %v1342
      %v1351 = vunpack.c.l.b16 %v1343
      %v1352 = vunpack.c.l.b16 %v1344
      %v1353 = vunpack.c.l.b16 %v1345
      %v1354 = vunpack.c.l.b16 %v1346
      %v1355 = vunpack.c.l.b16 %v1347
      %v1356 = vpack.c.b16 %v1349, %v1348
      %v1357 = vpack.c.b16 %v1351, %v1350
      %v1358 = vpack.c.b16 %v1353, %v1352
      %v1359 = vpack.c.b16 %v1355, %v1354
      %vm1360 = vcmp.ne.s16.totalorder %v1356, 0
      %vm1361 = vcmp.ne.s16.totalorder %v1357, 0
      %vm1362 = vcmp.ne.s16.totalorder %v1358, 0
      %vm1363 = vcmp.ne.s16.totalorder %v1359, 0
      %v1364 = vsel %vm1360, %v1331, 0
      %v1365 = vsel %vm1361, %v1308, 0
      %v1366 = vsel %vm1362, %v1316, 0
      %v1367 = vsel %vm1363, %v1324, 0
      %v1368 = vunpack.c.l.bf16 %v1364
      %v1369 = vunpack.c.h.bf16 %v1364
      %v1370 = vunpack.c.l.bf16 %v1365
      %v1371 = vunpack.c.h.bf16 %v1365
      %v1372 = vunpack.c.l.bf16 %v1366
      %v1373 = vunpack.c.h.bf16 %v1366
      %v1374 = vunpack.c.l.bf16 %v1367
      %v1375 = vunpack.c.h.bf16 %v1367
      %v1376 = vlaneseq
      %v1377 = vshrl.u32 %v1376, 7
      %v1378 = vsub.s32 0, %v1377
      %v1379 = vrot.slane %v1273, %v1378
      %v1380 = vmul.f32 %v1368, %v1379
      %v1381 = vmul.f32 %v1369, %v1379
      %v1382 = vmul.f32 %v1370, %v1379
      %v1383 = vmul.f32 %v1371, %v1379
      %v1384 = vmul.f32 %v1372, %v1379
      %v1385 = vmul.f32 %v1373, %v1379
      %v1386 = vmul.f32 %v1374, %v1379
      %v1387 = vmul.f32 %v1375, %v1379
      %v1388 = vadd.f32 %v1380, 0.0
      %v1389 = vadd.f32 %v1381, 0.0
      %v1390 = vadd.f32 %v1382, 0.0
      %v1391 = vadd.f32 %v1383, 0.0
      %v1392 = vadd.f32 %v1384, 0.0
      %v1393 = vadd.f32 %v1385, 0.0
      %v1394 = vadd.f32 %v1386, 0.0
      %v1395 = vadd.f32 %v1387, 0.0
      %v1396 = vunpack.c.l.bf16 %v1292
      %v1397 = vunpack.c.h.bf16 %v1292
      %v1398 = vunpack.c.l.bf16 %v1282
      %v1399 = vunpack.c.h.bf16 %v1282
      %v1400 = vunpack.c.l.bf16 %v1284
      %v1401 = vunpack.c.h.bf16 %v1284
      %v1402 = vunpack.c.l.bf16 %v1286
      %v1403 = vunpack.c.h.bf16 %v1286
      %v1404 = vlaneseq
      %v1405 = vshrl.u32 %v1404, 7
      %v1406 = vsub.s32 1, %v1405
      %v1407 = vrot.slane %v1273, %v1406
      %v1408 = vmul.f32 %v1396, %v1407
      %v1409 = vmul.f32 %v1397, %v1407
      %v1410 = vmul.f32 %v1398, %v1407
      %v1411 = vmul.f32 %v1399, %v1407
      %v1412 = vmul.f32 %v1400, %v1407
      %v1413 = vmul.f32 %v1401, %v1407
      %v1414 = vmul.f32 %v1402, %v1407
      %v1415 = vmul.f32 %v1403, %v1407
      %v1416 = vadd.f32 %v1388, %v1408
      %v1417 = vadd.f32 %v1389, %v1409
      %v1418 = vadd.f32 %v1390, %v1410
      %v1419 = vadd.f32 %v1391, %v1411
      %v1420 = vadd.f32 %v1392, %v1412
      %v1421 = vadd.f32 %v1393, %v1413
      %v1422 = vadd.f32 %v1394, %v1414
      %v1423 = vadd.f32 %v1395, %v1415
      %vm1424 = vsmask.f32 7424
      %v1425 = vrot.slane %v1298, 1
      %v1426 = vor.u32 %v1295, %v1425
      %v1427 = vrot.slane %v1305, 1
      %v1428 = vsel %vm1424, %v1426, %v1427
      %v1429 = vor.u32 %v1302, %v1427
      %v1430 = vrot.slane %v1313, 1
      %v1431 = vsel %vm1424, %v1429, %v1430
      %v1432 = vor.u32 %v1310, %v1430
      %v1433 = vrot.slane %v1321, 1
      %v1434 = vsel %vm1424, %v1432, %v1433
      %v1435 = vor.u32 %v1318, %v1433
      %vm1440 = vcmask 1047552
      %vm1441 = vmand %vm1440, %vm1424
      %v1442 = vsel %vm1441, %v1435, 0
      %v1443 = vsel %vm538, 1, 0
      %v1444 = vsel %vm539, 1, 0
      %v1445 = vsel %vm540, 1, 0
      %v1446 = vsel %vm541, 1, 0
      %v1447 = vsel %vm542, 1, 0
      %v1448 = vsel %vm543, 1, 0
      %v1449 = vsel %vm544, 1, 0
      %v1450 = vsel %vm545, 1, 0
      %vm1451 = vcmp.eq.s32.totalorder %v1443, 1
      %vm1452 = vcmp.eq.s32.totalorder %v1444, 1
      %vm1453 = vcmp.eq.s32.totalorder %v1445, 1
      %vm1454 = vcmp.eq.s32.totalorder %v1446, 1
      %vm1455 = vcmp.eq.s32.totalorder %v1447, 1
      %vm1456 = vcmp.eq.s32.totalorder %v1448, 1
      %vm1457 = vcmp.eq.s32.totalorder %v1449, 1
      %vm1458 = vcmp.eq.s32.totalorder %v1450, 1
      %vm1459 = vmpackc.low %vm1451, %vm1451
      %vm1460 = vmpackc.low %vm1452, %vm1452
      %vm1461 = vmpackc.low %vm1453, %vm1453
      %vm1462 = vmpackc.low %vm1454, %vm1454
      %vm1463 = vmpackc.low %vm1455, %vm1455
      %vm1464 = vmpackc.low %vm1456, %vm1456
      %vm1465 = vmpackc.low %vm1457, %vm1457
      %vm1466 = vmpackc.low %vm1458, %vm1458
      %v1467 = vsel %vm1459, 65537, 0
      %v1468 = vsel %vm1460, 65537, 0
      %v1469 = vsel %vm1461, 65537, 0
      %v1470 = vsel %vm1462, 65537, 0
      %v1471 = vsel %vm1463, 65537, 0
      %v1472 = vsel %vm1464, 65537, 0
      %v1473 = vsel %vm1465, 65537, 0
      %v1474 = vsel %vm1466, 65537, 0
      %v1475 = vunpack.c.l.b16 %v1467
      %v1476 = vunpack.c.l.b16 %v1468
      %v1477 = vunpack.c.l.b16 %v1469
      %v1478 = vunpack.c.l.b16 %v1470
      %v1479 = vunpack.c.l.b16 %v1471
      %v1480 = vunpack.c.l.b16 %v1472
      %v1481 = vunpack.c.l.b16 %v1473
      %v1482 = vunpack.c.l.b16 %v1474
      %v1483 = vpack.c.b16 %v1476, %v1475
      %v1484 = vpack.c.b16 %v1478, %v1477
      %v1485 = vpack.c.b16 %v1480, %v1479
      %v1486 = vpack.c.b16 %v1482, %v1481
      %vm1487 = vcmp.ne.s16.totalorder %v1483, 0
      %vm1488 = vcmp.ne.s16.totalorder %v1484, 0
      %vm1489 = vcmp.ne.s16.totalorder %v1485, 0
      %vm1490 = vcmp.ne.s16.totalorder %v1486, 0
      %v1491 = vsel %vm1487, %v1428, 0
      %v1492 = vsel %vm1488, %v1431, 0
      %v1493 = vsel %vm1489, %v1434, 0
      %v1494 = vsel %vm1490, %v1442, 0
      %v1495 = vunpack.c.l.bf16 %v1491
      %v1496 = vunpack.c.h.bf16 %v1491
      %v1497 = vunpack.c.l.bf16 %v1492
      %v1498 = vunpack.c.h.bf16 %v1492
      %v1499 = vunpack.c.l.bf16 %v1493
      %v1500 = vunpack.c.h.bf16 %v1493
      %v1501 = vunpack.c.l.bf16 %v1494
      %v1502 = vunpack.c.h.bf16 %v1494
      %v1503 = vlaneseq
      %v1504 = vshrl.u32 %v1503, 7
      %v1505 = vsub.s32 2, %v1504
      %v1506 = vrot.slane %v1273, %v1505
      %v1507 = vmul.f32 %v1495, %v1506
      %v1508 = vmul.f32 %v1496, %v1506
      %v1509 = vmul.f32 %v1497, %v1506
      %v1510 = vmul.f32 %v1498, %v1506
      %v1511 = vmul.f32 %v1499, %v1506
      %v1512 = vmul.f32 %v1500, %v1506
      %v1513 = vmul.f32 %v1501, %v1506
      %v1514 = vmul.f32 %v1502, %v1506
      %v1515 = vadd.f32 %v1416, %v1507
      %v1516 = vadd.f32 %v1417, %v1508
      %v1517 = vadd.f32 %v1418, %v1509
      %v1518 = vadd.f32 %v1419, %v1510
      %v1519 = vadd.f32 %v1420, %v1511
      %v1520 = vadd.f32 %v1421, %v1512
      %v1521 = vadd.f32 %v1422, %v1513
      %v1522 = vadd.f32 %v1423, %v1514
      %v1524 = vshrl.u32 %v1269, 16
      %v1526 = vrot.slane %v1524, 7
      %v1527 = vshll.u32 %v1269, 16
      %v1529 = vor.u32 %v1526, %v1527
      %v1531 = vshrl.u32 %v1270, 16
      %v1533 = vrot.slane %v1531, 7
      %v1534 = vshll.u32 %v1270, 16
      %v1536 = vor.u32 %v1533, %v1534
      %v1537 = vsel %vm1294, %v1526, %v1536
      %v1539 = vshrl.u32 %v1271, 16
      %v1541 = vrot.slane %v1539, 7
      %v1542 = vshll.u32 %v1271, 16
      %v1544 = vor.u32 %v1541, %v1542
      %v1545 = vsel %vm1294, %v1533, %v1544
      %v1547 = vshrl.u32 %v1272, 16
      %v1549 = vrot.slane %v1547, 7
      %v1550 = vshll.u32 %v1272, 16
      %v1552 = vor.u32 %v1549, %v1550
      %v1553 = vsel %vm1294, %v1541, %v1552
      %v1558 = vsel %vm1330, 0, %v1529
      %v1559 = vsel %vm1360, %v1558, 0
      %v1560 = vsel %vm1361, %v1537, 0
      %v1561 = vsel %vm1362, %v1545, 0
      %v1562 = vsel %vm1363, %v1553, 0
      %v1563 = vunpack.c.l.bf16 %v1559
      %v1564 = vunpack.c.h.bf16 %v1559
      %v1565 = vunpack.c.l.bf16 %v1560
      %v1566 = vunpack.c.h.bf16 %v1560
      %v1567 = vunpack.c.l.bf16 %v1561
      %v1568 = vunpack.c.h.bf16 %v1561
      %v1569 = vunpack.c.l.bf16 %v1562
      %v1570 = vunpack.c.h.bf16 %v1562
      %v1571 = vlaneseq
      %v1572 = vshrl.u32 %v1571, 7
      %v1573 = vsub.s32 3, %v1572
      %v1574 = vrot.slane %v1273, %v1573
      %v1575 = vmul.f32 %v1563, %v1574
      %v1576 = vmul.f32 %v1564, %v1574
      %v1577 = vmul.f32 %v1565, %v1574
      %v1578 = vmul.f32 %v1566, %v1574
      %v1579 = vmul.f32 %v1567, %v1574
      %v1580 = vmul.f32 %v1568, %v1574
      %v1581 = vmul.f32 %v1569, %v1574
      %v1582 = vmul.f32 %v1570, %v1574
      %v1583 = vadd.f32 %v1515, %v1575
      %v1584 = vadd.f32 %v1516, %v1576
      %v1585 = vadd.f32 %v1517, %v1577
      %v1586 = vadd.f32 %v1518, %v1578
      %v1587 = vadd.f32 %v1519, %v1579
      %v1588 = vadd.f32 %v1520, %v1580
      %v1589 = vadd.f32 %v1521, %v1581
      %v1590 = vadd.f32 %v1522, %v1582
      %v1591 = vunpack.c.l.bf16 %v1269
      %v1592 = vunpack.c.h.bf16 %v1269
      %v1593 = vunpack.c.l.bf16 %v1270
      %v1594 = vunpack.c.h.bf16 %v1270
      %v1595 = vunpack.c.l.bf16 %v1271
      %v1596 = vunpack.c.h.bf16 %v1271
      %v1597 = vunpack.c.l.bf16 %v1272
      %v1598 = vunpack.c.h.bf16 %v1272
      %v1599 = vlaneseq
      %v1600 = vshrl.u32 %v1599, 7
      %v1601 = vsub.s32 4, %v1600
      %v1602 = vrot.slane %v1273, %v1601
      %v1603 = vmul.f32 %v1591, %v1602
      %v1604 = vmul.f32 %v1592, %v1602
      %v1605 = vmul.f32 %v1593, %v1602
      %v1606 = vmul.f32 %v1594, %v1602
      %v1607 = vmul.f32 %v1595, %v1602
      %v1608 = vmul.f32 %v1596, %v1602
      %v1609 = vmul.f32 %v1597, %v1602
      %v1610 = vmul.f32 %v1598, %v1602
      %v1611 = vadd.f32 %v1583, %v1603
      %v1612 = vadd.f32 %v1584, %v1604
      %v1613 = vadd.f32 %v1585, %v1605
      %v1614 = vadd.f32 %v1586, %v1606
      %v1615 = vadd.f32 %v1587, %v1607
      %v1616 = vadd.f32 %v1588, %v1608
      %v1617 = vadd.f32 %v1589, %v1609
      %v1618 = vadd.f32 %v1590, %v1610
      %v1619 = vrot.slane %v1527, 1
      %v1620 = vor.u32 %v1524, %v1619
      %v1621 = vrot.slane %v1534, 1
      %v1622 = vsel %vm1424, %v1620, %v1621
      %v1623 = vor.u32 %v1531, %v1621
      %v1624 = vrot.slane %v1542, 1
      %v1625 = vsel %vm1424, %v1623, %v1624
      %v1626 = vor.u32 %v1539, %v1624
      %v1627 = vrot.slane %v1550, 1
      %v1628 = vsel %vm1424, %v1626, %v1627
      %v1629 = vor.u32 %v1547, %v1627
      %v1634 = vsel %vm1441, %v1629, 0
      %v1635 = vsel %vm1487, %v1622, 0
      %v1636 = vsel %vm1488, %v1625, 0
      %v1637 = vsel %vm1489, %v1628, 0
      %v1638 = vsel %vm1490, %v1634, 0
      %v1639 = vunpack.c.l.bf16 %v1635
      %v1640 = vunpack.c.h.bf16 %v1635
      %v1641 = vunpack.c.l.bf16 %v1636
      %v1642 = vunpack.c.h.bf16 %v1636
      %v1643 = vunpack.c.l.bf16 %v1637
      %v1644 = vunpack.c.h.bf16 %v1637
      %v1645 = vunpack.c.l.bf16 %v1638
      %v1646 = vunpack.c.h.bf16 %v1638
      %v1647 = vlaneseq
      %v1648 = vshrl.u32 %v1647, 7
      %v1649 = vsub.s32 5, %v1648
      %v1650 = vrot.slane %v1273, %v1649
      %v1651 = vmul.f32 %v1639, %v1650
      %v1652 = vmul.f32 %v1640, %v1650
      %v1653 = vmul.f32 %v1641, %v1650
      %v1654 = vmul.f32 %v1642, %v1650
      %v1655 = vmul.f32 %v1643, %v1650
      %v1656 = vmul.f32 %v1644, %v1650
      %v1657 = vmul.f32 %v1645, %v1650
      %v1658 = vmul.f32 %v1646, %v1650
      %v1659 = vadd.f32 %v1611, %v1651
      %v1660 = vadd.f32 %v1612, %v1652
      %v1661 = vadd.f32 %v1613, %v1653
      %v1662 = vadd.f32 %v1614, %v1654
      %v1663 = vadd.f32 %v1615, %v1655
      %v1664 = vadd.f32 %v1616, %v1656
      %v1665 = vadd.f32 %v1617, %v1657
      %v1666 = vadd.f32 %v1618, %v1658
      %v1668 = vsel %vm575, %v1285, 0
      %v1670 = vshrl.u32 %v1668, 16
      %v1672 = vrot.slane %v1670, 7
      %v1673 = vshll.u32 %v1668, 16
      %v1675 = vor.u32 %v1672, %v1673
      %v1676 = vsel %vm1294, %v1320, %v1675
      %v1679 = vsel %vm1330, 0, %v1307
      %v1680 = vsel %vm1360, %v1679, 0
      %v1681 = vsel %vm1361, %v1316, 0
      %v1682 = vsel %vm1362, %v1324, 0
      %v1683 = vsel %vm1363, %v1676, 0
      %v1684 = vunpack.c.l.bf16 %v1680
      %v1685 = vunpack.c.h.bf16 %v1680
      %v1686 = vunpack.c.l.bf16 %v1681
      %v1687 = vunpack.c.h.bf16 %v1681
      %v1688 = vunpack.c.l.bf16 %v1682
      %v1689 = vunpack.c.h.bf16 %v1682
      %v1690 = vunpack.c.l.bf16 %v1683
      %v1691 = vunpack.c.h.bf16 %v1683
      %v1692 = vlaneseq
      %v1693 = vshrl.u32 %v1692, 7
      %v1694 = vsub.s32 6, %v1693
      %v1695 = vrot.slane %v1273, %v1694
      %v1696 = vmul.f32 %v1684, %v1695
      %v1697 = vmul.f32 %v1685, %v1695
      %v1698 = vmul.f32 %v1686, %v1695
      %v1699 = vmul.f32 %v1687, %v1695
      %v1700 = vmul.f32 %v1688, %v1695
      %v1701 = vmul.f32 %v1689, %v1695
      %v1702 = vmul.f32 %v1690, %v1695
      %v1703 = vmul.f32 %v1691, %v1695
      %v1704 = vadd.f32 %v1659, %v1696
      %v1705 = vadd.f32 %v1660, %v1697
      %v1706 = vadd.f32 %v1661, %v1698
      %v1707 = vadd.f32 %v1662, %v1699
      %v1708 = vadd.f32 %v1663, %v1700
      %v1709 = vadd.f32 %v1664, %v1701
      %v1710 = vadd.f32 %v1665, %v1702
      %v1711 = vadd.f32 %v1666, %v1703
      %v1712 = vunpack.c.l.bf16 %v1668
      %v1713 = vunpack.c.h.bf16 %v1668
      %v1714 = vlaneseq
      %v1715 = vshrl.u32 %v1714, 7
      %v1716 = vsub.s32 7, %v1715
      %v1717 = vrot.slane %v1273, %v1716
      %v1718 = vmul.f32 %v1398, %v1717
      %v1719 = vmul.f32 %v1399, %v1717
      %v1720 = vmul.f32 %v1400, %v1717
      %v1721 = vmul.f32 %v1401, %v1717
      %v1722 = vmul.f32 %v1402, %v1717
      %v1723 = vmul.f32 %v1403, %v1717
      %v1724 = vmul.f32 %v1712, %v1717
      %v1725 = vmul.f32 %v1713, %v1717
      %v1726 = vadd.f32 %v1704, %v1718
      %v1727 = vadd.f32 %v1705, %v1719
      %v1728 = vadd.f32 %v1706, %v1720
      %v1729 = vadd.f32 %v1707, %v1721
      %v1730 = vadd.f32 %v1708, %v1722
      %v1731 = vadd.f32 %v1709, %v1723
      %v1732 = vadd.f32 %v1710, %v1724
      %v1733 = vadd.f32 %v1711, %v1725
      %v1734 = vrot.slane %v1673, 1
      %v1735 = vsel %vm1424, %v1435, %v1734
      %v1736 = vor.u32 %v1670, %v1734
      %v1739 = vsel %vm1441, %v1736, 0
      %v1740 = vsel %vm1487, %v1431, 0
      %v1741 = vsel %vm1488, %v1434, 0
      %v1742 = vsel %vm1489, %v1735, 0
      %v1743 = vsel %vm1490, %v1739, 0
      %v1744 = vunpack.c.l.bf16 %v1740
      %v1745 = vunpack.c.h.bf16 %v1740
      %v1746 = vunpack.c.l.bf16 %v1741
      %v1747 = vunpack.c.h.bf16 %v1741
      %v1748 = vunpack.c.l.bf16 %v1742
      %v1749 = vunpack.c.h.bf16 %v1742
      %v1750 = vunpack.c.l.bf16 %v1743
      %v1751 = vunpack.c.h.bf16 %v1743
      %v1752 = vlaneseq
      %v1753 = vshrl.u32 %v1752, 7
      %v1754 = vsub.s32 0, %v1753
      %v1755 = vrot.slane %v1274, %v1754
      %v1756 = vmul.f32 %v1744, %v1755
      %v1757 = vmul.f32 %v1745, %v1755
      %v1758 = vmul.f32 %v1746, %v1755
      %v1759 = vmul.f32 %v1747, %v1755
      %v1760 = vmul.f32 %v1748, %v1755
      %v1761 = vmul.f32 %v1749, %v1755
      %v1762 = vmul.f32 %v1750, %v1755
      %v1763 = vmul.f32 %v1751, %v1755
      %v1764 = vadd.f32 %v1726, %v1756
      %v1765 = vadd.f32 %v1727, %v1757
      %v1766 = vadd.f32 %v1728, %v1758
      %v1767 = vadd.f32 %v1729, %v1759
      %v1768 = vadd.f32 %v1730, %v1760
      %v1769 = vadd.f32 %v1731, %v1761
      %v1770 = vadd.f32 %v1732, %v1762
      %v1771 = vadd.f32 %v1733, %v1763
      %v1772 = vld [vmem:[%s9] sm:$0x1]
      %v1774 = vlaneseq
      %v1775 = vshrl.u32 %v1774, 7
      %v1776 = vsub.s32 0, %v1775
      %v1777 = vrot.slane %v1772, %v1776
      %v1779 = vadd.f32 %v1764, %v1777
      %v1780 = vadd.f32 %v1765, %v1777
      %v1781 = vadd.f32 %v1766, %v1777
      %v1782 = vadd.f32 %v1767, %v1777
      %v1783 = vadd.f32 %v1768, %v1777
      %v1784 = vadd.f32 %v1769, %v1777
      %v1785 = vadd.f32 %v1770, %v1777
      %v1786 = vadd.f32 %v1771, %v1777
      %v1787 = vmax.f32 %v1779, 0.0
      %v1788 = vmax.f32 %v1780, 0.0
      %v1789 = vmax.f32 %v1781, 0.0
      %v1790 = vmax.f32 %v1782, 0.0
      %v1791 = vmax.f32 %v1783, 0.0
      %v1792 = vmax.f32 %v1784, 0.0
      %v1793 = vmax.f32 %v1785, 0.0
      %v1794 = vmax.f32 %v1786, 0.0
      %v1795 = vpack.c.bf16 %v1788, %v1787
      %v1796 = vpack.c.bf16 %v1790, %v1789
      %v1797 = vpack.c.bf16 %v1792, %v1791
      %v1798 = vpack.c.bf16 %v1794, %v1793
      %v1799 = vld [vmem:[%s10] sm:$0xf]
      %v1800 = vld [vmem:[%s10 + $0x4] sm:$0xf]
      %v1801 = vld [vmem:[%s10 + $0x8] sm:$0xf]
      %v1802 = vld [vmem:[%s10 + $0xc] sm:$0xf]
      %v1803 = vld [vmem:[%s11] sm:$0x1]
      %v1805 = vlaneseq
      %v1806 = vshrl.u32 %v1805, 7
      %v1807 = vsub.s32 0, %v1806
      %v1808 = vrot.slane %v1803, %v1807
      %v1814 = vunpack.c.l.b16 %v1799
      %v1815 = vunpack.c.l.b16 %v1800
      %v1816 = vunpack.c.l.b16 %v1801
      %v1817 = vunpack.c.l.b16 %v1802
      %v1818 = vpack.c.b16 %v1815, %v1814
      %v1819 = vpack.c.b16 %v1817, %v1816
      %vm1822 = vcmask 261120
      %v1824 = vsel %vm1822, %v1795, 0
      %v1827 = vsel %vm1822, %v1796, 0
      %v1830 = vsel %vm1822, %v1797, 0
      %v1833 = vsel %vm1822, %v1798, 0
      %1835 = vmatprep.subr.bf16.mxu0 0
      %1836 = vmatpush1.bf16.msra.mxu0 %v1818
      %1837 = vmatprep.subr.bf16.mxu0 0
      %1838 = vmatpush1.bf16.msra.mxu0 %v1819
      %1839 = vmatprep.subr.bf16.mxu0 0
      %1840 = vmatpush1.bf16.msra.mxu0 0
      %1841 = vmatprep.subr.bf16.mxu0 0
      %1842 = vmatpush1.bf16.msra.mxu0 0
      %1843 = vmatprep.subr.bf16.mxu0 0
      %1844 = vmatpush1.bf16.msra.mxu0 0
      %1845 = vmatprep.subr.bf16.mxu0 0
      %1846 = vmatpush1.bf16.msra.mxu0 0
      %1847 = vmatprep.subr.bf16.mxu0 0
      %1848 = vmatpush1.bf16.msra.mxu0 0
      %1849 = vmatprep.subr.bf16.mxu0 0
      %1850 = vmatpush1.bf16.msra.mxu0 0
      %1851 = vmatprep.subr.bf16.mxu0 0
      %1852 = vmatpush1.bf16.msra.mxu0 0
      %1853 = vmatprep.subr.bf16.mxu0 0
      %1854 = vmatpush1.bf16.msra.mxu0 0
      %1855 = vmatprep.subr.bf16.mxu0 0
      %1856 = vmatpush1.bf16.msra.mxu0 0
      %1857 = vmatprep.subr.bf16.mxu0 0
      %1858 = vmatpush1.bf16.msra.mxu0 0
      %1859 = vmatprep.subr.bf16.mxu0 0
      %1860 = vmatpush1.bf16.msra.mxu0 0
      %1861 = vmatprep.subr.bf16.mxu0 0
      %1862 = vmatpush1.bf16.msra.mxu0 0
      %1863 = vmatprep.subr.bf16.mxu0 0
      %1864 = vmatpush1.bf16.msra.mxu0 0
      %1865 = vmatprep.subr.bf16.mxu0 0
      %1866 = vmatpush1.bf16.msra.mxu0 0
      %1867 = vmatprep.mubr.bf16.mxu0 0
      %1868 = vmatmul.mubr.bf16.gmra.mrb[0].mxu0 %v1824
      %v1869 = vpop.f32.mrb[0].mxu0
      %v1870 = vadd.f32 %v1808, %v1869
      %v1871 = vpop.f32.mrb[0].mxu0
      %v1872 = vpop.f32.mrb[0].mxu0
      %v1873 = vadd.f32 %v1808, %v1872
      %v1874 = vpop.f32.mrb[0].mxu0
      %1875 = vmatprep.mubr.bf16.mxu0 0
      %1876 = vmatmul.mubr.bf16.gmra.mrb[0].mxu0 %v1827
      %v1877 = vpop.f32.mrb[0].mxu0
      %v1878 = vadd.f32 %v1808, %v1877
      %v1879 = vpop.f32.mrb[0].mxu0
      %v1880 = vpop.f32.mrb[0].mxu0
      %v1881 = vadd.f32 %v1808, %v1880
      %v1882 = vpop.f32.mrb[0].mxu0
      %1883 = vmatprep.mubr.bf16.mxu0 0
      %1884 = vmatmul.mubr.bf16.gmra.mrb[0].mxu0 %v1830
      %v1885 = vpop.f32.mrb[0].mxu0
      %v1886 = vadd.f32 %v1808, %v1885
      %v1887 = vpop.f32.mrb[0].mxu0
      %v1888 = vpop.f32.mrb[0].mxu0
      %v1889 = vadd.f32 %v1808, %v1888
      %v1890 = vpop.f32.mrb[0].mxu0
      %1891 = vmatprep.mubr.bf16.mxu0 0
      %1892 = vmatmul.mubr.bf16.gmra.mrb[0].mxu0 %v1833
      %v1893 = vpop.f32.mrb[0].mxu0
      %v1894 = vadd.f32 %v1808, %v1893
      %v1895 = vpop.f32.mrb[0].mxu0
      %v1896 = vpop.f32.mrb[0].mxu0
      %v1897 = vadd.f32 %v1808, %v1896
      %v1898 = vpop.f32.mrb[0].mxu0
      %1899 = vdwg.mxu0
      %v1900 = vadd.f32 %v1870, %v1156
      %v1901 = vadd.f32 %v1873, %v1157
      %v1902 = vadd.f32 %v1878, %v1158
      %v1903 = vadd.f32 %v1881, %v1159
      %v1904 = vadd.f32 %v1886, %v1160
      %v1905 = vadd.f32 %v1889, %v1161
      %v1906 = vadd.f32 %v1894, %v1162
      %v1907 = vadd.f32 %v1897, %v1163
      %v1908 = vpack.c.bf16 %v1901, %v1900
      %v1909 = vpack.c.bf16 %v1903, %v1902
      %v1910 = vpack.c.bf16 %v1905, %v1904
      %v1911 = vpack.c.bf16 %v1907, %v1906
      %v1916 = vunpack.c.l.b16 %v1908
      %v1917 = vunpack.c.h.b16 %v1908
      %v1918 = vunpack.c.l.b16 %v1909
      %v1919 = vunpack.c.h.b16 %v1909
      %v1920 = vunpack.c.l.b16 %v1910
      %v1921 = vunpack.c.h.b16 %v1910
      %v1922 = vunpack.c.l.b16 %v1911
      %v1923 = vunpack.c.h.b16 %v1911
      %v1924 = vpack.c.b16 %v1916, %v1916
      %v1925 = vpack.c.b16 %v1917, %v1917
      %v1926 = vpack.c.b16 %v1918, %v1918
      %v1927 = vpack.c.b16 %v1919, %v1919
      %v1928 = vpack.c.b16 %v1920, %v1920
      %v1929 = vpack.c.b16 %v1921, %v1921
      %v1930 = vpack.c.b16 %v1922, %v1922
      %v1931 = vpack.c.b16 %v1923, %v1923
      %vm1940 = vcmask 125952
      %1941 = vst.msk [vmem:[%s413] sm:$0xf] %vm1940, %v1924
      %1942 = vst.msk [vmem:[%s413 + $0x4] sm:$0xf] %vm1940, %v1925
      %1943 = vst.msk [vmem:[%s413 + $0x8] sm:$0xf] %vm1940, %v1926
      %1944 = vst.msk [vmem:[%s413 + $0xc] sm:$0xf] %vm1940, %v1927
      %1945 = vst.msk [vmem:[%s413 + $0x10] sm:$0xf] %vm1940, %v1928
      %1946 = vst.msk [vmem:[%s413 + $0x14] sm:$0xf] %vm1940, %v1929
      %1947 = vst.msk [vmem:[%s413 + $0x18] sm:$0xf] %vm1940, %v1930
      %1948 = vst.msk [vmem:[%s413 + $0x1c] sm:$0xf] %vm1940, %v1931
      %p1949 = scmp.lt.s32.totalorder %s23, 1
      %s1950 = scalar_select %p1949, %s23, 1
      %s1951 = smul.addr %s1950, 8
      %s1952 = smul.addr %s1951, 4
      %s1953 = scalar_lea.vmem %s12, %s1952
      // Predicated region
      $region69: #{forward.2} parent=67 // pred_check
        %p1954 = pneg %p298
      $region70: #{forward.2} parent=67 // pred_check_branch
        %1956 = sbr.rel (%p1954) target = $region72
      $region71: #{forward.2} parent=67 // pred_region
        _
      $region72: #{forward.2} parent=67 // pred_fallthru
        _
    $region68: #{forward.2} parent=5 // pred_fallthru
      _
    %p1957 = scmp.le.s32.totalorder 2, %s18
    // Predicated region
    $region73: #{forward.2} parent=5 // pred_check
      %p1958 = pneg %p1957
    $region74: #{forward.2} parent=5 // pred_check_branch
      %1960 = sbr.rel (%p1958) target = $region76
    $region75: #{forward.2} parent=5 // pred_region
      %s1961 = ssub.s32 %s18, 2
      // Predicated region
      $region77: #{forward.2} parent=75 // pred_check
        %p1962 = pneg %p304
      $region78: #{forward.2} parent=75 // pred_check_branch
        %1964 = sbr.rel (%p1962) target = $region80
      $region79: #{forward.2} parent=75 // pred_region
        %p1965 = scmp.lt.s32.totalorder %s24, 1
        %s1966 = scalar_select %p1965, %s24, 1
        %s1967 = smul.addr %s1966, 8
        %s1968 = smul.addr %s1967, 4
        %s1969 = scalar_lea.vmem %s12, %s1968
      $region80: #{forward.2} parent=75 // pred_fallthru
        _
    $region76: #{forward.2} parent=5 // pred_fallthru
      _
  $region6: #{forward.2} parent=0 // loop_footer
    %s22 = sadd.s32 1, %s18
  $region7: #{forward.2} parent=0 // loop_footer_branch
    %17 = sbr.rel target = $region3
  $region8: #{forward.2} parent=0 // loop_exit
    _

</llo_original>
